<compile_context>
chip_gen: v7x
topology: tpu7x:2x2x1
jax: 0.10.0
libtpu: 0.0.40
codegen_flags: <defaults>
</compile_context>

<pallas_src>
import functools

import jax
import jax.numpy as jnp
from jax.experimental import pallas as pl
from jax.experimental.pallas import tpu as pltpu

IN_F = 784         # real feature dim (28*28)
IN_PAD = 896       # 7 * 128 -> lane-dense padding of 784
HID = 512
LAT = 2            # latent dim
HEAD_PAD = 128     # fused fc21|fc22 head padded to one lane-dense vreg width


def _vae_kernel(x_ref, w1_ref, b1_ref, wh_ref, bh_ref, w3_ref, b3_ref,
                w4_ref, b4_ref, eps_ref, recon_ref, head_ref, *, training):
    # ---- encode: h1 = relu(x @ W1 + b1) ------------------------------------
    x = x_ref[...].astype(jnp.bfloat16)                              # (TB, 896)
    h1 = jnp.dot(x, w1_ref[...], preferred_element_type=jnp.float32)
    h1 = jnp.maximum(h1 + b1_ref[...], 0.0)                          # (TB, 512) f32

    # ---- fused head: [mu | logvar | 0 ...] = h1 @ Wh + bh -------------------
    head = jnp.dot(h1.astype(jnp.bfloat16), wh_ref[...],
                   preferred_element_type=jnp.float32) + bh_ref[...]  # (TB, 128)
    head_ref[...] = head                                             # lane-dense store

    mu = head[:, 0:LAT]                                              # (TB, 2)
    logvar = head[:, LAT:2 * LAT]                                    # (TB, 2)

    # ---- reparameterize (f32, EUP exp) --------------------------------------
    if training:
        z = eps_ref[...] * jnp.exp(0.5 * logvar) + mu                # (TB, 2)
    else:
        z = mu

    # ---- decode --------------------------------------------------------------
    # fc3 has K=2: two VPU broadcast-FMAs instead of an MXU matmul.
    h3 = (z[:, 0:1] * w3_ref[0:1, :]
          + z[:, 1:2] * w3_ref[1:2, :]
          + b3_ref[...])                                             # (TB, 512) f32
    h3 = jnp.maximum(h3, 0.0)

    logits = jnp.dot(h3.astype(jnp.bfloat16), w4_ref[...],
                     preferred_element_type=jnp.float32) + b4_ref[...]
    recon_ref[...] = jax.nn.sigmoid(logits)                          # (TB, 896) f32


def prepare_params(params):
    """Pad / fuse / bf16-cast PyTorch-layout params into kernel layout (done once)."""
    w1 = jnp.zeros((IN_PAD, HID), jnp.float32).at[:IN_F].set(params["w1"])
    wh = jnp.zeros((HID, HEAD_PAD), jnp.float32)
    wh = wh.at[:, 0:LAT].set(params["w21"]).at[:, LAT:2 * LAT].set(params["w22"])
    bh = jnp.zeros((1, HEAD_PAD), jnp.float32)
    bh = bh.at[:, 0:LAT].set(params["b21"]).at[:, LAT:2 * LAT].set(params["b22"])
    w4 = jnp.zeros((HID, IN_PAD), jnp.float32).at[:, :IN_F].set(params["w4"])
    b4 = jnp.zeros((1, IN_PAD), jnp.float32).at[:, :IN_F].set(params["b4"])
    return dict(
        w1=w1.astype(jnp.bfloat16), b1=params["b1"].astype(jnp.float32),
        wh=wh.astype(jnp.bfloat16), bh=bh,
        w3=params["w3"].astype(jnp.float32), b3=params["b3"].astype(jnp.float32),
        w4=w4.astype(jnp.bfloat16), b4=b4,
    )


def vae_forward(x, kparams, eps, *, training=True, block_b=256):
    """x: any shape with trailing elements == 784 (e.g. (B,1,28,28))."""
    x2d = x.reshape(-1, IN_F).astype(jnp.float32)
    B = x2d.shape[0]
    eps = eps.astype(jnp.float32)

    # Batch tile: multiple of 8 sublanes; <=256 keeps 2x double-buffered tiles
    # + resident weights well inside v5e's 16 MiB / v7x's 32 MiB scoped VMEM.
    TB = min(block_b, max(8, ((B + 7) // 8) * 8))
    Bp = ((B + TB - 1) // TB) * TB
    if Bp != B:
        x2d = jnp.pad(x2d, ((0, Bp - B), (0, 0)))
        eps = jnp.pad(eps, ((0, Bp - B), (0, 0)))
    x_pad = jnp.pad(x2d, ((0, 0), (0, IN_PAD - IN_F)))               # 784 -> 896

    def tile(shape):
        return pl.BlockSpec(shape, lambda i: (i, 0))

    def resident(shape):
        return pl.BlockSpec(shape, lambda i: (0, 0))

    kernel = functools.partial(_vae_kernel, training=training)

    recon_pad, head = pl.pallas_call(
        kernel,
        grid=(Bp // TB,),
        out_shape=(
            jax.ShapeDtypeStruct((Bp, IN_PAD), jnp.float32),
            jax.ShapeDtypeStruct((Bp, HEAD_PAD), jnp.float32),
        ),
        in_specs=[
            tile((TB, IN_PAD)),                              # x
            resident((IN_PAD, HID)), resident((1, HID)),     # w1, b1
            resident((HID, HEAD_PAD)), resident((1, HEAD_PAD)),  # wh, bh (fused head)
            resident((LAT, HID)), resident((1, HID)),        # w3, b3
            resident((HID, IN_PAD)), resident((1, IN_PAD)),  # w4, b4
            tile((TB, LAT)),                                 # eps
        ],
        out_specs=(tile((TB, IN_PAD)), tile((TB, HEAD_PAD))),
        compiler_params=pltpu.CompilerParams(
            dimension_semantics=("parallel",)),
    )(x_pad, kparams["w1"], kparams["b1"], kparams["wh"], kparams["bh"],
      kparams["w3"], kparams["b3"], kparams["w4"], kparams["b4"], eps)

    recon = recon_pad[:B, :IN_F]
    mu = head[:B, 0:LAT]
    logvar = head[:B, LAT:2 * LAT]
    return recon, mu, logvar


def init_params(key):
    """Deterministic parameter init; weights stored as (in, out), biases (1, out)."""
    ks = jax.random.split(key, 10)

    def linear(kw, kb, fan_in, fan_out):
        bound = 1.0 / jnp.sqrt(fan_in)
        w = jax.random.uniform(kw, (fan_in, fan_out), jnp.float32, -bound, bound)
        b = jax.random.uniform(kb, (1, fan_out), jnp.float32, -bound, bound)
        return w, b

    w1, b1 = linear(ks[0], ks[1], IN_F, HID)
    w21, b21 = linear(ks[2], ks[3], HID, LAT)
    w22, b22 = linear(ks[4], ks[5], HID, LAT)
    w3, b3 = linear(ks[6], ks[7], LAT, HID)
    w4, b4 = linear(ks[8], ks[9], HID, IN_F)
    return dict(w1=w1, b1=b1, w21=w21, b21=b21, w22=w22, b22=b22,
                w3=w3, b3=b3, w4=w4, b4=b4)


def vae_forward_ref(x, params, eps, *, training=True):
    """Pure-JAX f32 reference for correctness check."""
    x2d = x.reshape(-1, IN_F).astype(jnp.float32)
    h1 = jnp.maximum(x2d @ params["w1"] + params["b1"], 0.0)
    mu = h1 @ params["w21"] + params["b21"]
    logvar = h1 @ params["w22"] + params["b22"]
    z = eps * jnp.exp(0.5 * logvar) + mu if training else mu
    h3 = jnp.maximum(z @ params["w3"] + params["b3"], 0.0)
    recon = jax.nn.sigmoid(h3 @ params["w4"] + params["b4"])
    return recon, mu, logvar


if __name__ == "__main__":
    key = jax.random.PRNGKey(0)
    k_param, k_x, k_eps = jax.random.split(key, 3)

    B = 8
    params = init_params(k_param)
    kparams = prepare_params(params)                       # pad / fuse / bf16 once
    x = jax.random.uniform(k_x, (B, 1, 28, 28), jnp.float32)   # MNIST-like NCHW
    eps = jax.random.normal(k_eps, (B, LAT), jnp.float32)      # reparameterize noise

    recon, mu, logvar = jax.block_until_ready(
        vae_forward(x, kparams, eps, training=True))

    r_ref, mu_ref, lv_ref = vae_forward_ref(x, params, eps, training=True)
    assert recon.shape == (B, IN_F) and mu.shape == (B, LAT) and logvar.shape == (B, LAT)
    # bf16 matmul operands (f32 accumulation) -> loosened tolerance vs f32 reference.
    assert jnp.allclose(recon, r_ref, atol=2e-2)
    assert jnp.allclose(mu, mu_ref, atol=2e-2)
    assert jnp.allclose(logvar, lv_ref, atol=2e-2)

    print("KERNEL_OK")
</pallas_src>

<mosaic_0001>
module attributes {stable_mosaic.version = 11 : i64} {
  func.func @_vae_kernel(%arg0: i32, %arg1: memref<8x896xf32, #tpu.memory_space<vmem>>, %arg2: memref<896x512xbf16, #tpu.memory_space<vmem>>, %arg3: memref<1x512xf32, #tpu.memory_space<vmem>>, %arg4: memref<512x128xbf16, #tpu.memory_space<vmem>>, %arg5: memref<1x128xf32, #tpu.memory_space<vmem>>, %arg6: memref<2x512xf32, #tpu.memory_space<vmem>>, %arg7: memref<1x512xf32, #tpu.memory_space<vmem>>, %arg8: memref<512x896xbf16, #tpu.memory_space<vmem>>, %arg9: memref<1x896xf32, #tpu.memory_space<vmem>>, %arg10: memref<8x2xf32, #tpu.memory_space<vmem>>, %arg11: memref<8x896xf32, #tpu.memory_space<vmem>>, %arg12: memref<8x128xf32, #tpu.memory_space<vmem>>) attributes {dimension_semantics = [#tpu.dimension_semantics<parallel>], iteration_bounds = array<i64: 1>, scalar_prefetch = 0 : i64, scratch_operands = 0 : i64, tpu.core_type = #tpu.core_type<tc>, window_params = [{transform_indices = @transform_0, window_bounds = array<i64: 8, 896>}, {pipeline_mode = #tpu.pipeline_mode<synchronous>, transform_indices = @transform_1, window_bounds = array<i64: 896, 512>}, {pipeline_mode = #tpu.pipeline_mode<synchronous>, transform_indices = @transform_2, window_bounds = array<i64: 1, 512>}, {pipeline_mode = #tpu.pipeline_mode<synchronous>, transform_indices = @transform_3, window_bounds = array<i64: 512, 128>}, {pipeline_mode = #tpu.pipeline_mode<synchronous>, transform_indices = @transform_4, window_bounds = array<i64: 1, 128>}, {pipeline_mode = #tpu.pipeline_mode<synchronous>, transform_indices = @transform_5, window_bounds = array<i64: 2, 512>}, {pipeline_mode = #tpu.pipeline_mode<synchronous>, transform_indices = @transform_6, window_bounds = array<i64: 1, 512>}, {pipeline_mode = #tpu.pipeline_mode<synchronous>, transform_indices = @transform_7, window_bounds = array<i64: 512, 896>}, {pipeline_mode = #tpu.pipeline_mode<synchronous>, transform_indices = @transform_8, window_bounds = array<i64: 1, 896>}, {transform_indices = @transform_9, window_bounds = array<i64: 8, 2>}, {transform_indices = @transform_10, window_bounds = array<i64: 8, 896>}, {transform_indices = @transform_11, window_bounds = array<i64: 8, 128>}]} {
    %c0 = arith.constant 0 : index
    %c0_0 = arith.constant 0 : index
    %0 = vector.load %arg1[%c0, %c0_0] : memref<8x896xf32, #tpu.memory_space<vmem>>, vector<8x896xf32>
    %1 = arith.truncf %0 : vector<8x896xf32> to vector<8x896xbf16>
    %c0_1 = arith.constant 0 : index
    %c0_2 = arith.constant 0 : index
    %2 = vector.load %arg2[%c0_1, %c0_2] : memref<896x512xbf16, #tpu.memory_space<vmem>>, vector<896x512xbf16>
    %cst = arith.constant dense<0.000000e+00> : vector<8x512xf32>
    %3 = tpu.matmul %1, %2, %cst {dimension_numbers = #tpu.dot_dimension_numbers<[1], [0], [0], [1], [0, 0, 1, 1], [], []>} : vector<8x896xbf16>, vector<896x512xbf16>, vector<8x512xf32> -> vector<8x512xf32>
    %c0_3 = arith.constant 0 : index
    %c0_4 = arith.constant 0 : index
    %4 = vector.load %arg3[%c0_3, %c0_4] : memref<1x512xf32, #tpu.memory_space<vmem>>, vector<1x512xf32>
    %5 = vector.broadcast %4 : vector<1x512xf32> to vector<8x512xf32>
    %6 = arith.addf %3, %5 : vector<8x512xf32>
    %cst_5 = arith.constant 0.000000e+00 : f32
    %7 = vector.broadcast %cst_5 : f32 to vector<8x512xf32>
    %8 = arith.maximumf %6, %7 : vector<8x512xf32>
    %9 = arith.truncf %8 : vector<8x512xf32> to vector<8x512xbf16>
    %c0_6 = arith.constant 0 : index
    %c0_7 = arith.constant 0 : index
    %10 = vector.load %arg4[%c0_6, %c0_7] : memref<512x128xbf16, #tpu.memory_space<vmem>>, vector<512x128xbf16>
    %cst_8 = arith.constant dense<0.000000e+00> : vector<8x128xf32>
    %11 = tpu.matmul %9, %10, %cst_8 {dimension_numbers = #tpu.dot_dimension_numbers<[1], [0], [0], [1], [0, 0, 1, 1], [], []>} : vector<8x512xbf16>, vector<512x128xbf16>, vector<8x128xf32> -> vector<8x128xf32>
    %c0_9 = arith.constant 0 : index
    %c0_10 = arith.constant 0 : index
    %12 = vector.load %arg5[%c0_9, %c0_10] : memref<1x128xf32, #tpu.memory_space<vmem>>, vector<1x128xf32>
    %13 = vector.broadcast %12 : vector<1x128xf32> to vector<8x128xf32>
    %14 = arith.addf %11, %13 : vector<8x128xf32>
    %c0_11 = arith.constant 0 : index
    %c0_12 = arith.constant 0 : index
    %15 = vector.load %arg12[%c0_11, %c0_12] : memref<8x128xf32, #tpu.memory_space<vmem>>, vector<8x128xf32>
    tpu.vector_store %arg12[%c0_11, %c0_12], %14 {strides = array<i32>} : memref<8x128xf32, #tpu.memory_space<vmem>>, vector<8x128xf32>,
    %16 = vector.extract_strided_slice %14 {offsets = [0, 0], sizes = [8, 2], strides = [1, 1]} : vector<8x128xf32> to vector<8x2xf32>
    %17 = vector.extract_strided_slice %14 {offsets = [0, 2], sizes = [8, 2], strides = [1, 1]} : vector<8x128xf32> to vector<8x2xf32>
    %c0_13 = arith.constant 0 : index
    %c0_14 = arith.constant 0 : index
    %18 = vector.load %arg10[%c0_13, %c0_14] : memref<8x2xf32, #tpu.memory_space<vmem>>, vector<8x2xf32>
    %cst_15 = arith.constant 5.000000e-01 : f32
    %19 = vector.broadcast %cst_15 : f32 to vector<8x2xf32>
    %20 = arith.mulf %19, %17 : vector<8x2xf32>
    %21 = math.exp %20 : vector<8x2xf32>
    %22 = arith.mulf %18, %21 : vector<8x2xf32>
    %23 = arith.addf %22, %16 : vector<8x2xf32>
    %24 = vector.extract_strided_slice %23 {offsets = [0, 0], sizes = [8, 1], strides = [1, 1]} : vector<8x2xf32> to vector<8x1xf32>
    %c0_16 = arith.constant 0 : index
    %c0_17 = arith.constant 0 : index
    %25 = vector.load %arg6[%c0_16, %c0_17] : memref<2x512xf32, #tpu.memory_space<vmem>>, vector<1x512xf32>
    %26 = vector.broadcast %24 : vector<8x1xf32> to vector<8x512xf32>
    %27 = vector.broadcast %25 : vector<1x512xf32> to vector<8x512xf32>
    %28 = arith.mulf %26, %27 : vector<8x512xf32>
    %29 = vector.extract_strided_slice %23 {offsets = [0, 1], sizes = [8, 1], strides = [1, 1]} : vector<8x2xf32> to vector<8x1xf32>
    %c1 = arith.constant 1 : index
    %c0_18 = arith.constant 0 : index
    %30 = vector.load %arg6[%c1, %c0_18] : memref<2x512xf32, #tpu.memory_space<vmem>>, vector<1x512xf32>
    %31 = vector.broadcast %29 : vector<8x1xf32> to vector<8x512xf32>
    %32 = vector.broadcast %30 : vector<1x512xf32> to vector<8x512xf32>
    %33 = arith.mulf %31, %32 : vector<8x512xf32>
    %34 = arith.addf %28, %33 : vector<8x512xf32>
    %c0_19 = arith.constant 0 : index
    %c0_20 = arith.constant 0 : index
    %35 = vector.load %arg7[%c0_19, %c0_20] : memref<1x512xf32, #tpu.memory_space<vmem>>, vector<1x512xf32>
    %36 = vector.broadcast %35 : vector<1x512xf32> to vector<8x512xf32>
    %37 = arith.addf %34, %36 : vector<8x512xf32>
    %cst_21 = arith.constant 0.000000e+00 : f32
    %38 = vector.broadcast %cst_21 : f32 to vector<8x512xf32>
    %39 = arith.maximumf %37, %38 : vector<8x512xf32>
    %40 = arith.truncf %39 : vector<8x512xf32> to vector<8x512xbf16>
    %c0_22 = arith.constant 0 : index
    %c0_23 = arith.constant 0 : index
    %41 = vector.load %arg8[%c0_22, %c0_23] : memref<512x896xbf16, #tpu.memory_space<vmem>>, vector<512x896xbf16>
    %cst_24 = arith.constant dense<0.000000e+00> : vector<8x896xf32>
    %42 = tpu.matmul %40, %41, %cst_24 {dimension_numbers = #tpu.dot_dimension_numbers<[1], [0], [0], [1], [0, 0, 1, 1], [], []>} : vector<8x512xbf16>, vector<512x896xbf16>, vector<8x896xf32> -> vector<8x896xf32>
    %c0_25 = arith.constant 0 : index
    %c0_26 = arith.constant 0 : index
    %43 = vector.load %arg9[%c0_25, %c0_26] : memref<1x896xf32, #tpu.memory_space<vmem>>, vector<1x896xf32>
    %44 = vector.broadcast %43 : vector<1x896xf32> to vector<8x896xf32>
    %45 = arith.addf %42, %44 : vector<8x896xf32>
    %46 = arith.negf %45 : vector<8x896xf32>
    %47 = math.exp %46 : vector<8x896xf32>
    %cst_27 = arith.constant 1.000000e+00 : f32
    %48 = vector.broadcast %cst_27 : f32 to vector<8x896xf32>
    %49 = arith.addf %48, %47 : vector<8x896xf32>
    %50 = arith.divf %48, %49 : vector<8x896xf32>
    %c0_28 = arith.constant 0 : index
    %c0_29 = arith.constant 0 : index
    %51 = vector.load %arg11[%c0_28, %c0_29] : memref<8x896xf32, #tpu.memory_space<vmem>>, vector<8x896xf32>
    tpu.vector_store %arg11[%c0_28, %c0_29], %50 {strides = array<i32>} : memref<8x896xf32, #tpu.memory_space<vmem>>, vector<8x896xf32>,
    return
  }
  func.func @transform_0(%arg0: i32) -> (i32, i32) {
    %c0_i32 = arith.constant 0 : i32
    %c0_i32_0 = arith.constant 0 : i32
    return %arg0, %c0_i32 : i32, i32
  }
  func.func @transform_1(%arg0: i32) -> (i32, i32) {
    %c0_i32 = arith.constant 0 : i32
    %c0_i32_0 = arith.constant 0 : i32
    %c0_i32_1 = arith.constant 0 : i32
    return %c0_i32, %c0_i32_0 : i32, i32
  }
  func.func @transform_2(%arg0: i32) -> (i32, i32) {
    %c0_i32 = arith.constant 0 : i32
    %c0_i32_0 = arith.constant 0 : i32
    %c0_i32_1 = arith.constant 0 : i32
    return %c0_i32, %c0_i32_0 : i32, i32
  }
  func.func @transform_3(%arg0: i32) -> (i32, i32) {
    %c0_i32 = arith.constant 0 : i32
    %c0_i32_0 = arith.constant 0 : i32
    %c0_i32_1 = arith.constant 0 : i32
    return %c0_i32, %c0_i32_0 : i32, i32
  }
  func.func @transform_4(%arg0: i32) -> (i32, i32) {
    %c0_i32 = arith.constant 0 : i32
    %c0_i32_0 = arith.constant 0 : i32
    %c0_i32_1 = arith.constant 0 : i32
    return %c0_i32, %c0_i32_0 : i32, i32
  }
  func.func @transform_5(%arg0: i32) -> (i32, i32) {
    %c0_i32 = arith.constant 0 : i32
    %c0_i32_0 = arith.constant 0 : i32
    %c0_i32_1 = arith.constant 0 : i32
    return %c0_i32, %c0_i32_0 : i32, i32
  }
  func.func @transform_6(%arg0: i32) -> (i32, i32) {
    %c0_i32 = arith.constant 0 : i32
    %c0_i32_0 = arith.constant 0 : i32
    %c0_i32_1 = arith.constant 0 : i32
    return %c0_i32, %c0_i32_0 : i32, i32
  }
  func.func @transform_7(%arg0: i32) -> (i32, i32) {
    %c0_i32 = arith.constant 0 : i32
    %c0_i32_0 = arith.constant 0 : i32
    %c0_i32_1 = arith.constant 0 : i32
    return %c0_i32, %c0_i32_0 : i32, i32
  }
  func.func @transform_8(%arg0: i32) -> (i32, i32) {
    %c0_i32 = arith.constant 0 : i32
    %c0_i32_0 = arith.constant 0 : i32
    %c0_i32_1 = arith.constant 0 : i32
    return %c0_i32, %c0_i32_0 : i32, i32
  }
  func.func @transform_9(%arg0: i32) -> (i32, i32) {
    %c0_i32 = arith.constant 0 : i32
    %c0_i32_0 = arith.constant 0 : i32
    return %arg0, %c0_i32 : i32, i32
  }
  func.func @transform_10(%arg0: i32) -> (i32, i32) {
    %c0_i32 = arith.constant 0 : i32
    %c0_i32_0 = arith.constant 0 : i32
    return %arg0, %c0_i32 : i32, i32
  }
  func.func @transform_11(%arg0: i32) -> (i32, i32) {
    %c0_i32 = arith.constant 0 : i32
    %c0_i32_0 = arith.constant 0 : i32
    return %arg0, %c0_i32 : i32, i32
  }
}

</mosaic_0001>

<llo_original>
// kernel: tpu_custom_call.1
$region0: #{tpu_custom_call.1}
  #allocation0 [shape = 'u32[]', space=smem, size = 0x4, offset = 0x4, fixed_abs, tag = 'smem constant byte address 0x4 - core index']
  #allocation1 [shape = 'u32[144,128]{1,0:T(1,128)}', space=vmem, size = 0x12000, scoped, tag = 'internal scratch']
  %s0 = inlined_call_operand.hbm [shape: f32[8,896], index: 0, kind: input, shape index: {}]
  %s1 = inlined_call_operand.hbm [shape: bf16[896,512], index: 1, kind: input, shape index: {}]
  %s2 = inlined_call_operand.hbm [shape: f32[1,512], index: 2, kind: input, shape index: {}]
  %s3 = inlined_call_operand.hbm [shape: bf16[512,128], index: 3, kind: input, shape index: {}]
  %s4 = inlined_call_operand.vmem [shape: f32[1,128], index: 4, kind: input, shape index: {}]
  %s5 = inlined_call_operand.vmem [shape: f32[2,512], index: 5, kind: input, shape index: {}]
  %s6 = inlined_call_operand.vmem [shape: f32[1,512], index: 6, kind: input, shape index: {}]
  %s7 = inlined_call_operand.hbm [shape: bf16[512,896], index: 7, kind: input, shape index: {}]
  %s8 = inlined_call_operand.vmem [shape: f32[1,896], index: 8, kind: input, shape index: {}]
  %s9 = inlined_call_operand.vmem [shape: f32[8,2], index: 9, kind: input, shape index: {}]
  %s10 = inlined_call_operand.hbm [shape: f32[8,896], index: 10, kind: output, shape index: {0}]
  %s11 = inlined_call_operand.hbm [shape: f32[8,128], index: 11, kind: output, shape index: {1}]
  %12 = xla_tuple %s10, %s11
  %s13 = sld [smem:[#allocation0]]
  $region78: #{tpu_custom_call.1} parent=0
    _
  %s15 = ssub.s32 1, %s13
  %s16 = scalar_select 0, %s15, %s13
  $region1: #{tpu_custom_call.1} parent=0
    #allocation2 [shape = 'u8[28672]{0}', space=vmem, size = 0x7000, scoped, tag = 'input window, operand 0, single buffered']
    #allocation3 [shape = 's32[1]{0}', space=sflag, size = 0x4, scoped, tag = 'scoped memory for tpu_custom_call.1']
    #allocation4 [shape = 's32[1]{0}', space=sflag, size = 0x4, scoped, tag = 'scoped memory for tpu_custom_call.1']
    #allocation5 [shape = 'u8[917504]{0}', space=vmem, size = 0xe0000, scoped, tag = 'input window, operand 1, single buffered']
    #allocation6 [shape = 's32[1]{0}', space=sflag, size = 0x4, scoped, tag = 'scoped memory for tpu_custom_call.1']
    #allocation7 [shape = 'u8[2048]{0}', space=vmem, size = 0x800, scoped, tag = 'input window, operand 2, single buffered']
    #allocation8 [shape = 'u8[131072]{0}', space=vmem, size = 0x20000, scoped, tag = 'input window, operand 3, single buffered']
    #allocation9 [shape = 's32[1]{0}', space=sflag, size = 0x4, scoped, tag = 'scoped memory for tpu_custom_call.1']
    #allocation10 [shape = 'u8[917504]{0}', space=vmem, size = 0xe0000, scoped, tag = 'input window, operand 7, single buffered']
    #allocation11 [shape = 'u8[28672]{0}', space=vmem, size = 0x7000, scoped, tag = 'output window, operand 0, single buffered']
    #allocation12 [shape = 'u8[4096]{0}', space=vmem, size = 0x1000, scoped, tag = 'output window, operand 1, single buffered']
    #allocation13 [shape = 's32[1]{0}', space=sflag, size = 0x4, scoped, tag = 'scoped memory for tpu_custom_call.1']
    %17 = vsyncpa [#allocation3], 0
    %18 = vsyncpa [#allocation6], 0
    %19 = vsyncpa [#allocation9], 0
    %20 = vsyncpa [#allocation4], 0
    %21 = vsyncpa [#allocation13], 0
    // Predicated region
    $region2: #{tpu_custom_call.1} parent=1 // pred_check
      _
    $region3: #{tpu_custom_call.1} parent=1 // pred_check_branch
      %23 = sbr.rel (0) target = $region5
    $region4: #{tpu_custom_call.1} parent=1 // pred_region
      %s25 = ssub.s32 896, 896
      %26 = vsyncadd [#allocation3], %s25
      %s28 = sshll.u32 [#allocation2], 4
      %s29 = int_to_ptr.vmem [resolvable:$true] %s28
      %31 = dma.hbm_to_vmem [thread:$0]  %s0, 896, %s29, [#allocation3]
    $region5: #{tpu_custom_call.1} parent=1 // pred_fallthru
      _
    // Predicated region
    $region6: #{tpu_custom_call.1} parent=1 // pred_check
      _
    $region7: #{tpu_custom_call.1} parent=1 // pred_check_branch
      %33 = sbr.rel (0) target = $region9
    $region8: #{tpu_custom_call.1} parent=1 // pred_region
      %s35 = ssub.s32 28672, 28672
      %36 = vsyncadd [#allocation6], %s35
      %s37 = sshll.u32 [#allocation5], 4
      %s38 = int_to_ptr.vmem [resolvable:$true] %s37
      %43 = dma.hbm_to_vmem [thread:$0]  %s1, 28672, %s38, [#allocation6], 256, 256, 16
    $region9: #{tpu_custom_call.1} parent=1 // pred_fallthru
      _
    // Predicated region
    $region10: #{tpu_custom_call.1} parent=1 // pred_check
      _
    $region11: #{tpu_custom_call.1} parent=1 // pred_check_branch
      %45 = sbr.rel (0) target = $region13
    $region12: #{tpu_custom_call.1} parent=1 // pred_region
      %s47 = ssub.s32 64, 64
      %48 = vsyncadd [#allocation6], %s47
      %s50 = sshll.u32 [#allocation7], 4
      %s51 = int_to_ptr.vmem [resolvable:$true] %s50
      %53 = dma.hbm_to_vmem [thread:$0]  %s2, 64, %s51, [#allocation6]
    $region13: #{tpu_custom_call.1} parent=1 // pred_fallthru
      _
    // Predicated region
    $region14: #{tpu_custom_call.1} parent=1 // pred_check
      _
    $region15: #{tpu_custom_call.1} parent=1 // pred_check_branch
      %55 = sbr.rel (0) target = $region17
    $region16: #{tpu_custom_call.1} parent=1 // pred_region
      %s57 = ssub.s32 4096, 4096
      %58 = vsyncadd [#allocation9], %s57
      %s59 = sshll.u32 [#allocation8], 4
      %s60 = int_to_ptr.vmem [resolvable:$true] %s59
      %65 = dma.hbm_to_vmem [thread:$0]  %s3, 4096, %s60, [#allocation9], 64, 64, 4
    $region17: #{tpu_custom_call.1} parent=1 // pred_fallthru
      _
    // Predicated region
    $region18: #{tpu_custom_call.1} parent=1 // pred_check
      _
    $region19: #{tpu_custom_call.1} parent=1 // pred_check_branch
      %67 = sbr.rel (0) target = $region21
    $region20: #{tpu_custom_call.1} parent=1 // pred_region
      _
    $region21: #{tpu_custom_call.1} parent=1 // pred_fallthru
      _
    // Predicated region
    $region22: #{tpu_custom_call.1} parent=1 // pred_check
      _
    $region23: #{tpu_custom_call.1} parent=1 // pred_check_branch
      %69 = sbr.rel (0) target = $region25
    $region24: #{tpu_custom_call.1} parent=1 // pred_region
      _
    $region25: #{tpu_custom_call.1} parent=1 // pred_fallthru
      _
    // Predicated region
    $region26: #{tpu_custom_call.1} parent=1 // pred_check
      _
    $region27: #{tpu_custom_call.1} parent=1 // pred_check_branch
      %71 = sbr.rel (0) target = $region29
    $region28: #{tpu_custom_call.1} parent=1 // pred_region
      _
    $region29: #{tpu_custom_call.1} parent=1 // pred_fallthru
      _
    // Predicated region
    $region30: #{tpu_custom_call.1} parent=1 // pred_check
      _
    $region31: #{tpu_custom_call.1} parent=1 // pred_check_branch
      %73 = sbr.rel (0) target = $region33
    $region32: #{tpu_custom_call.1} parent=1 // pred_region
      %s75 = ssub.s32 28672, 28672
      %76 = vsyncadd [#allocation9], %s75
      %s77 = sshll.u32 [#allocation10], 4
      %s78 = int_to_ptr.vmem [resolvable:$true] %s77
      %83 = dma.hbm_to_vmem [thread:$0]  %s7, 28672, %s78, [#allocation9], 448, 448, 28
    $region33: #{tpu_custom_call.1} parent=1 // pred_fallthru
      _
    // Predicated region
    $region34: #{tpu_custom_call.1} parent=1 // pred_check
      _
    $region35: #{tpu_custom_call.1} parent=1 // pred_check_branch
      %85 = sbr.rel (0) target = $region37
    $region36: #{tpu_custom_call.1} parent=1 // pred_region
      _
    $region37: #{tpu_custom_call.1} parent=1 // pred_fallthru
      _
    // Predicated region
    $region38: #{tpu_custom_call.1} parent=1 // pred_check
      _
    $region39: #{tpu_custom_call.1} parent=1 // pred_check_branch
      %87 = sbr.rel (0) target = $region41
    $region40: #{tpu_custom_call.1} parent=1 // pred_region
      _
    $region41: #{tpu_custom_call.1} parent=1 // pred_fallthru
      _
    // Predicated region
    $region42: #{tpu_custom_call.1} parent=1 // pred_check
      _
    $region43: #{tpu_custom_call.1} parent=1 // pred_check_branch
      %89 = sbr.rel (0) target = $region45
    $region44: #{tpu_custom_call.1} parent=1 // pred_region
      %90 = dma.done [#allocation3], 896
    $region45: #{tpu_custom_call.1} parent=1 // pred_fallthru
      _
    // Predicated region
    $region46: #{tpu_custom_call.1} parent=1 // pred_check
      _
    $region47: #{tpu_custom_call.1} parent=1 // pred_check_branch
      %92 = sbr.rel (0) target = $region49
    $region48: #{tpu_custom_call.1} parent=1 // pred_region
      %93 = dma.done [#allocation6], 28672
    $region49: #{tpu_custom_call.1} parent=1 // pred_fallthru
      _
    // Predicated region
    $region50: #{tpu_custom_call.1} parent=1 // pred_check
      _
    $region51: #{tpu_custom_call.1} parent=1 // pred_check_branch
      %95 = sbr.rel (0) target = $region53
    $region52: #{tpu_custom_call.1} parent=1 // pred_region
      %96 = dma.done [#allocation6], 64
    $region53: #{tpu_custom_call.1} parent=1 // pred_fallthru
      _
    // Predicated region
    $region54: #{tpu_custom_call.1} parent=1 // pred_check
      _
    $region55: #{tpu_custom_call.1} parent=1 // pred_check_branch
      %98 = sbr.rel (0) target = $region57
    $region56: #{tpu_custom_call.1} parent=1 // pred_region
      %99 = dma.done [#allocation9], 4096
    $region57: #{tpu_custom_call.1} parent=1 // pred_fallthru
      _
    // Predicated region
    $region58: #{tpu_custom_call.1} parent=1 // pred_check
      _
    $region59: #{tpu_custom_call.1} parent=1 // pred_check_branch
      %101 = sbr.rel (0) target = $region61
    $region60: #{tpu_custom_call.1} parent=1 // pred_region
      %102 = dma.done [#allocation9], 28672
    $region61: #{tpu_custom_call.1} parent=1 // pred_fallthru
      _
    %v104 = vld [vmem:[#allocation2] sm:$0xff]
    %v105 = vld [vmem:[#allocation2 + $0x8] sm:$0xff]
    %v106 = vld [vmem:[#allocation2 + $0x10] sm:$0xff]
    %v107 = vld [vmem:[#allocation2 + $0x18] sm:$0xff]
    %v108 = vld [vmem:[#allocation2 + $0x20] sm:$0xff]
    %v109 = vld [vmem:[#allocation2 + $0x28] sm:$0xff]
    %v110 = vld [vmem:[#allocation2 + $0x30] sm:$0xff]
    %v111 = vpack.c.bf16 %v104, %v104
    %v112 = vpack.c.bf16 %v105, %v105
    %v113 = vpack.c.bf16 %v106, %v106
    %v114 = vpack.c.bf16 %v107, %v107
    %v115 = vpack.c.bf16 %v108, %v108
    %v116 = vpack.c.bf16 %v109, %v109
    %v117 = vpack.c.bf16 %v110, %v110
    %v118 = vld [vmem:[#allocation5] sm:$0xff]
    %v119 = vld [vmem:[#allocation5 + $0x8] sm:$0xff]
    %v120 = vld [vmem:[#allocation5 + $0x10] sm:$0xff]
    %v121 = vld [vmem:[#allocation5 + $0x18] sm:$0xff]
    %v122 = vld [vmem:[#allocation5 + $0x20] sm:$0xff]
    %v123 = vld [vmem:[#allocation5 + $0x28] sm:$0xff]
    %v124 = vld [vmem:[#allocation5 + $0x30] sm:$0xff]
    %v125 = vld [vmem:[#allocation5 + $0x38] sm:$0xff]
    %v126 = vld [vmem:[#allocation5 + $0x40] sm:$0xff]
    %v127 = vld [vmem:[#allocation5 + $0x48] sm:$0xff]
    %v128 = vld [vmem:[#allocation5 + $0x50] sm:$0xff]
    %v129 = vld [vmem:[#allocation5 + $0x58] sm:$0xff]
    %v130 = vld [vmem:[#allocation5 + $0x60] sm:$0xff]
    %v131 = vld [vmem:[#allocation5 + $0x68] sm:$0xff]
    %v132 = vld [vmem:[#allocation5 + $0x70] sm:$0xff]
    %v133 = vld [vmem:[#allocation5 + $0x78] sm:$0xff]
    %v134 = vld [vmem:[#allocation5 + $0x80] sm:$0xff]
    %v135 = vld [vmem:[#allocation5 + $0x88] sm:$0xff]
    %v136 = vld [vmem:[#allocation5 + $0x90] sm:$0xff]
    %v137 = vld [vmem:[#allocation5 + $0x98] sm:$0xff]
    %v138 = vld [vmem:[#allocation5 + $0xa0] sm:$0xff]
    %v139 = vld [vmem:[#allocation5 + $0xa8] sm:$0xff]
    %v140 = vld [vmem:[#allocation5 + $0xb0] sm:$0xff]
    %v141 = vld [vmem:[#allocation5 + $0xb8] sm:$0xff]
    %v142 = vld [vmem:[#allocation5 + $0xc0] sm:$0xff]
    %v143 = vld [vmem:[#allocation5 + $0xc8] sm:$0xff]
    %v144 = vld [vmem:[#allocation5 + $0xd0] sm:$0xff]
    %v145 = vld [vmem:[#allocation5 + $0xd8] sm:$0xff]
    %v146 = vld [vmem:[#allocation5 + $0xe0] sm:$0xff]
    %v147 = vld [vmem:[#allocation5 + $0xe8] sm:$0xff]
    %v148 = vld [vmem:[#allocation5 + $0xf0] sm:$0xff]
    %v149 = vld [vmem:[#allocation5 + $0xf8] sm:$0xff]
    %v150 = vld [vmem:[#allocation5 + $0x100] sm:$0xff]
    %v151 = vld [vmem:[#allocation5 + $0x108] sm:$0xff]
    %v152 = vld [vmem:[#allocation5 + $0x110] sm:$0xff]
    %v153 = vld [vmem:[#allocation5 + $0x118] sm:$0xff]
    %v154 = vld [vmem:[#allocation5 + $0x120] sm:$0xff]
    %v155 = vld [vmem:[#allocation5 + $0x128] sm:$0xff]
    %v156 = vld [vmem:[#allocation5 + $0x130] sm:$0xff]
    %v157 = vld [vmem:[#allocation5 + $0x138] sm:$0xff]
    %v158 = vld [vmem:[#allocation5 + $0x140] sm:$0xff]
    %v159 = vld [vmem:[#allocation5 + $0x148] sm:$0xff]
    %v160 = vld [vmem:[#allocation5 + $0x150] sm:$0xff]
    %v161 = vld [vmem:[#allocation5 + $0x158] sm:$0xff]
    %v162 = vld [vmem:[#allocation5 + $0x160] sm:$0xff]
    %v163 = vld [vmem:[#allocation5 + $0x168] sm:$0xff]
    %v164 = vld [vmem:[#allocation5 + $0x170] sm:$0xff]
    %v165 = vld [vmem:[#allocation5 + $0x178] sm:$0xff]
    %v166 = vld [vmem:[#allocation5 + $0x180] sm:$0xff]
    %v167 = vld [vmem:[#allocation5 + $0x188] sm:$0xff]
    %v168 = vld [vmem:[#allocation5 + $0x190] sm:$0xff]
    %v169 = vld [vmem:[#allocation5 + $0x198] sm:$0xff]
    %v170 = vld [vmem:[#allocation5 + $0x1a0] sm:$0xff]
    %v171 = vld [vmem:[#allocation5 + $0x1a8] sm:$0xff]
    %v172 = vld [vmem:[#allocation5 + $0x1b0] sm:$0xff]
    %v173 = vld [vmem:[#allocation5 + $0x1b8] sm:$0xff]
    %v174 = vld [vmem:[#allocation5 + $0x1c0] sm:$0xff]
    %v175 = vld [vmem:[#allocation5 + $0x1c8] sm:$0xff]
    %v176 = vld [vmem:[#allocation5 + $0x1d0] sm:$0xff]
    %v177 = vld [vmem:[#allocation5 + $0x1d8] sm:$0xff]
    %v178 = vld [vmem:[#allocation5 + $0x1e0] sm:$0xff]
    %v179 = vld [vmem:[#allocation5 + $0x1e8] sm:$0xff]
    %v180 = vld [vmem:[#allocation5 + $0x1f0] sm:$0xff]
    %v181 = vld [vmem:[#allocation5 + $0x1f8] sm:$0xff]
    %v182 = vld [vmem:[#allocation5 + $0x200] sm:$0xff]
    %v183 = vld [vmem:[#allocation5 + $0x208] sm:$0xff]
    %v184 = vld [vmem:[#allocation5 + $0x210] sm:$0xff]
    %v185 = vld [vmem:[#allocation5 + $0x218] sm:$0xff]
    %v186 = vld [vmem:[#allocation5 + $0x220] sm:$0xff]
    %v187 = vld [vmem:[#allocation5 + $0x228] sm:$0xff]
    %v188 = vld [vmem:[#allocation5 + $0x230] sm:$0xff]
    %v189 = vld [vmem:[#allocation5 + $0x238] sm:$0xff]
    %v190 = vld [vmem:[#allocation5 + $0x240] sm:$0xff]
    %v191 = vld [vmem:[#allocation5 + $0x248] sm:$0xff]
    %v192 = vld [vmem:[#allocation5 + $0x250] sm:$0xff]
    %v193 = vld [vmem:[#allocation5 + $0x258] sm:$0xff]
    %v194 = vld [vmem:[#allocation5 + $0x260] sm:$0xff]
    %v195 = vld [vmem:[#allocation5 + $0x268] sm:$0xff]
    %v196 = vld [vmem:[#allocation5 + $0x270] sm:$0xff]
    %v197 = vld [vmem:[#allocation5 + $0x278] sm:$0xff]
    %v198 = vld [vmem:[#allocation5 + $0x280] sm:$0xff]
    %v199 = vld [vmem:[#allocation5 + $0x288] sm:$0xff]
    %v200 = vld [vmem:[#allocation5 + $0x290] sm:$0xff]
    %v201 = vld [vmem:[#allocation5 + $0x298] sm:$0xff]
    %v202 = vld [vmem:[#allocation5 + $0x2a0] sm:$0xff]
    %v203 = vld [vmem:[#allocation5 + $0x2a8] sm:$0xff]
    %v204 = vld [vmem:[#allocation5 + $0x2b0] sm:$0xff]
    %v205 = vld [vmem:[#allocation5 + $0x2b8] sm:$0xff]
    %v206 = vld [vmem:[#allocation5 + $0x2c0] sm:$0xff]
    %v207 = vld [vmem:[#allocation5 + $0x2c8] sm:$0xff]
    %v208 = vld [vmem:[#allocation5 + $0x2d0] sm:$0xff]
    %v209 = vld [vmem:[#allocation5 + $0x2d8] sm:$0xff]
    %v210 = vld [vmem:[#allocation5 + $0x2e0] sm:$0xff]
    %v211 = vld [vmem:[#allocation5 + $0x2e8] sm:$0xff]
    %v212 = vld [vmem:[#allocation5 + $0x2f0] sm:$0xff]
    %v213 = vld [vmem:[#allocation5 + $0x2f8] sm:$0xff]
    %v214 = vld [vmem:[#allocation5 + $0x300] sm:$0xff]
    %v215 = vld [vmem:[#allocation5 + $0x308] sm:$0xff]
    %v216 = vld [vmem:[#allocation5 + $0x310] sm:$0xff]
    %v217 = vld [vmem:[#allocation5 + $0x318] sm:$0xff]
    %v218 = vld [vmem:[#allocation5 + $0x320] sm:$0xff]
    %v219 = vld [vmem:[#allocation5 + $0x328] sm:$0xff]
    %v220 = vld [vmem:[#allocation5 + $0x330] sm:$0xff]
    %v221 = vld [vmem:[#allocation5 + $0x338] sm:$0xff]
    %v222 = vld [vmem:[#allocation5 + $0x340] sm:$0xff]
    %v223 = vld [vmem:[#allocation5 + $0x348] sm:$0xff]
    %v224 = vld [vmem:[#allocation5 + $0x350] sm:$0xff]
    %v225 = vld [vmem:[#allocation5 + $0x358] sm:$0xff]
    %v226 = vld [vmem:[#allocation5 + $0x360] sm:$0xff]
    %v227 = vld [vmem:[#allocation5 + $0x368] sm:$0xff]
    %v228 = vld [vmem:[#allocation5 + $0x370] sm:$0xff]
    %v229 = vld [vmem:[#allocation5 + $0x378] sm:$0xff]
    %v230 = vld [vmem:[#allocation5 + $0x380] sm:$0xff]
    %v231 = vld [vmem:[#allocation5 + $0x388] sm:$0xff]
    %v232 = vld [vmem:[#allocation5 + $0x390] sm:$0xff]
    %v233 = vld [vmem:[#allocation5 + $0x398] sm:$0xff]
    %v234 = vld [vmem:[#allocation5 + $0x3a0] sm:$0xff]
    %v235 = vld [vmem:[#allocation5 + $0x3a8] sm:$0xff]
    %v236 = vld [vmem:[#allocation5 + $0x3b0] sm:$0xff]
    %v237 = vld [vmem:[#allocation5 + $0x3b8] sm:$0xff]
    %v238 = vld [vmem:[#allocation5 + $0x3c0] sm:$0xff]
    %v239 = vld [vmem:[#allocation5 + $0x3c8] sm:$0xff]
    %v240 = vld [vmem:[#allocation5 + $0x3d0] sm:$0xff]
    %v241 = vld [vmem:[#allocation5 + $0x3d8] sm:$0xff]
    %v242 = vld [vmem:[#allocation5 + $0x3e0] sm:$0xff]
    %v243 = vld [vmem:[#allocation5 + $0x3e8] sm:$0xff]
    %v244 = vld [vmem:[#allocation5 + $0x3f0] sm:$0xff]
    %v245 = vld [vmem:[#allocation5 + $0x3f8] sm:$0xff]
    %v246 = vld [vmem:[#allocation5 + $0x400] sm:$0xff]
    %v247 = vld [vmem:[#allocation5 + $0x408] sm:$0xff]
    %v248 = vld [vmem:[#allocation5 + $0x410] sm:$0xff]
    %v249 = vld [vmem:[#allocation5 + $0x418] sm:$0xff]
    %v250 = vld [vmem:[#allocation5 + $0x420] sm:$0xff]
    %v251 = vld [vmem:[#allocation5 + $0x428] sm:$0xff]
    %v252 = vld [vmem:[#allocation5 + $0x430] sm:$0xff]
    %v253 = vld [vmem:[#allocation5 + $0x438] sm:$0xff]
    %v254 = vld [vmem:[#allocation5 + $0x440] sm:$0xff]
    %v255 = vld [vmem:[#allocation5 + $0x448] sm:$0xff]
    %v256 = vld [vmem:[#allocation5 + $0x450] sm:$0xff]
    %v257 = vld [vmem:[#allocation5 + $0x458] sm:$0xff]
    %v258 = vld [vmem:[#allocation5 + $0x460] sm:$0xff]
    %v259 = vld [vmem:[#allocation5 + $0x468] sm:$0xff]
    %v260 = vld [vmem:[#allocation5 + $0x470] sm:$0xff]
    %v261 = vld [vmem:[#allocation5 + $0x478] sm:$0xff]
    %v262 = vld [vmem:[#allocation5 + $0x480] sm:$0xff]
    %v263 = vld [vmem:[#allocation5 + $0x488] sm:$0xff]
    %v264 = vld [vmem:[#allocation5 + $0x490] sm:$0xff]
    %v265 = vld [vmem:[#allocation5 + $0x498] sm:$0xff]
    %v266 = vld [vmem:[#allocation5 + $0x4a0] sm:$0xff]
    %v267 = vld [vmem:[#allocation5 + $0x4a8] sm:$0xff]
    %v268 = vld [vmem:[#allocation5 + $0x4b0] sm:$0xff]
    %v269 = vld [vmem:[#allocation5 + $0x4b8] sm:$0xff]
    %v270 = vld [vmem:[#allocation5 + $0x4c0] sm:$0xff]
    %v271 = vld [vmem:[#allocation5 + $0x4c8] sm:$0xff]
    %v272 = vld [vmem:[#allocation5 + $0x4d0] sm:$0xff]
    %v273 = vld [vmem:[#allocation5 + $0x4d8] sm:$0xff]
    %v274 = vld [vmem:[#allocation5 + $0x4e0] sm:$0xff]
    %v275 = vld [vmem:[#allocation5 + $0x4e8] sm:$0xff]
    %v276 = vld [vmem:[#allocation5 + $0x4f0] sm:$0xff]
    %v277 = vld [vmem:[#allocation5 + $0x4f8] sm:$0xff]
    %v278 = vld [vmem:[#allocation5 + $0x500] sm:$0xff]
    %v279 = vld [vmem:[#allocation5 + $0x508] sm:$0xff]
    %v280 = vld [vmem:[#allocation5 + $0x510] sm:$0xff]
    %v281 = vld [vmem:[#allocation5 + $0x518] sm:$0xff]
    %v282 = vld [vmem:[#allocation5 + $0x520] sm:$0xff]
    %v283 = vld [vmem:[#allocation5 + $0x528] sm:$0xff]
    %v284 = vld [vmem:[#allocation5 + $0x530] sm:$0xff]
    %v285 = vld [vmem:[#allocation5 + $0x538] sm:$0xff]
    %v286 = vld [vmem:[#allocation5 + $0x540] sm:$0xff]
    %v287 = vld [vmem:[#allocation5 + $0x548] sm:$0xff]
    %v288 = vld [vmem:[#allocation5 + $0x550] sm:$0xff]
    %v289 = vld [vmem:[#allocation5 + $0x558] sm:$0xff]
    %v290 = vld [vmem:[#allocation5 + $0x560] sm:$0xff]
    %v291 = vld [vmem:[#allocation5 + $0x568] sm:$0xff]
    %v292 = vld [vmem:[#allocation5 + $0x570] sm:$0xff]
    %v293 = vld [vmem:[#allocation5 + $0x578] sm:$0xff]
    %v294 = vld [vmem:[#allocation5 + $0x580] sm:$0xff]
    %v295 = vld [vmem:[#allocation5 + $0x588] sm:$0xff]
    %v296 = vld [vmem:[#allocation5 + $0x590] sm:$0xff]
    %v297 = vld [vmem:[#allocation5 + $0x598] sm:$0xff]
    %v298 = vld [vmem:[#allocation5 + $0x5a0] sm:$0xff]
    %v299 = vld [vmem:[#allocation5 + $0x5a8] sm:$0xff]
    %v300 = vld [vmem:[#allocation5 + $0x5b0] sm:$0xff]
    %v301 = vld [vmem:[#allocation5 + $0x5b8] sm:$0xff]
    %v302 = vld [vmem:[#allocation5 + $0x5c0] sm:$0xff]
    %v303 = vld [vmem:[#allocation5 + $0x5c8] sm:$0xff]
    %v304 = vld [vmem:[#allocation5 + $0x5d0] sm:$0xff]
    %v305 = vld [vmem:[#allocation5 + $0x5d8] sm:$0xff]
    %v306 = vld [vmem:[#allocation5 + $0x5e0] sm:$0xff]
    %v307 = vld [vmem:[#allocation5 + $0x5e8] sm:$0xff]
    %v308 = vld [vmem:[#allocation5 + $0x5f0] sm:$0xff]
    %v309 = vld [vmem:[#allocation5 + $0x5f8] sm:$0xff]
    %v310 = vld [vmem:[#allocation5 + $0x600] sm:$0xff]
    %v311 = vld [vmem:[#allocation5 + $0x608] sm:$0xff]
    %v312 = vld [vmem:[#allocation5 + $0x610] sm:$0xff]
    %v313 = vld [vmem:[#allocation5 + $0x618] sm:$0xff]
    %v314 = vld [vmem:[#allocation5 + $0x620] sm:$0xff]
    %v315 = vld [vmem:[#allocation5 + $0x628] sm:$0xff]
    %v316 = vld [vmem:[#allocation5 + $0x630] sm:$0xff]
    %v317 = vld [vmem:[#allocation5 + $0x638] sm:$0xff]
    %v318 = vld [vmem:[#allocation5 + $0x640] sm:$0xff]
    %v319 = vld [vmem:[#allocation5 + $0x648] sm:$0xff]
    %v320 = vld [vmem:[#allocation5 + $0x650] sm:$0xff]
    %v321 = vld [vmem:[#allocation5 + $0x658] sm:$0xff]
    %v322 = vld [vmem:[#allocation5 + $0x660] sm:$0xff]
    %v323 = vld [vmem:[#allocation5 + $0x668] sm:$0xff]
    %v324 = vld [vmem:[#allocation5 + $0x670] sm:$0xff]
    %v325 = vld [vmem:[#allocation5 + $0x678] sm:$0xff]
    %v326 = vld [vmem:[#allocation5 + $0x680] sm:$0xff]
    %v327 = vld [vmem:[#allocation5 + $0x688] sm:$0xff]
    %v328 = vld [vmem:[#allocation5 + $0x690] sm:$0xff]
    %v329 = vld [vmem:[#allocation5 + $0x698] sm:$0xff]
    %v330 = vld [vmem:[#allocation5 + $0x6a0] sm:$0xff]
    %v331 = vld [vmem:[#allocation5 + $0x6a8] sm:$0xff]
    %v332 = vld [vmem:[#allocation5 + $0x6b0] sm:$0xff]
    %v333 = vld [vmem:[#allocation5 + $0x6b8] sm:$0xff]
    %v334 = vld [vmem:[#allocation5 + $0x6c0] sm:$0xff]
    %v335 = vld [vmem:[#allocation5 + $0x6c8] sm:$0xff]
    %v336 = vld [vmem:[#allocation5 + $0x6d0] sm:$0xff]
    %v337 = vld [vmem:[#allocation5 + $0x6d8] sm:$0xff]
    %v338 = vld [vmem:[#allocation5 + $0x6e0] sm:$0xff]
    %v339 = vld [vmem:[#allocation5 + $0x6e8] sm:$0xff]
    %v340 = vld [vmem:[#allocation5 + $0x6f0] sm:$0xff]
    %v341 = vld [vmem:[#allocation5 + $0x6f8] sm:$0xff]
    %v342 = vld [vmem:[#allocation7] sm:$0xf]
    %v344 = vlaneseq
    %v345 = vshrl.u32 %v344, 7
    %v346 = vsub.s32 0, %v345
    %v347 = vrot.slane %v342, %v346
    %v348 = vlaneseq
    %v349 = vshrl.u32 %v348, 7
    %v350 = vsub.s32 1, %v349
    %v351 = vrot.slane %v342, %v350
    %v352 = vlaneseq
    %v353 = vshrl.u32 %v352, 7
    %v354 = vsub.s32 2, %v353
    %v355 = vrot.slane %v342, %v354
    %v356 = vlaneseq
    %v357 = vshrl.u32 %v356, 7
    %v358 = vsub.s32 3, %v357
    %v359 = vrot.slane %v342, %v358
    %v588 = vunpack.c.l.b16 %v118
    %v589 = vunpack.c.h.b16 %v118
    %v590 = vunpack.c.l.b16 %v119
    %v591 = vunpack.c.h.b16 %v119
    %v592 = vunpack.c.l.b16 %v120
    %v593 = vunpack.c.h.b16 %v120
    %v594 = vunpack.c.l.b16 %v121
    %v595 = vunpack.c.h.b16 %v121
    %v596 = vunpack.c.l.b16 %v122
    %v597 = vunpack.c.h.b16 %v122
    %v598 = vunpack.c.l.b16 %v123
    %v599 = vunpack.c.h.b16 %v123
    %v600 = vunpack.c.l.b16 %v124
    %v601 = vunpack.c.h.b16 %v124
    %v602 = vunpack.c.l.b16 %v125
    %v603 = vunpack.c.h.b16 %v125
    %v604 = vunpack.c.l.b16 %v126
    %v605 = vunpack.c.h.b16 %v126
    %v606 = vunpack.c.l.b16 %v127
    %v607 = vunpack.c.h.b16 %v127
    %v608 = vunpack.c.l.b16 %v128
    %v609 = vunpack.c.h.b16 %v128
    %v610 = vunpack.c.l.b16 %v129
    %v611 = vunpack.c.h.b16 %v129
    %v612 = vunpack.c.l.b16 %v130
    %v613 = vunpack.c.h.b16 %v130
    %v614 = vunpack.c.l.b16 %v131
    %v615 = vunpack.c.h.b16 %v131
    %v616 = vunpack.c.l.b16 %v132
    %v617 = vunpack.c.h.b16 %v132
    %v618 = vunpack.c.l.b16 %v133
    %v619 = vunpack.c.h.b16 %v133
    %v620 = vunpack.c.l.b16 %v134
    %v621 = vunpack.c.h.b16 %v134
    %v622 = vunpack.c.l.b16 %v135
    %v623 = vunpack.c.h.b16 %v135
    %v624 = vunpack.c.l.b16 %v136
    %v625 = vunpack.c.h.b16 %v136
    %v626 = vunpack.c.l.b16 %v137
    %v627 = vunpack.c.h.b16 %v137
    %v628 = vunpack.c.l.b16 %v138
    %v629 = vunpack.c.h.b16 %v138
    %v630 = vunpack.c.l.b16 %v139
    %v631 = vunpack.c.h.b16 %v139
    %v632 = vunpack.c.l.b16 %v140
    %v633 = vunpack.c.h.b16 %v140
    %v634 = vunpack.c.l.b16 %v141
    %v635 = vunpack.c.h.b16 %v141
    %v636 = vunpack.c.l.b16 %v142
    %v637 = vunpack.c.h.b16 %v142
    %v638 = vunpack.c.l.b16 %v143
    %v639 = vunpack.c.h.b16 %v143
    %v640 = vunpack.c.l.b16 %v144
    %v641 = vunpack.c.h.b16 %v144
    %v642 = vunpack.c.l.b16 %v145
    %v643 = vunpack.c.h.b16 %v145
    %v644 = vunpack.c.l.b16 %v146
    %v645 = vunpack.c.h.b16 %v146
    %v646 = vunpack.c.l.b16 %v147
    %v647 = vunpack.c.h.b16 %v147
    %v648 = vunpack.c.l.b16 %v148
    %v649 = vunpack.c.h.b16 %v148
    %v650 = vunpack.c.l.b16 %v149
    %v651 = vunpack.c.h.b16 %v149
    %v652 = vunpack.c.l.b16 %v150
    %v653 = vunpack.c.h.b16 %v150
    %v654 = vunpack.c.l.b16 %v151
    %v655 = vunpack.c.h.b16 %v151
    %v656 = vunpack.c.l.b16 %v152
    %v657 = vunpack.c.h.b16 %v152
    %v658 = vunpack.c.l.b16 %v153
    %v659 = vunpack.c.h.b16 %v153
    %v660 = vunpack.c.l.b16 %v154
    %v661 = vunpack.c.h.b16 %v154
    %v662 = vunpack.c.l.b16 %v155
    %v663 = vunpack.c.h.b16 %v155
    %v664 = vunpack.c.l.b16 %v156
    %v665 = vunpack.c.h.b16 %v156
    %v666 = vunpack.c.l.b16 %v157
    %v667 = vunpack.c.h.b16 %v157
    %v668 = vunpack.c.l.b16 %v158
    %v669 = vunpack.c.h.b16 %v158
    %v670 = vunpack.c.l.b16 %v159
    %v671 = vunpack.c.h.b16 %v159
    %v672 = vunpack.c.l.b16 %v160
    %v673 = vunpack.c.h.b16 %v160
    %v674 = vunpack.c.l.b16 %v161
    %v675 = vunpack.c.h.b16 %v161
    %v676 = vunpack.c.l.b16 %v162
    %v677 = vunpack.c.h.b16 %v162
    %v678 = vunpack.c.l.b16 %v163
    %v679 = vunpack.c.h.b16 %v163
    %v680 = vunpack.c.l.b16 %v164
    %v681 = vunpack.c.h.b16 %v164
    %v682 = vunpack.c.l.b16 %v165
    %v683 = vunpack.c.h.b16 %v165
    %v684 = vunpack.c.l.b16 %v166
    %v685 = vunpack.c.h.b16 %v166
    %v686 = vunpack.c.l.b16 %v167
    %v687 = vunpack.c.h.b16 %v167
    %v688 = vunpack.c.l.b16 %v168
    %v689 = vunpack.c.h.b16 %v168
    %v690 = vunpack.c.l.b16 %v169
    %v691 = vunpack.c.h.b16 %v169
    %v692 = vunpack.c.l.b16 %v170
    %v693 = vunpack.c.h.b16 %v170
    %v694 = vunpack.c.l.b16 %v171
    %v695 = vunpack.c.h.b16 %v171
    %v696 = vunpack.c.l.b16 %v172
    %v697 = vunpack.c.h.b16 %v172
    %v698 = vunpack.c.l.b16 %v173
    %v699 = vunpack.c.h.b16 %v173
    %v700 = vunpack.c.l.b16 %v174
    %v701 = vunpack.c.h.b16 %v174
    %v702 = vunpack.c.l.b16 %v175
    %v703 = vunpack.c.h.b16 %v175
    %v704 = vunpack.c.l.b16 %v176
    %v705 = vunpack.c.h.b16 %v176
    %v706 = vunpack.c.l.b16 %v177
    %v707 = vunpack.c.h.b16 %v177
    %v708 = vunpack.c.l.b16 %v178
    %v709 = vunpack.c.h.b16 %v178
    %v710 = vunpack.c.l.b16 %v179
    %v711 = vunpack.c.h.b16 %v179
    %v712 = vunpack.c.l.b16 %v180
    %v713 = vunpack.c.h.b16 %v180
    %v714 = vunpack.c.l.b16 %v181
    %v715 = vunpack.c.h.b16 %v181
    %v716 = vunpack.c.l.b16 %v182
    %v717 = vunpack.c.h.b16 %v182
    %v718 = vunpack.c.l.b16 %v183
    %v719 = vunpack.c.h.b16 %v183
    %v720 = vunpack.c.l.b16 %v184
    %v721 = vunpack.c.h.b16 %v184
    %v722 = vunpack.c.l.b16 %v185
    %v723 = vunpack.c.h.b16 %v185
    %v724 = vunpack.c.l.b16 %v186
    %v725 = vunpack.c.h.b16 %v186
    %v726 = vunpack.c.l.b16 %v187
    %v727 = vunpack.c.h.b16 %v187
    %v728 = vunpack.c.l.b16 %v188
    %v729 = vunpack.c.h.b16 %v188
    %v730 = vunpack.c.l.b16 %v189
    %v731 = vunpack.c.h.b16 %v189
    %v732 = vunpack.c.l.b16 %v190
    %v733 = vunpack.c.h.b16 %v190
    %v734 = vunpack.c.l.b16 %v191
    %v735 = vunpack.c.h.b16 %v191
    %v736 = vunpack.c.l.b16 %v192
    %v737 = vunpack.c.h.b16 %v192
    %v738 = vunpack.c.l.b16 %v193
    %v739 = vunpack.c.h.b16 %v193
    %v740 = vunpack.c.l.b16 %v194
    %v741 = vunpack.c.h.b16 %v194
    %v742 = vunpack.c.l.b16 %v195
    %v743 = vunpack.c.h.b16 %v195
    %v744 = vunpack.c.l.b16 %v196
    %v745 = vunpack.c.h.b16 %v196
    %v746 = vunpack.c.l.b16 %v197
    %v747 = vunpack.c.h.b16 %v197
    %v748 = vunpack.c.l.b16 %v198
    %v749 = vunpack.c.h.b16 %v198
    %v750 = vunpack.c.l.b16 %v199
    %v751 = vunpack.c.h.b16 %v199
    %v752 = vunpack.c.l.b16 %v200
    %v753 = vunpack.c.h.b16 %v200
    %v754 = vunpack.c.l.b16 %v201
    %v755 = vunpack.c.h.b16 %v201
    %v756 = vunpack.c.l.b16 %v202
    %v757 = vunpack.c.h.b16 %v202
    %v758 = vunpack.c.l.b16 %v203
    %v759 = vunpack.c.h.b16 %v203
    %v760 = vunpack.c.l.b16 %v204
    %v761 = vunpack.c.h.b16 %v204
    %v762 = vunpack.c.l.b16 %v205
    %v763 = vunpack.c.h.b16 %v205
    %v764 = vunpack.c.l.b16 %v206
    %v765 = vunpack.c.h.b16 %v206
    %v766 = vunpack.c.l.b16 %v207
    %v767 = vunpack.c.h.b16 %v207
    %v768 = vunpack.c.l.b16 %v208
    %v769 = vunpack.c.h.b16 %v208
    %v770 = vunpack.c.l.b16 %v209
    %v771 = vunpack.c.h.b16 %v209
    %v772 = vunpack.c.l.b16 %v210
    %v773 = vunpack.c.h.b16 %v210
    %v774 = vunpack.c.l.b16 %v211
    %v775 = vunpack.c.h.b16 %v211
    %v776 = vunpack.c.l.b16 %v212
    %v777 = vunpack.c.h.b16 %v212
    %v778 = vunpack.c.l.b16 %v213
    %v779 = vunpack.c.h.b16 %v213
    %v780 = vunpack.c.l.b16 %v214
    %v781 = vunpack.c.h.b16 %v214
    %v782 = vunpack.c.l.b16 %v215
    %v783 = vunpack.c.h.b16 %v215
    %v784 = vunpack.c.l.b16 %v216
    %v785 = vunpack.c.h.b16 %v216
    %v786 = vunpack.c.l.b16 %v217
    %v787 = vunpack.c.h.b16 %v217
    %v788 = vunpack.c.l.b16 %v218
    %v789 = vunpack.c.h.b16 %v218
    %v790 = vunpack.c.l.b16 %v219
    %v791 = vunpack.c.h.b16 %v219
    %v792 = vunpack.c.l.b16 %v220
    %v793 = vunpack.c.h.b16 %v220
    %v794 = vunpack.c.l.b16 %v221
    %v795 = vunpack.c.h.b16 %v221
    %v796 = vunpack.c.l.b16 %v222
    %v797 = vunpack.c.h.b16 %v222
    %v798 = vunpack.c.l.b16 %v223
    %v799 = vunpack.c.h.b16 %v223
    %v800 = vunpack.c.l.b16 %v224
    %v801 = vunpack.c.h.b16 %v224
    %v802 = vunpack.c.l.b16 %v225
    %v803 = vunpack.c.h.b16 %v225
    %v804 = vunpack.c.l.b16 %v226
    %v805 = vunpack.c.h.b16 %v226
    %v806 = vunpack.c.l.b16 %v227
    %v807 = vunpack.c.h.b16 %v227
    %v808 = vunpack.c.l.b16 %v228
    %v809 = vunpack.c.h.b16 %v228
    %v810 = vunpack.c.l.b16 %v229
    %v811 = vunpack.c.h.b16 %v229
    %v812 = vunpack.c.l.b16 %v230
    %v813 = vunpack.c.h.b16 %v230
    %v814 = vunpack.c.l.b16 %v231
    %v815 = vunpack.c.h.b16 %v231
    %v816 = vunpack.c.l.b16 %v232
    %v817 = vunpack.c.h.b16 %v232
    %v818 = vunpack.c.l.b16 %v233
    %v819 = vunpack.c.h.b16 %v233
    %v820 = vunpack.c.l.b16 %v234
    %v821 = vunpack.c.h.b16 %v234
    %v822 = vunpack.c.l.b16 %v235
    %v823 = vunpack.c.h.b16 %v235
    %v824 = vunpack.c.l.b16 %v236
    %v825 = vunpack.c.h.b16 %v236
    %v826 = vunpack.c.l.b16 %v237
    %v827 = vunpack.c.h.b16 %v237
    %v828 = vunpack.c.l.b16 %v238
    %v829 = vunpack.c.h.b16 %v238
    %v830 = vunpack.c.l.b16 %v239
    %v831 = vunpack.c.h.b16 %v239
    %v832 = vunpack.c.l.b16 %v240
    %v833 = vunpack.c.h.b16 %v240
    %v834 = vunpack.c.l.b16 %v241
    %v835 = vunpack.c.h.b16 %v241
    %v836 = vunpack.c.l.b16 %v242
    %v837 = vunpack.c.h.b16 %v242
    %v838 = vunpack.c.l.b16 %v243
    %v839 = vunpack.c.h.b16 %v243
    %v840 = vunpack.c.l.b16 %v244
    %v841 = vunpack.c.h.b16 %v244
    %v842 = vunpack.c.l.b16 %v245
    %v843 = vunpack.c.h.b16 %v245
    %v844 = vunpack.c.l.b16 %v246
    %v845 = vunpack.c.h.b16 %v246
    %v846 = vunpack.c.l.b16 %v247
    %v847 = vunpack.c.h.b16 %v247
    %v848 = vunpack.c.l.b16 %v248
    %v849 = vunpack.c.h.b16 %v248
    %v850 = vunpack.c.l.b16 %v249
    %v851 = vunpack.c.h.b16 %v249
    %v852 = vunpack.c.l.b16 %v250
    %v853 = vunpack.c.h.b16 %v250
    %v854 = vunpack.c.l.b16 %v251
    %v855 = vunpack.c.h.b16 %v251
    %v856 = vunpack.c.l.b16 %v252
    %v857 = vunpack.c.h.b16 %v252
    %v858 = vunpack.c.l.b16 %v253
    %v859 = vunpack.c.h.b16 %v253
    %v860 = vunpack.c.l.b16 %v254
    %v861 = vunpack.c.h.b16 %v254
    %v862 = vunpack.c.l.b16 %v255
    %v863 = vunpack.c.h.b16 %v255
    %v864 = vunpack.c.l.b16 %v256
    %v865 = vunpack.c.h.b16 %v256
    %v866 = vunpack.c.l.b16 %v257
    %v867 = vunpack.c.h.b16 %v257
    %v868 = vunpack.c.l.b16 %v258
    %v869 = vunpack.c.h.b16 %v258
    %v870 = vunpack.c.l.b16 %v259
    %v871 = vunpack.c.h.b16 %v259
    %v872 = vunpack.c.l.b16 %v260
    %v873 = vunpack.c.h.b16 %v260
    %v874 = vunpack.c.l.b16 %v261
    %v875 = vunpack.c.h.b16 %v261
    %v876 = vunpack.c.l.b16 %v262
    %v877 = vunpack.c.h.b16 %v262
    %v878 = vunpack.c.l.b16 %v263
    %v879 = vunpack.c.h.b16 %v263
    %v880 = vunpack.c.l.b16 %v264
    %v881 = vunpack.c.h.b16 %v264
    %v882 = vunpack.c.l.b16 %v265
    %v883 = vunpack.c.h.b16 %v265
    %v884 = vunpack.c.l.b16 %v266
    %v885 = vunpack.c.h.b16 %v266
    %v886 = vunpack.c.l.b16 %v267
    %v887 = vunpack.c.h.b16 %v267
    %v888 = vunpack.c.l.b16 %v268
    %v889 = vunpack.c.h.b16 %v268
    %v890 = vunpack.c.l.b16 %v269
    %v891 = vunpack.c.h.b16 %v269
    %v892 = vunpack.c.l.b16 %v270
    %v893 = vunpack.c.h.b16 %v270
    %v894 = vunpack.c.l.b16 %v271
    %v895 = vunpack.c.h.b16 %v271
    %v896 = vunpack.c.l.b16 %v272
    %v897 = vunpack.c.h.b16 %v272
    %v898 = vunpack.c.l.b16 %v273
    %v899 = vunpack.c.h.b16 %v273
    %v900 = vunpack.c.l.b16 %v274
    %v901 = vunpack.c.h.b16 %v274
    %v902 = vunpack.c.l.b16 %v275
    %v903 = vunpack.c.h.b16 %v275
    %v904 = vunpack.c.l.b16 %v276
    %v905 = vunpack.c.h.b16 %v276
    %v906 = vunpack.c.l.b16 %v277
    %v907 = vunpack.c.h.b16 %v277
    %v908 = vunpack.c.l.b16 %v278
    %v909 = vunpack.c.h.b16 %v278
    %v910 = vunpack.c.l.b16 %v279
    %v911 = vunpack.c.h.b16 %v279
    %v912 = vunpack.c.l.b16 %v280
    %v913 = vunpack.c.h.b16 %v280
    %v914 = vunpack.c.l.b16 %v281
    %v915 = vunpack.c.h.b16 %v281
    %v916 = vunpack.c.l.b16 %v282
    %v917 = vunpack.c.h.b16 %v282
    %v918 = vunpack.c.l.b16 %v283
    %v919 = vunpack.c.h.b16 %v283
    %v920 = vunpack.c.l.b16 %v284
    %v921 = vunpack.c.h.b16 %v284
    %v922 = vunpack.c.l.b16 %v285
    %v923 = vunpack.c.h.b16 %v285
    %v924 = vunpack.c.l.b16 %v286
    %v925 = vunpack.c.h.b16 %v286
    %v926 = vunpack.c.l.b16 %v287
    %v927 = vunpack.c.h.b16 %v287
    %v928 = vunpack.c.l.b16 %v288
    %v929 = vunpack.c.h.b16 %v288
    %v930 = vunpack.c.l.b16 %v289
    %v931 = vunpack.c.h.b16 %v289
    %v932 = vunpack.c.l.b16 %v290
    %v933 = vunpack.c.h.b16 %v290
    %v934 = vunpack.c.l.b16 %v291
    %v935 = vunpack.c.h.b16 %v291
    %v936 = vunpack.c.l.b16 %v292
    %v937 = vunpack.c.h.b16 %v292
    %v938 = vunpack.c.l.b16 %v293
    %v939 = vunpack.c.h.b16 %v293
    %v940 = vunpack.c.l.b16 %v294
    %v941 = vunpack.c.h.b16 %v294
    %v942 = vunpack.c.l.b16 %v295
    %v943 = vunpack.c.h.b16 %v295
    %v944 = vunpack.c.l.b16 %v296
    %v945 = vunpack.c.h.b16 %v296
    %v946 = vunpack.c.l.b16 %v297
    %v947 = vunpack.c.h.b16 %v297
    %v948 = vunpack.c.l.b16 %v298
    %v949 = vunpack.c.h.b16 %v298
    %v950 = vunpack.c.l.b16 %v299
    %v951 = vunpack.c.h.b16 %v299
    %v952 = vunpack.c.l.b16 %v300
    %v953 = vunpack.c.h.b16 %v300
    %v954 = vunpack.c.l.b16 %v301
    %v955 = vunpack.c.h.b16 %v301
    %v956 = vunpack.c.l.b16 %v302
    %v957 = vunpack.c.h.b16 %v302
    %v958 = vunpack.c.l.b16 %v303
    %v959 = vunpack.c.h.b16 %v303
    %v960 = vunpack.c.l.b16 %v304
    %v961 = vunpack.c.h.b16 %v304
    %v962 = vunpack.c.l.b16 %v305
    %v963 = vunpack.c.h.b16 %v305
    %v964 = vunpack.c.l.b16 %v306
    %v965 = vunpack.c.h.b16 %v306
    %v966 = vunpack.c.l.b16 %v307
    %v967 = vunpack.c.h.b16 %v307
    %v968 = vunpack.c.l.b16 %v308
    %v969 = vunpack.c.h.b16 %v308
    %v970 = vunpack.c.l.b16 %v309
    %v971 = vunpack.c.h.b16 %v309
    %v972 = vunpack.c.l.b16 %v310
    %v973 = vunpack.c.h.b16 %v310
    %v974 = vunpack.c.l.b16 %v311
    %v975 = vunpack.c.h.b16 %v311
    %v976 = vunpack.c.l.b16 %v312
    %v977 = vunpack.c.h.b16 %v312
    %v978 = vunpack.c.l.b16 %v313
    %v979 = vunpack.c.h.b16 %v313
    %v980 = vunpack.c.l.b16 %v314
    %v981 = vunpack.c.h.b16 %v314
    %v982 = vunpack.c.l.b16 %v315
    %v983 = vunpack.c.h.b16 %v315
    %v984 = vunpack.c.l.b16 %v316
    %v985 = vunpack.c.h.b16 %v316
    %v986 = vunpack.c.l.b16 %v317
    %v987 = vunpack.c.h.b16 %v317
    %v988 = vunpack.c.l.b16 %v318
    %v989 = vunpack.c.h.b16 %v318
    %v990 = vunpack.c.l.b16 %v319
    %v991 = vunpack.c.h.b16 %v319
    %v992 = vunpack.c.l.b16 %v320
    %v993 = vunpack.c.h.b16 %v320
    %v994 = vunpack.c.l.b16 %v321
    %v995 = vunpack.c.h.b16 %v321
    %v996 = vunpack.c.l.b16 %v322
    %v997 = vunpack.c.h.b16 %v322
    %v998 = vunpack.c.l.b16 %v323
    %v999 = vunpack.c.h.b16 %v323
    %v1000 = vunpack.c.l.b16 %v324
    %v1001 = vunpack.c.h.b16 %v324
    %v1002 = vunpack.c.l.b16 %v325
    %v1003 = vunpack.c.h.b16 %v325
    %v1004 = vunpack.c.l.b16 %v326
    %v1005 = vunpack.c.h.b16 %v326
    %v1006 = vunpack.c.l.b16 %v327
    %v1007 = vunpack.c.h.b16 %v327
    %v1008 = vunpack.c.l.b16 %v328
    %v1009 = vunpack.c.h.b16 %v328
    %v1010 = vunpack.c.l.b16 %v329
    %v1011 = vunpack.c.h.b16 %v329
    %v1012 = vunpack.c.l.b16 %v330
    %v1013 = vunpack.c.h.b16 %v330
    %v1014 = vunpack.c.l.b16 %v331
    %v1015 = vunpack.c.h.b16 %v331
    %v1016 = vunpack.c.l.b16 %v332
    %v1017 = vunpack.c.h.b16 %v332
    %v1018 = vunpack.c.l.b16 %v333
    %v1019 = vunpack.c.h.b16 %v333
    %v1020 = vunpack.c.l.b16 %v334
    %v1021 = vunpack.c.h.b16 %v334
    %v1022 = vunpack.c.l.b16 %v335
    %v1023 = vunpack.c.h.b16 %v335
    %v1024 = vunpack.c.l.b16 %v336
    %v1025 = vunpack.c.h.b16 %v336
    %v1026 = vunpack.c.l.b16 %v337
    %v1027 = vunpack.c.h.b16 %v337
    %v1028 = vunpack.c.l.b16 %v338
    %v1029 = vunpack.c.h.b16 %v338
    %v1030 = vunpack.c.l.b16 %v339
    %v1031 = vunpack.c.h.b16 %v339
    %v1032 = vunpack.c.l.b16 %v340
    %v1033 = vunpack.c.h.b16 %v340
    %v1034 = vunpack.c.l.b16 %v341
    %v1035 = vunpack.c.h.b16 %v341
    %v1036 = vpack.c.b16 %v592, %v588
    %v1037 = vpack.c.b16 %v593, %v589
    %v1038 = vpack.c.b16 %v594, %v590
    %v1039 = vpack.c.b16 %v595, %v591
    %v1040 = vpack.c.b16 %v600, %v596
    %v1041 = vpack.c.b16 %v601, %v597
    %v1042 = vpack.c.b16 %v602, %v598
    %v1043 = vpack.c.b16 %v603, %v599
    %v1044 = vpack.c.b16 %v608, %v604
    %v1045 = vpack.c.b16 %v609, %v605
    %v1046 = vpack.c.b16 %v610, %v606
    %v1047 = vpack.c.b16 %v611, %v607
    %v1048 = vpack.c.b16 %v616, %v612
    %v1049 = vpack.c.b16 %v617, %v613
    %v1050 = vpack.c.b16 %v618, %v614
    %v1051 = vpack.c.b16 %v619, %v615
    %v1052 = vpack.c.b16 %v624, %v620
    %v1053 = vpack.c.b16 %v625, %v621
    %v1054 = vpack.c.b16 %v626, %v622
    %v1055 = vpack.c.b16 %v627, %v623
    %v1056 = vpack.c.b16 %v632, %v628
    %v1057 = vpack.c.b16 %v633, %v629
    %v1058 = vpack.c.b16 %v634, %v630
    %v1059 = vpack.c.b16 %v635, %v631
    %v1060 = vpack.c.b16 %v640, %v636
    %v1061 = vpack.c.b16 %v641, %v637
    %v1062 = vpack.c.b16 %v642, %v638
    %v1063 = vpack.c.b16 %v643, %v639
    %v1064 = vpack.c.b16 %v648, %v644
    %v1065 = vpack.c.b16 %v649, %v645
    %v1066 = vpack.c.b16 %v650, %v646
    %v1067 = vpack.c.b16 %v651, %v647
    %v1068 = vpack.c.b16 %v656, %v652
    %v1069 = vpack.c.b16 %v657, %v653
    %v1070 = vpack.c.b16 %v658, %v654
    %v1071 = vpack.c.b16 %v659, %v655
    %v1072 = vpack.c.b16 %v664, %v660
    %v1073 = vpack.c.b16 %v665, %v661
    %v1074 = vpack.c.b16 %v666, %v662
    %v1075 = vpack.c.b16 %v667, %v663
    %v1076 = vpack.c.b16 %v672, %v668
    %v1077 = vpack.c.b16 %v673, %v669
    %v1078 = vpack.c.b16 %v674, %v670
    %v1079 = vpack.c.b16 %v675, %v671
    %v1080 = vpack.c.b16 %v680, %v676
    %v1081 = vpack.c.b16 %v681, %v677
    %v1082 = vpack.c.b16 %v682, %v678
    %v1083 = vpack.c.b16 %v683, %v679
    %v1084 = vpack.c.b16 %v688, %v684
    %v1085 = vpack.c.b16 %v689, %v685
    %v1086 = vpack.c.b16 %v690, %v686
    %v1087 = vpack.c.b16 %v691, %v687
    %v1088 = vpack.c.b16 %v696, %v692
    %v1089 = vpack.c.b16 %v697, %v693
    %v1090 = vpack.c.b16 %v698, %v694
    %v1091 = vpack.c.b16 %v699, %v695
    %v1092 = vpack.c.b16 %v704, %v700
    %v1093 = vpack.c.b16 %v705, %v701
    %v1094 = vpack.c.b16 %v706, %v702
    %v1095 = vpack.c.b16 %v707, %v703
    %v1096 = vpack.c.b16 %v712, %v708
    %v1097 = vpack.c.b16 %v713, %v709
    %v1098 = vpack.c.b16 %v714, %v710
    %v1099 = vpack.c.b16 %v715, %v711
    %v1100 = vpack.c.b16 %v720, %v716
    %v1101 = vpack.c.b16 %v721, %v717
    %v1102 = vpack.c.b16 %v722, %v718
    %v1103 = vpack.c.b16 %v723, %v719
    %v1104 = vpack.c.b16 %v728, %v724
    %v1105 = vpack.c.b16 %v729, %v725
    %v1106 = vpack.c.b16 %v730, %v726
    %v1107 = vpack.c.b16 %v731, %v727
    %v1108 = vpack.c.b16 %v736, %v732
    %v1109 = vpack.c.b16 %v737, %v733
    %v1110 = vpack.c.b16 %v738, %v734
    %v1111 = vpack.c.b16 %v739, %v735
    %v1112 = vpack.c.b16 %v744, %v740
    %v1113 = vpack.c.b16 %v745, %v741
    %v1114 = vpack.c.b16 %v746, %v742
    %v1115 = vpack.c.b16 %v747, %v743
    %v1116 = vpack.c.b16 %v752, %v748
    %v1117 = vpack.c.b16 %v753, %v749
    %v1118 = vpack.c.b16 %v754, %v750
    %v1119 = vpack.c.b16 %v755, %v751
    %v1120 = vpack.c.b16 %v760, %v756
    %v1121 = vpack.c.b16 %v761, %v757
    %v1122 = vpack.c.b16 %v762, %v758
    %v1123 = vpack.c.b16 %v763, %v759
    %v1124 = vpack.c.b16 %v768, %v764
    %v1125 = vpack.c.b16 %v769, %v765
    %v1126 = vpack.c.b16 %v770, %v766
    %v1127 = vpack.c.b16 %v771, %v767
    %v1128 = vpack.c.b16 %v776, %v772
    %v1129 = vpack.c.b16 %v777, %v773
    %v1130 = vpack.c.b16 %v778, %v774
    %v1131 = vpack.c.b16 %v779, %v775
    %v1132 = vpack.c.b16 %v784, %v780
    %v1133 = vpack.c.b16 %v785, %v781
    %v1134 = vpack.c.b16 %v786, %v782
    %v1135 = vpack.c.b16 %v787, %v783
    %v1136 = vpack.c.b16 %v792, %v788
    %v1137 = vpack.c.b16 %v793, %v789
    %v1138 = vpack.c.b16 %v794, %v790
    %v1139 = vpack.c.b16 %v795, %v791
    %v1140 = vpack.c.b16 %v800, %v796
    %v1141 = vpack.c.b16 %v801, %v797
    %v1142 = vpack.c.b16 %v802, %v798
    %v1143 = vpack.c.b16 %v803, %v799
    %v1144 = vpack.c.b16 %v808, %v804
    %v1145 = vpack.c.b16 %v809, %v805
    %v1146 = vpack.c.b16 %v810, %v806
    %v1147 = vpack.c.b16 %v811, %v807
    %v1148 = vpack.c.b16 %v816, %v812
    %v1149 = vpack.c.b16 %v817, %v813
    %v1150 = vpack.c.b16 %v818, %v814
    %v1151 = vpack.c.b16 %v819, %v815
    %v1152 = vpack.c.b16 %v824, %v820
    %v1153 = vpack.c.b16 %v825, %v821
    %v1154 = vpack.c.b16 %v826, %v822
    %v1155 = vpack.c.b16 %v827, %v823
    %v1156 = vpack.c.b16 %v832, %v828
    %v1157 = vpack.c.b16 %v833, %v829
    %v1158 = vpack.c.b16 %v834, %v830
    %v1159 = vpack.c.b16 %v835, %v831
    %v1160 = vpack.c.b16 %v840, %v836
    %v1161 = vpack.c.b16 %v841, %v837
    %v1162 = vpack.c.b16 %v842, %v838
    %v1163 = vpack.c.b16 %v843, %v839
    %v1164 = vpack.c.b16 %v848, %v844
    %v1165 = vpack.c.b16 %v849, %v845
    %v1166 = vpack.c.b16 %v850, %v846
    %v1167 = vpack.c.b16 %v851, %v847
    %v1168 = vpack.c.b16 %v856, %v852
    %v1169 = vpack.c.b16 %v857, %v853
    %v1170 = vpack.c.b16 %v858, %v854
    %v1171 = vpack.c.b16 %v859, %v855
    %v1172 = vpack.c.b16 %v864, %v860
    %v1173 = vpack.c.b16 %v865, %v861
    %v1174 = vpack.c.b16 %v866, %v862
    %v1175 = vpack.c.b16 %v867, %v863
    %v1176 = vpack.c.b16 %v872, %v868
    %v1177 = vpack.c.b16 %v873, %v869
    %v1178 = vpack.c.b16 %v874, %v870
    %v1179 = vpack.c.b16 %v875, %v871
    %v1180 = vpack.c.b16 %v880, %v876
    %v1181 = vpack.c.b16 %v881, %v877
    %v1182 = vpack.c.b16 %v882, %v878
    %v1183 = vpack.c.b16 %v883, %v879
    %v1184 = vpack.c.b16 %v888, %v884
    %v1185 = vpack.c.b16 %v889, %v885
    %v1186 = vpack.c.b16 %v890, %v886
    %v1187 = vpack.c.b16 %v891, %v887
    %v1188 = vpack.c.b16 %v896, %v892
    %v1189 = vpack.c.b16 %v897, %v893
    %v1190 = vpack.c.b16 %v898, %v894
    %v1191 = vpack.c.b16 %v899, %v895
    %v1192 = vpack.c.b16 %v904, %v900
    %v1193 = vpack.c.b16 %v905, %v901
    %v1194 = vpack.c.b16 %v906, %v902
    %v1195 = vpack.c.b16 %v907, %v903
    %v1196 = vpack.c.b16 %v912, %v908
    %v1197 = vpack.c.b16 %v913, %v909
    %v1198 = vpack.c.b16 %v914, %v910
    %v1199 = vpack.c.b16 %v915, %v911
    %v1200 = vpack.c.b16 %v920, %v916
    %v1201 = vpack.c.b16 %v921, %v917
    %v1202 = vpack.c.b16 %v922, %v918
    %v1203 = vpack.c.b16 %v923, %v919
    %v1204 = vpack.c.b16 %v928, %v924
    %v1205 = vpack.c.b16 %v929, %v925
    %v1206 = vpack.c.b16 %v930, %v926
    %v1207 = vpack.c.b16 %v931, %v927
    %v1208 = vpack.c.b16 %v936, %v932
    %v1209 = vpack.c.b16 %v937, %v933
    %v1210 = vpack.c.b16 %v938, %v934
    %v1211 = vpack.c.b16 %v939, %v935
    %v1212 = vpack.c.b16 %v944, %v940
    %v1213 = vpack.c.b16 %v945, %v941
    %v1214 = vpack.c.b16 %v946, %v942
    %v1215 = vpack.c.b16 %v947, %v943
    %v1216 = vpack.c.b16 %v952, %v948
    %v1217 = vpack.c.b16 %v953, %v949
    %v1218 = vpack.c.b16 %v954, %v950
    %v1219 = vpack.c.b16 %v955, %v951
    %v1220 = vpack.c.b16 %v960, %v956
    %v1221 = vpack.c.b16 %v961, %v957
    %v1222 = vpack.c.b16 %v962, %v958
    %v1223 = vpack.c.b16 %v963, %v959
    %v1224 = vpack.c.b16 %v968, %v964
    %v1225 = vpack.c.b16 %v969, %v965
    %v1226 = vpack.c.b16 %v970, %v966
    %v1227 = vpack.c.b16 %v971, %v967
    %v1228 = vpack.c.b16 %v976, %v972
    %v1229 = vpack.c.b16 %v977, %v973
    %v1230 = vpack.c.b16 %v978, %v974
    %v1231 = vpack.c.b16 %v979, %v975
    %v1232 = vpack.c.b16 %v984, %v980
    %v1233 = vpack.c.b16 %v985, %v981
    %v1234 = vpack.c.b16 %v986, %v982
    %v1235 = vpack.c.b16 %v987, %v983
    %v1236 = vpack.c.b16 %v992, %v988
    %v1237 = vpack.c.b16 %v993, %v989
    %v1238 = vpack.c.b16 %v994, %v990
    %v1239 = vpack.c.b16 %v995, %v991
    %v1240 = vpack.c.b16 %v1000, %v996
    %v1241 = vpack.c.b16 %v1001, %v997
    %v1242 = vpack.c.b16 %v1002, %v998
    %v1243 = vpack.c.b16 %v1003, %v999
    %v1244 = vpack.c.b16 %v1008, %v1004
    %v1245 = vpack.c.b16 %v1009, %v1005
    %v1246 = vpack.c.b16 %v1010, %v1006
    %v1247 = vpack.c.b16 %v1011, %v1007
    %v1248 = vpack.c.b16 %v1016, %v1012
    %v1249 = vpack.c.b16 %v1017, %v1013
    %v1250 = vpack.c.b16 %v1018, %v1014
    %v1251 = vpack.c.b16 %v1019, %v1015
    %v1252 = vpack.c.b16 %v1024, %v1020
    %v1253 = vpack.c.b16 %v1025, %v1021
    %v1254 = vpack.c.b16 %v1026, %v1022
    %v1255 = vpack.c.b16 %v1027, %v1023
    %v1256 = vpack.c.b16 %v1032, %v1028
    %v1257 = vpack.c.b16 %v1033, %v1029
    %v1258 = vpack.c.b16 %v1034, %v1030
    %v1259 = vpack.c.b16 %v1035, %v1031
    %1484 = vmatprep.subr.bf16.mxu0 %v1037
    %1485 = vmatpush1.bf16.msra.mxu0 %v1036
    %1486 = vmatprep.subr.bf16.mxu0 %v1041
    %1487 = vmatpush1.bf16.msra.mxu0 %v1040
    %1488 = vmatprep.subr.bf16.mxu0 %v1045
    %1489 = vmatpush1.bf16.msra.mxu0 %v1044
    %1490 = vmatprep.subr.bf16.mxu0 %v1049
    %1491 = vmatpush1.bf16.msra.mxu0 %v1048
    %1492 = vmatprep.subr.bf16.mxu0 %v1053
    %1493 = vmatpush1.bf16.msra.mxu0 %v1052
    %1494 = vmatprep.subr.bf16.mxu0 %v1057
    %1495 = vmatpush1.bf16.msra.mxu0 %v1056
    %1496 = vmatprep.subr.bf16.mxu0 %v1061
    %1497 = vmatpush1.bf16.msra.mxu0 %v1060
    %1498 = vmatprep.subr.bf16.mxu0 %v1065
    %1499 = vmatpush1.bf16.msra.mxu0 %v1064
    %1500 = vmatprep.subr.bf16.mxu0 %v1069
    %1501 = vmatpush1.bf16.msra.mxu0 %v1068
    %1502 = vmatprep.subr.bf16.mxu0 %v1073
    %1503 = vmatpush1.bf16.msra.mxu0 %v1072
    %1504 = vmatprep.subr.bf16.mxu0 %v1077
    %1505 = vmatpush1.bf16.msra.mxu0 %v1076
    %1506 = vmatprep.subr.bf16.mxu0 %v1081
    %1507 = vmatpush1.bf16.msra.mxu0 %v1080
    %1508 = vmatprep.subr.bf16.mxu0 %v1085
    %1509 = vmatpush1.bf16.msra.mxu0 %v1084
    %1510 = vmatprep.subr.bf16.mxu0 %v1089
    %1511 = vmatpush1.bf16.msra.mxu0 %v1088
    %1512 = vmatprep.subr.bf16.mxu0 %v1093
    %1513 = vmatpush1.bf16.msra.mxu0 %v1092
    %1514 = vmatprep.subr.bf16.mxu0 %v1097
    %1515 = vmatpush1.bf16.msra.mxu0 %v1096
    %1516 = vmatprep.mubr.bf16.mxu0 %v112
    %1517 = vmatmul.mubr.bf16.gmra.mrb[0].mxu0 %v111
    %v1518 = vpop.f32.mrb[0].mxu0
    %v1519 = vadd.f32 %v347, %v1518
    %v1520 = vpop.f32.mrb[0].mxu0
    %v1521 = vadd.f32 %v351, %v1520
    %v1522 = vpop.f32.mrb[0].mxu0
    %v1523 = vpop.f32.mrb[0].mxu0
    %1524 = vdwg.mxu0
    %1525 = vmatprep.subr.bf16.mxu0 %v1101
    %1526 = vmatpush1.bf16.msra.mxu0 %v1100
    %1527 = vmatprep.subr.bf16.mxu0 %v1105
    %1528 = vmatpush1.bf16.msra.mxu0 %v1104
    %1529 = vmatprep.subr.bf16.mxu0 %v1109
    %1530 = vmatpush1.bf16.msra.mxu0 %v1108
    %1531 = vmatprep.subr.bf16.mxu0 %v1113
    %1532 = vmatpush1.bf16.msra.mxu0 %v1112
    %1533 = vmatprep.subr.bf16.mxu0 %v1117
    %1534 = vmatpush1.bf16.msra.mxu0 %v1116
    %1535 = vmatprep.subr.bf16.mxu0 %v1121
    %1536 = vmatpush1.bf16.msra.mxu0 %v1120
    %1537 = vmatprep.subr.bf16.mxu0 %v1125
    %1538 = vmatpush1.bf16.msra.mxu0 %v1124
    %1539 = vmatprep.subr.bf16.mxu0 %v1129
    %1540 = vmatpush1.bf16.msra.mxu0 %v1128
    %1541 = vmatprep.subr.bf16.mxu0 %v1133
    %1542 = vmatpush1.bf16.msra.mxu0 %v1132
    %1543 = vmatprep.subr.bf16.mxu0 %v1137
    %1544 = vmatpush1.bf16.msra.mxu0 %v1136
    %1545 = vmatprep.subr.bf16.mxu0 %v1141
    %1546 = vmatpush1.bf16.msra.mxu0 %v1140
    %1547 = vmatprep.subr.bf16.mxu0 %v1145
    %1548 = vmatpush1.bf16.msra.mxu0 %v1144
    %1549 = vmatprep.subr.bf16.mxu0 %v1149
    %1550 = vmatpush1.bf16.msra.mxu0 %v1148
    %1551 = vmatprep.subr.bf16.mxu0 %v1153
    %1552 = vmatpush1.bf16.msra.mxu0 %v1152
    %1553 = vmatprep.subr.bf16.mxu0 %v1157
    %1554 = vmatpush1.bf16.msra.mxu0 %v1156
    %1555 = vmatprep.subr.bf16.mxu0 %v1161
    %1556 = vmatpush1.bf16.msra.mxu0 %v1160
    %1557 = vmatprep.mubr.bf16.mxu0 %v114
    %1558 = vmatmul.mubr.bf16.gmra.mrb[0].mxu0 %v113
    %v1559 = vpop.f32.mrb[0].mxu0
    %v1560 = vadd.f32 %v1519, %v1559
    %v1561 = vpop.f32.mrb[0].mxu0
    %v1562 = vadd.f32 %v1521, %v1561
    %v1563 = vpop.f32.mrb[0].mxu0
    %v1564 = vpop.f32.mrb[0].mxu0
    %1565 = vdwg.mxu0
    %1566 = vmatprep.subr.bf16.mxu0 %v1165
    %1567 = vmatpush1.bf16.msra.mxu0 %v1164
    %1568 = vmatprep.subr.bf16.mxu0 %v1169
    %1569 = vmatpush1.bf16.msra.mxu0 %v1168
    %1570 = vmatprep.subr.bf16.mxu0 %v1173
    %1571 = vmatpush1.bf16.msra.mxu0 %v1172
    %1572 = vmatprep.subr.bf16.mxu0 %v1177
    %1573 = vmatpush1.bf16.msra.mxu0 %v1176
    %1574 = vmatprep.subr.bf16.mxu0 %v1181
    %1575 = vmatpush1.bf16.msra.mxu0 %v1180
    %1576 = vmatprep.subr.bf16.mxu0 %v1185
    %1577 = vmatpush1.bf16.msra.mxu0 %v1184
    %1578 = vmatprep.subr.bf16.mxu0 %v1189
    %1579 = vmatpush1.bf16.msra.mxu0 %v1188
    %1580 = vmatprep.subr.bf16.mxu0 %v1193
    %1581 = vmatpush1.bf16.msra.mxu0 %v1192
    %1582 = vmatprep.subr.bf16.mxu0 %v1197
    %1583 = vmatpush1.bf16.msra.mxu0 %v1196
    %1584 = vmatprep.subr.bf16.mxu0 %v1201
    %1585 = vmatpush1.bf16.msra.mxu0 %v1200
    %1586 = vmatprep.subr.bf16.mxu0 %v1205
    %1587 = vmatpush1.bf16.msra.mxu0 %v1204
    %1588 = vmatprep.subr.bf16.mxu0 %v1209
    %1589 = vmatpush1.bf16.msra.mxu0 %v1208
    %1590 = vmatprep.subr.bf16.mxu0 %v1213
    %1591 = vmatpush1.bf16.msra.mxu0 %v1212
    %1592 = vmatprep.subr.bf16.mxu0 %v1217
    %1593 = vmatpush1.bf16.msra.mxu0 %v1216
    %1594 = vmatprep.subr.bf16.mxu0 %v1221
    %1595 = vmatpush1.bf16.msra.mxu0 %v1220
    %1596 = vmatprep.subr.bf16.mxu0 %v1225
    %1597 = vmatpush1.bf16.msra.mxu0 %v1224
    %1598 = vmatprep.mubr.bf16.mxu0 %v116
    %1599 = vmatmul.mubr.bf16.gmra.mrb[0].mxu0 %v115
    %v1600 = vpop.f32.mrb[0].mxu0
    %v1601 = vadd.f32 %v1560, %v1600
    %v1602 = vpop.f32.mrb[0].mxu0
    %v1603 = vadd.f32 %v1562, %v1602
    %v1604 = vpop.f32.mrb[0].mxu0
    %v1605 = vpop.f32.mrb[0].mxu0
    %1606 = vdwg.mxu0
    %1607 = vmatprep.subr.bf16.mxu0 %v1229
    %1608 = vmatpush1.bf16.msra.mxu0 %v1228
    %1609 = vmatprep.subr.bf16.mxu0 %v1233
    %1610 = vmatpush1.bf16.msra.mxu0 %v1232
    %1611 = vmatprep.subr.bf16.mxu0 %v1237
    %1612 = vmatpush1.bf16.msra.mxu0 %v1236
    %1613 = vmatprep.subr.bf16.mxu0 %v1241
    %1614 = vmatpush1.bf16.msra.mxu0 %v1240
    %1615 = vmatprep.subr.bf16.mxu0 %v1245
    %1616 = vmatpush1.bf16.msra.mxu0 %v1244
    %1617 = vmatprep.subr.bf16.mxu0 %v1249
    %1618 = vmatpush1.bf16.msra.mxu0 %v1248
    %1619 = vmatprep.subr.bf16.mxu0 %v1253
    %1620 = vmatpush1.bf16.msra.mxu0 %v1252
    %1621 = vmatprep.subr.bf16.mxu0 %v1257
    %1622 = vmatpush1.bf16.msra.mxu0 %v1256
    %1623 = vmatprep.subr.bf16.mxu0 0
    %1624 = vmatpush1.bf16.msra.mxu0 0
    %1625 = vmatprep.subr.bf16.mxu0 0
    %1626 = vmatpush1.bf16.msra.mxu0 0
    %1627 = vmatprep.subr.bf16.mxu0 0
    %1628 = vmatpush1.bf16.msra.mxu0 0
    %1629 = vmatprep.subr.bf16.mxu0 0
    %1630 = vmatpush1.bf16.msra.mxu0 0
    %1631 = vmatprep.subr.bf16.mxu0 0
    %1632 = vmatpush1.bf16.msra.mxu0 0
    %1633 = vmatprep.subr.bf16.mxu0 0
    %1634 = vmatpush1.bf16.msra.mxu0 0
    %1635 = vmatprep.subr.bf16.mxu0 0
    %1636 = vmatpush1.bf16.msra.mxu0 0
    %1637 = vmatprep.subr.bf16.mxu0 0
    %1638 = vmatpush1.bf16.msra.mxu0 0
    %1639 = vmatprep.mubr.bf16.mxu0 0
    %1640 = vmatmul.mubr.bf16.gmra.mrb[0].mxu0 %v117
    %v1641 = vpop.f32.mrb[0].mxu0
    %v1642 = vadd.f32 %v1601, %v1641
    %v1643 = vpop.f32.mrb[0].mxu0
    %v1644 = vadd.f32 %v1603, %v1643
    %v1645 = vpop.f32.mrb[0].mxu0
    %v1646 = vpop.f32.mrb[0].mxu0
    %1647 = vdwg.mxu0
    %1648 = vmatprep.subr.bf16.mxu0 %v1039
    %1649 = vmatpush1.bf16.msra.mxu0 %v1038
    %1650 = vmatprep.subr.bf16.mxu0 %v1043
    %1651 = vmatpush1.bf16.msra.mxu0 %v1042
    %1652 = vmatprep.subr.bf16.mxu0 %v1047
    %1653 = vmatpush1.bf16.msra.mxu0 %v1046
    %1654 = vmatprep.subr.bf16.mxu0 %v1051
    %1655 = vmatpush1.bf16.msra.mxu0 %v1050
    %1656 = vmatprep.subr.bf16.mxu0 %v1055
    %1657 = vmatpush1.bf16.msra.mxu0 %v1054
    %1658 = vmatprep.subr.bf16.mxu0 %v1059
    %1659 = vmatpush1.bf16.msra.mxu0 %v1058
    %1660 = vmatprep.subr.bf16.mxu0 %v1063
    %1661 = vmatpush1.bf16.msra.mxu0 %v1062
    %1662 = vmatprep.subr.bf16.mxu0 %v1067
    %1663 = vmatpush1.bf16.msra.mxu0 %v1066
    %1664 = vmatprep.subr.bf16.mxu0 %v1071
    %1665 = vmatpush1.bf16.msra.mxu0 %v1070
    %1666 = vmatprep.subr.bf16.mxu0 %v1075
    %1667 = vmatpush1.bf16.msra.mxu0 %v1074
    %1668 = vmatprep.subr.bf16.mxu0 %v1079
    %1669 = vmatpush1.bf16.msra.mxu0 %v1078
    %1670 = vmatprep.subr.bf16.mxu0 %v1083
    %1671 = vmatpush1.bf16.msra.mxu0 %v1082
    %1672 = vmatprep.subr.bf16.mxu0 %v1087
    %1673 = vmatpush1.bf16.msra.mxu0 %v1086
    %1674 = vmatprep.subr.bf16.mxu0 %v1091
    %1675 = vmatpush1.bf16.msra.mxu0 %v1090
    %1676 = vmatprep.subr.bf16.mxu0 %v1095
    %1677 = vmatpush1.bf16.msra.mxu0 %v1094
    %1678 = vmatprep.subr.bf16.mxu0 %v1099
    %1679 = vmatpush1.bf16.msra.mxu0 %v1098
    %1680 = vmatprep.mubr.bf16.mxu0 %v112
    %1681 = vmatmul.mubr.bf16.gmra.mrb[0].mxu0 %v111
    %v1682 = vpop.f32.mrb[0].mxu0
    %v1683 = vadd.f32 %v355, %v1682
    %v1684 = vpop.f32.mrb[0].mxu0
    %v1685 = vadd.f32 %v359, %v1684
    %v1686 = vpop.f32.mrb[0].mxu0
    %v1687 = vpop.f32.mrb[0].mxu0
    %1688 = vdwg.mxu0
    %1689 = vmatprep.subr.bf16.mxu0 %v1103
    %1690 = vmatpush1.bf16.msra.mxu0 %v1102
    %1691 = vmatprep.subr.bf16.mxu0 %v1107
    %1692 = vmatpush1.bf16.msra.mxu0 %v1106
    %1693 = vmatprep.subr.bf16.mxu0 %v1111
    %1694 = vmatpush1.bf16.msra.mxu0 %v1110
    %1695 = vmatprep.subr.bf16.mxu0 %v1115
    %1696 = vmatpush1.bf16.msra.mxu0 %v1114
    %1697 = vmatprep.subr.bf16.mxu0 %v1119
    %1698 = vmatpush1.bf16.msra.mxu0 %v1118
    %1699 = vmatprep.subr.bf16.mxu0 %v1123
    %1700 = vmatpush1.bf16.msra.mxu0 %v1122
    %1701 = vmatprep.subr.bf16.mxu0 %v1127
    %1702 = vmatpush1.bf16.msra.mxu0 %v1126
    %1703 = vmatprep.subr.bf16.mxu0 %v1131
    %1704 = vmatpush1.bf16.msra.mxu0 %v1130
    %1705 = vmatprep.subr.bf16.mxu0 %v1135
    %1706 = vmatpush1.bf16.msra.mxu0 %v1134
    %1707 = vmatprep.subr.bf16.mxu0 %v1139
    %1708 = vmatpush1.bf16.msra.mxu0 %v1138
    %1709 = vmatprep.subr.bf16.mxu0 %v1143
    %1710 = vmatpush1.bf16.msra.mxu0 %v1142
    %1711 = vmatprep.subr.bf16.mxu0 %v1147
    %1712 = vmatpush1.bf16.msra.mxu0 %v1146
    %1713 = vmatprep.subr.bf16.mxu0 %v1151
    %1714 = vmatpush1.bf16.msra.mxu0 %v1150
    %1715 = vmatprep.subr.bf16.mxu0 %v1155
    %1716 = vmatpush1.bf16.msra.mxu0 %v1154
    %1717 = vmatprep.subr.bf16.mxu0 %v1159
    %1718 = vmatpush1.bf16.msra.mxu0 %v1158
    %1719 = vmatprep.subr.bf16.mxu0 %v1163
    %1720 = vmatpush1.bf16.msra.mxu0 %v1162
    %1721 = vmatprep.mubr.bf16.mxu0 %v114
    %1722 = vmatmul.mubr.bf16.gmra.mrb[0].mxu0 %v113
    %v1723 = vpop.f32.mrb[0].mxu0
    %v1724 = vadd.f32 %v1683, %v1723
    %v1725 = vpop.f32.mrb[0].mxu0
    %v1726 = vadd.f32 %v1685, %v1725
    %v1727 = vpop.f32.mrb[0].mxu0
    %v1728 = vpop.f32.mrb[0].mxu0
    %1729 = vdwg.mxu0
    %1730 = vmatprep.subr.bf16.mxu0 %v1167
    %1731 = vmatpush1.bf16.msra.mxu0 %v1166
    %1732 = vmatprep.subr.bf16.mxu0 %v1171
    %1733 = vmatpush1.bf16.msra.mxu0 %v1170
    %1734 = vmatprep.subr.bf16.mxu0 %v1175
    %1735 = vmatpush1.bf16.msra.mxu0 %v1174
    %1736 = vmatprep.subr.bf16.mxu0 %v1179
    %1737 = vmatpush1.bf16.msra.mxu0 %v1178
    %1738 = vmatprep.subr.bf16.mxu0 %v1183
    %1739 = vmatpush1.bf16.msra.mxu0 %v1182
    %1740 = vmatprep.subr.bf16.mxu0 %v1187
    %1741 = vmatpush1.bf16.msra.mxu0 %v1186
    %1742 = vmatprep.subr.bf16.mxu0 %v1191
    %1743 = vmatpush1.bf16.msra.mxu0 %v1190
    %1744 = vmatprep.subr.bf16.mxu0 %v1195
    %1745 = vmatpush1.bf16.msra.mxu0 %v1194
    %1746 = vmatprep.subr.bf16.mxu0 %v1199
    %1747 = vmatpush1.bf16.msra.mxu0 %v1198
    %1748 = vmatprep.subr.bf16.mxu0 %v1203
    %1749 = vmatpush1.bf16.msra.mxu0 %v1202
    %1750 = vmatprep.subr.bf16.mxu0 %v1207
    %1751 = vmatpush1.bf16.msra.mxu0 %v1206
    %1752 = vmatprep.subr.bf16.mxu0 %v1211
    %1753 = vmatpush1.bf16.msra.mxu0 %v1210
    %1754 = vmatprep.subr.bf16.mxu0 %v1215
    %1755 = vmatpush1.bf16.msra.mxu0 %v1214
    %1756 = vmatprep.subr.bf16.mxu0 %v1219
    %1757 = vmatpush1.bf16.msra.mxu0 %v1218
    %1758 = vmatprep.subr.bf16.mxu0 %v1223
    %1759 = vmatpush1.bf16.msra.mxu0 %v1222
    %1760 = vmatprep.subr.bf16.mxu0 %v1227
    %1761 = vmatpush1.bf16.msra.mxu0 %v1226
    %1762 = vmatprep.mubr.bf16.mxu0 %v116
    %1763 = vmatmul.mubr.bf16.gmra.mrb[0].mxu0 %v115
    %v1764 = vpop.f32.mrb[0].mxu0
    %v1765 = vadd.f32 %v1724, %v1764
    %v1766 = vpop.f32.mrb[0].mxu0
    %v1767 = vadd.f32 %v1726, %v1766
    %v1768 = vpop.f32.mrb[0].mxu0
    %v1769 = vpop.f32.mrb[0].mxu0
    %1770 = vdwg.mxu0
    %1771 = vmatprep.subr.bf16.mxu0 %v1231
    %1772 = vmatpush1.bf16.msra.mxu0 %v1230
    %1773 = vmatprep.subr.bf16.mxu0 %v1235
    %1774 = vmatpush1.bf16.msra.mxu0 %v1234
    %1775 = vmatprep.subr.bf16.mxu0 %v1239
    %1776 = vmatpush1.bf16.msra.mxu0 %v1238
    %1777 = vmatprep.subr.bf16.mxu0 %v1243
    %1778 = vmatpush1.bf16.msra.mxu0 %v1242
    %1779 = vmatprep.subr.bf16.mxu0 %v1247
    %1780 = vmatpush1.bf16.msra.mxu0 %v1246
    %1781 = vmatprep.subr.bf16.mxu0 %v1251
    %1782 = vmatpush1.bf16.msra.mxu0 %v1250
    %1783 = vmatprep.subr.bf16.mxu0 %v1255
    %1784 = vmatpush1.bf16.msra.mxu0 %v1254
    %1785 = vmatprep.subr.bf16.mxu0 %v1259
    %1786 = vmatpush1.bf16.msra.mxu0 %v1258
    %1787 = vmatprep.subr.bf16.mxu0 0
    %1788 = vmatpush1.bf16.msra.mxu0 0
    %1789 = vmatprep.subr.bf16.mxu0 0
    %1790 = vmatpush1.bf16.msra.mxu0 0
    %1791 = vmatprep.subr.bf16.mxu0 0
    %1792 = vmatpush1.bf16.msra.mxu0 0
    %1793 = vmatprep.subr.bf16.mxu0 0
    %1794 = vmatpush1.bf16.msra.mxu0 0
    %1795 = vmatprep.subr.bf16.mxu0 0
    %1796 = vmatpush1.bf16.msra.mxu0 0
    %1797 = vmatprep.subr.bf16.mxu0 0
    %1798 = vmatpush1.bf16.msra.mxu0 0
    %1799 = vmatprep.subr.bf16.mxu0 0
    %1800 = vmatpush1.bf16.msra.mxu0 0
    %1801 = vmatprep.subr.bf16.mxu0 0
    %1802 = vmatpush1.bf16.msra.mxu0 0
    %1803 = vmatprep.mubr.bf16.mxu0 0
    %1804 = vmatmul.mubr.bf16.gmra.mrb[0].mxu0 %v117
    %v1805 = vpop.f32.mrb[0].mxu0
    %v1806 = vadd.f32 %v1765, %v1805
    %v1807 = vpop.f32.mrb[0].mxu0
    %v1808 = vadd.f32 %v1767, %v1807
    %v1809 = vpop.f32.mrb[0].mxu0
    %v1810 = vpop.f32.mrb[0].mxu0
    %1811 = vdwg.mxu0
    %v1812 = vmax.f32 %v1642, 0.0
    %v1813 = vmax.f32 %v1644, 0.0
    %v1814 = vmax.f32 %v1806, 0.0
    %v1815 = vmax.f32 %v1808, 0.0
    %v1816 = vpack.c.bf16 %v1812, %v1812
    %v1817 = vpack.c.bf16 %v1813, %v1813
    %v1818 = vpack.c.bf16 %v1814, %v1814
    %v1819 = vpack.c.bf16 %v1815, %v1815
    %v1820 = vld [vmem:[#allocation8] sm:$0xf]
    %v1821 = vld [vmem:[#allocation8 + $0x4] sm:$0xf]
    %v1822 = vld [vmem:[#allocation8 + $0x8] sm:$0xf]
    %v1823 = vld [vmem:[#allocation8 + $0xc] sm:$0xf]
    %v1824 = vld [vmem:[#allocation8 + $0x10] sm:$0xf]
    %v1825 = vld [vmem:[#allocation8 + $0x14] sm:$0xf]
    %v1826 = vld [vmem:[#allocation8 + $0x18] sm:$0xf]
    %v1827 = vld [vmem:[#allocation8 + $0x1c] sm:$0xf]
    %v1828 = vld [vmem:[#allocation8 + $0x20] sm:$0xf]
    %v1829 = vld [vmem:[#allocation8 + $0x24] sm:$0xf]
    %v1830 = vld [vmem:[#allocation8 + $0x28] sm:$0xf]
    %v1831 = vld [vmem:[#allocation8 + $0x2c] sm:$0xf]
    %v1832 = vld [vmem:[#allocation8 + $0x30] sm:$0xf]
    %v1833 = vld [vmem:[#allocation8 + $0x34] sm:$0xf]
    %v1834 = vld [vmem:[#allocation8 + $0x38] sm:$0xf]
    %v1835 = vld [vmem:[#allocation8 + $0x3c] sm:$0xf]
    %v1836 = vld [vmem:[#allocation8 + $0x40] sm:$0xf]
    %v1837 = vld [vmem:[#allocation8 + $0x44] sm:$0xf]
    %v1838 = vld [vmem:[#allocation8 + $0x48] sm:$0xf]
    %v1839 = vld [vmem:[#allocation8 + $0x4c] sm:$0xf]
    %v1840 = vld [vmem:[#allocation8 + $0x50] sm:$0xf]
    %v1841 = vld [vmem:[#allocation8 + $0x54] sm:$0xf]
    %v1842 = vld [vmem:[#allocation8 + $0x58] sm:$0xf]
    %v1843 = vld [vmem:[#allocation8 + $0x5c] sm:$0xf]
    %v1844 = vld [vmem:[#allocation8 + $0x60] sm:$0xf]
    %v1845 = vld [vmem:[#allocation8 + $0x64] sm:$0xf]
    %v1846 = vld [vmem:[#allocation8 + $0x68] sm:$0xf]
    %v1847 = vld [vmem:[#allocation8 + $0x6c] sm:$0xf]
    %v1848 = vld [vmem:[#allocation8 + $0x70] sm:$0xf]
    %v1849 = vld [vmem:[#allocation8 + $0x74] sm:$0xf]
    %v1850 = vld [vmem:[#allocation8 + $0x78] sm:$0xf]
    %v1851 = vld [vmem:[#allocation8 + $0x7c] sm:$0xf]
    %v1852 = vld [vmem:[#allocation8 + $0x80] sm:$0xf]
    %v1853 = vld [vmem:[#allocation8 + $0x84] sm:$0xf]
    %v1854 = vld [vmem:[#allocation8 + $0x88] sm:$0xf]
    %v1855 = vld [vmem:[#allocation8 + $0x8c] sm:$0xf]
    %v1856 = vld [vmem:[#allocation8 + $0x90] sm:$0xf]
    %v1857 = vld [vmem:[#allocation8 + $0x94] sm:$0xf]
    %v1858 = vld [vmem:[#allocation8 + $0x98] sm:$0xf]
    %v1859 = vld [vmem:[#allocation8 + $0x9c] sm:$0xf]
    %v1860 = vld [vmem:[#allocation8 + $0xa0] sm:$0xf]
    %v1861 = vld [vmem:[#allocation8 + $0xa4] sm:$0xf]
    %v1862 = vld [vmem:[#allocation8 + $0xa8] sm:$0xf]
    %v1863 = vld [vmem:[#allocation8 + $0xac] sm:$0xf]
    %v1864 = vld [vmem:[#allocation8 + $0xb0] sm:$0xf]
    %v1865 = vld [vmem:[#allocation8 + $0xb4] sm:$0xf]
    %v1866 = vld [vmem:[#allocation8 + $0xb8] sm:$0xf]
    %v1867 = vld [vmem:[#allocation8 + $0xbc] sm:$0xf]
    %v1868 = vld [vmem:[#allocation8 + $0xc0] sm:$0xf]
    %v1869 = vld [vmem:[#allocation8 + $0xc4] sm:$0xf]
    %v1870 = vld [vmem:[#allocation8 + $0xc8] sm:$0xf]
    %v1871 = vld [vmem:[#allocation8 + $0xcc] sm:$0xf]
    %v1872 = vld [vmem:[#allocation8 + $0xd0] sm:$0xf]
    %v1873 = vld [vmem:[#allocation8 + $0xd4] sm:$0xf]
    %v1874 = vld [vmem:[#allocation8 + $0xd8] sm:$0xf]
    %v1875 = vld [vmem:[#allocation8 + $0xdc] sm:$0xf]
    %v1876 = vld [vmem:[#allocation8 + $0xe0] sm:$0xf]
    %v1877 = vld [vmem:[#allocation8 + $0xe4] sm:$0xf]
    %v1878 = vld [vmem:[#allocation8 + $0xe8] sm:$0xf]
    %v1879 = vld [vmem:[#allocation8 + $0xec] sm:$0xf]
    %v1880 = vld [vmem:[#allocation8 + $0xf0] sm:$0xf]
    %v1881 = vld [vmem:[#allocation8 + $0xf4] sm:$0xf]
    %v1882 = vld [vmem:[#allocation8 + $0xf8] sm:$0xf]
    %v1883 = vld [vmem:[#allocation8 + $0xfc] sm:$0xf]
    %v1884 = vld [vmem:[%s4] sm:$0x1]
    %v1886 = vlaneseq
    %v1887 = vshrl.u32 %v1886, 7
    %v1888 = vsub.s32 0, %v1887
    %v1889 = vrot.slane %v1884, %v1888
    %v1955 = vunpack.c.l.b16 %v1820
    %v1956 = vunpack.c.l.b16 %v1821
    %v1957 = vunpack.c.l.b16 %v1822
    %v1958 = vunpack.c.l.b16 %v1823
    %v1959 = vunpack.c.l.b16 %v1824
    %v1960 = vunpack.c.l.b16 %v1825
    %v1961 = vunpack.c.l.b16 %v1826
    %v1962 = vunpack.c.l.b16 %v1827
    %v1963 = vunpack.c.l.b16 %v1828
    %v1964 = vunpack.c.l.b16 %v1829
    %v1965 = vunpack.c.l.b16 %v1830
    %v1966 = vunpack.c.l.b16 %v1831
    %v1967 = vunpack.c.l.b16 %v1832
    %v1968 = vunpack.c.l.b16 %v1833
    %v1969 = vunpack.c.l.b16 %v1834
    %v1970 = vunpack.c.l.b16 %v1835
    %v1971 = vunpack.c.l.b16 %v1836
    %v1972 = vunpack.c.l.b16 %v1837
    %v1973 = vunpack.c.l.b16 %v1838
    %v1974 = vunpack.c.l.b16 %v1839
    %v1975 = vunpack.c.l.b16 %v1840
    %v1976 = vunpack.c.l.b16 %v1841
    %v1977 = vunpack.c.l.b16 %v1842
    %v1978 = vunpack.c.l.b16 %v1843
    %v1979 = vunpack.c.l.b16 %v1844
    %v1980 = vunpack.c.l.b16 %v1845
    %v1981 = vunpack.c.l.b16 %v1846
    %v1982 = vunpack.c.l.b16 %v1847
    %v1983 = vunpack.c.l.b16 %v1848
    %v1984 = vunpack.c.l.b16 %v1849
    %v1985 = vunpack.c.l.b16 %v1850
    %v1986 = vunpack.c.l.b16 %v1851
    %v1987 = vunpack.c.l.b16 %v1852
    %v1988 = vunpack.c.l.b16 %v1853
    %v1989 = vunpack.c.l.b16 %v1854
    %v1990 = vunpack.c.l.b16 %v1855
    %v1991 = vunpack.c.l.b16 %v1856
    %v1992 = vunpack.c.l.b16 %v1857
    %v1993 = vunpack.c.l.b16 %v1858
    %v1994 = vunpack.c.l.b16 %v1859
    %v1995 = vunpack.c.l.b16 %v1860
    %v1996 = vunpack.c.l.b16 %v1861
    %v1997 = vunpack.c.l.b16 %v1862
    %v1998 = vunpack.c.l.b16 %v1863
    %v1999 = vunpack.c.l.b16 %v1864
    %v2000 = vunpack.c.l.b16 %v1865
    %v2001 = vunpack.c.l.b16 %v1866
    %v2002 = vunpack.c.l.b16 %v1867
    %v2003 = vunpack.c.l.b16 %v1868
    %v2004 = vunpack.c.l.b16 %v1869
    %v2005 = vunpack.c.l.b16 %v1870
    %v2006 = vunpack.c.l.b16 %v1871
    %v2007 = vunpack.c.l.b16 %v1872
    %v2008 = vunpack.c.l.b16 %v1873
    %v2009 = vunpack.c.l.b16 %v1874
    %v2010 = vunpack.c.l.b16 %v1875
    %v2011 = vunpack.c.l.b16 %v1876
    %v2012 = vunpack.c.l.b16 %v1877
    %v2013 = vunpack.c.l.b16 %v1878
    %v2014 = vunpack.c.l.b16 %v1879
    %v2015 = vunpack.c.l.b16 %v1880
    %v2016 = vunpack.c.l.b16 %v1881
    %v2017 = vunpack.c.l.b16 %v1882
    %v2018 = vunpack.c.l.b16 %v1883
    %v2019 = vpack.c.b16 %v1956, %v1955
    %v2020 = vpack.c.b16 %v1958, %v1957
    %v2021 = vpack.c.b16 %v1960, %v1959
    %v2022 = vpack.c.b16 %v1962, %v1961
    %v2023 = vpack.c.b16 %v1964, %v1963
    %v2024 = vpack.c.b16 %v1966, %v1965
    %v2025 = vpack.c.b16 %v1968, %v1967
    %v2026 = vpack.c.b16 %v1970, %v1969
    %v2027 = vpack.c.b16 %v1972, %v1971
    %v2028 = vpack.c.b16 %v1974, %v1973
    %v2029 = vpack.c.b16 %v1976, %v1975
    %v2030 = vpack.c.b16 %v1978, %v1977
    %v2031 = vpack.c.b16 %v1980, %v1979
    %v2032 = vpack.c.b16 %v1982, %v1981
    %v2033 = vpack.c.b16 %v1984, %v1983
    %v2034 = vpack.c.b16 %v1986, %v1985
    %v2035 = vpack.c.b16 %v1988, %v1987
    %v2036 = vpack.c.b16 %v1990, %v1989
    %v2037 = vpack.c.b16 %v1992, %v1991
    %v2038 = vpack.c.b16 %v1994, %v1993
    %v2039 = vpack.c.b16 %v1996, %v1995
    %v2040 = vpack.c.b16 %v1998, %v1997
    %v2041 = vpack.c.b16 %v2000, %v1999
    %v2042 = vpack.c.b16 %v2002, %v2001
    %v2043 = vpack.c.b16 %v2004, %v2003
    %v2044 = vpack.c.b16 %v2006, %v2005
    %v2045 = vpack.c.b16 %v2008, %v2007
    %v2046 = vpack.c.b16 %v2010, %v2009
    %v2047 = vpack.c.b16 %v2012, %v2011
    %v2048 = vpack.c.b16 %v2014, %v2013
    %v2049 = vpack.c.b16 %v2016, %v2015
    %v2050 = vpack.c.b16 %v2018, %v2017
    %2083 = vmatprep.subr.bf16.mxu0 0
    %2084 = vmatpush1.bf16.msra.mxu0 %v2019
    %2085 = vmatprep.subr.bf16.mxu0 0
    %2086 = vmatpush1.bf16.msra.mxu0 %v2020
    %2087 = vmatprep.subr.bf16.mxu0 0
    %2088 = vmatpush1.bf16.msra.mxu0 %v2021
    %2089 = vmatprep.subr.bf16.mxu0 0
    %2090 = vmatpush1.bf16.msra.mxu0 %v2022
    %2091 = vmatprep.subr.bf16.mxu0 0
    %2092 = vmatpush1.bf16.msra.mxu0 %v2023
    %2093 = vmatprep.subr.bf16.mxu0 0
    %2094 = vmatpush1.bf16.msra.mxu0 %v2024
    %2095 = vmatprep.subr.bf16.mxu0 0
    %2096 = vmatpush1.bf16.msra.mxu0 %v2025
    %2097 = vmatprep.subr.bf16.mxu0 0
    %2098 = vmatpush1.bf16.msra.mxu0 %v2026
    %2099 = vmatprep.subr.bf16.mxu0 0
    %2100 = vmatpush1.bf16.msra.mxu0 %v2027
    %2101 = vmatprep.subr.bf16.mxu0 0
    %2102 = vmatpush1.bf16.msra.mxu0 %v2028
    %2103 = vmatprep.subr.bf16.mxu0 0
    %2104 = vmatpush1.bf16.msra.mxu0 %v2029
    %2105 = vmatprep.subr.bf16.mxu0 0
    %2106 = vmatpush1.bf16.msra.mxu0 %v2030
    %2107 = vmatprep.subr.bf16.mxu0 0
    %2108 = vmatpush1.bf16.msra.mxu0 %v2031
    %2109 = vmatprep.subr.bf16.mxu0 0
    %2110 = vmatpush1.bf16.msra.mxu0 %v2032
    %2111 = vmatprep.subr.bf16.mxu0 0
    %2112 = vmatpush1.bf16.msra.mxu0 %v2033
    %2113 = vmatprep.subr.bf16.mxu0 0
    %2114 = vmatpush1.bf16.msra.mxu0 %v2034
    %2115 = vmatprep.mubr.bf16.mxu0 %v1817
    %2116 = vmatmul.mubr.bf16.gmra.mrb[0].mxu0 %v1816
    %v2117 = vpop.f32.mrb[0].mxu0
    %v2118 = vadd.f32 %v1889, %v2117
    %v2119 = vpop.f32.mrb[0].mxu0
    %v2120 = vpop.f32.mrb[0].mxu0
    %v2121 = vpop.f32.mrb[0].mxu0
    %2122 = vdwg.mxu0
    %2123 = vmatprep.subr.bf16.mxu0 0
    %2124 = vmatpush1.bf16.msra.mxu0 %v2035
    %2125 = vmatprep.subr.bf16.mxu0 0
    %2126 = vmatpush1.bf16.msra.mxu0 %v2036
    %2127 = vmatprep.subr.bf16.mxu0 0
    %2128 = vmatpush1.bf16.msra.mxu0 %v2037
    %2129 = vmatprep.subr.bf16.mxu0 0
    %2130 = vmatpush1.bf16.msra.mxu0 %v2038
    %2131 = vmatprep.subr.bf16.mxu0 0
    %2132 = vmatpush1.bf16.msra.mxu0 %v2039
    %2133 = vmatprep.subr.bf16.mxu0 0
    %2134 = vmatpush1.bf16.msra.mxu0 %v2040
    %2135 = vmatprep.subr.bf16.mxu0 0
    %2136 = vmatpush1.bf16.msra.mxu0 %v2041
    %2137 = vmatprep.subr.bf16.mxu0 0
    %2138 = vmatpush1.bf16.msra.mxu0 %v2042
    %2139 = vmatprep.subr.bf16.mxu0 0
    %2140 = vmatpush1.bf16.msra.mxu0 %v2043
    %2141 = vmatprep.subr.bf16.mxu0 0
    %2142 = vmatpush1.bf16.msra.mxu0 %v2044
    %2143 = vmatprep.subr.bf16.mxu0 0
    %2144 = vmatpush1.bf16.msra.mxu0 %v2045
    %2145 = vmatprep.subr.bf16.mxu0 0
    %2146 = vmatpush1.bf16.msra.mxu0 %v2046
    %2147 = vmatprep.subr.bf16.mxu0 0
    %2148 = vmatpush1.bf16.msra.mxu0 %v2047
    %2149 = vmatprep.subr.bf16.mxu0 0
    %2150 = vmatpush1.bf16.msra.mxu0 %v2048
    %2151 = vmatprep.subr.bf16.mxu0 0
    %2152 = vmatpush1.bf16.msra.mxu0 %v2049
    %2153 = vmatprep.subr.bf16.mxu0 0
    %2154 = vmatpush1.bf16.msra.mxu0 %v2050
    %2155 = vmatprep.mubr.bf16.mxu0 %v1819
    %2156 = vmatmul.mubr.bf16.gmra.mrb[0].mxu0 %v1818
    %v2157 = vpop.f32.mrb[0].mxu0
    %v2158 = vadd.f32 %v2118, %v2157
    %v2159 = vpop.f32.mrb[0].mxu0
    %v2160 = vpop.f32.mrb[0].mxu0
    %v2161 = vpop.f32.mrb[0].mxu0
    %2162 = vdwg.mxu0
    %2163 = vst [vmem:[#allocation12] sm:$0xff] %v2158
    %v2164 = vld [vmem:[%s9] sm:$0xff]
    %v2165 = vmul.f32 %v2158, 0.5
    %v2166 = vmul.f32 %v2165, 1.442695
    %v2167 = vpow.pop %v2166
    %2169 = vrot.lane.b32.xlu0 %v2167, 126
    %v2170 = vpop.permute.xlu0 %2169
    %v2172 = vmul.f32 %v2164, %v2170
    %v2173 = vadd.f32 %v2172, %v2158
    %v2174 = vld [vmem:[%s5] ss:$2 sm:$0xf]
    %2176 = vset.pattern.permute.xlu0 0
    %2177 = vperm.xlu0 %2176, %v2173
    %v2178 = vpop.permute.xlu0 %2177
    %v2181 = vlaneseq
    %v2182 = vshrl.u32 %v2181, 7
    %v2183 = vsub.s32 0, %v2182
    %v2184 = vrot.slane %v2174, %v2183
    %v2185 = vlaneseq
    %v2186 = vshrl.u32 %v2185, 7
    %v2187 = vsub.s32 1, %v2186
    %v2188 = vrot.slane %v2174, %v2187
    %v2189 = vlaneseq
    %v2190 = vshrl.u32 %v2189, 7
    %v2191 = vsub.s32 2, %v2190
    %v2192 = vrot.slane %v2174, %v2191
    %v2193 = vlaneseq
    %v2194 = vshrl.u32 %v2193, 7
    %v2195 = vsub.s32 3, %v2194
    %v2196 = vrot.slane %v2174, %v2195
    %v2201 = vmul.f32 %v2178, %v2184
    %v2202 = vmul.f32 %v2178, %v2188
    %v2203 = vmul.f32 %v2178, %v2192
    %v2204 = vmul.f32 %v2178, %v2196
    %s2205 = scalar_lea.vmem %s5, 1
    %v2206 = vld [vmem:[%s2205] ss:$2 sm:$0xf]
    %2207 = vset.pattern.permute.xlu0 1
    %2208 = vperm.xlu0 %2207, %v2173
    %v2209 = vpop.permute.xlu0 %2208
    %v2212 = vlaneseq
    %v2213 = vshrl.u32 %v2212, 7
    %v2214 = vsub.s32 0, %v2213
    %v2215 = vrot.slane %v2206, %v2214
    %v2216 = vlaneseq
    %v2217 = vshrl.u32 %v2216, 7
    %v2218 = vsub.s32 1, %v2217
    %v2219 = vrot.slane %v2206, %v2218
    %v2220 = vlaneseq
    %v2221 = vshrl.u32 %v2220, 7
    %v2222 = vsub.s32 2, %v2221
    %v2223 = vrot.slane %v2206, %v2222
    %v2224 = vlaneseq
    %v2225 = vshrl.u32 %v2224, 7
    %v2226 = vsub.s32 3, %v2225
    %v2227 = vrot.slane %v2206, %v2226
    %v2232 = vmul.f32 %v2209, %v2215
    %v2233 = vmul.f32 %v2209, %v2219
    %v2234 = vmul.f32 %v2209, %v2223
    %v2235 = vmul.f32 %v2209, %v2227
    %v2236 = vadd.f32 %v2201, %v2232
    %v2237 = vadd.f32 %v2202, %v2233
    %v2238 = vadd.f32 %v2203, %v2234
    %v2239 = vadd.f32 %v2204, %v2235
    %v2240 = vld [vmem:[%s6] sm:$0xf]
    %v2242 = vlaneseq
    %v2243 = vshrl.u32 %v2242, 7
    %v2244 = vsub.s32 0, %v2243
    %v2245 = vrot.slane %v2240, %v2244
    %v2246 = vlaneseq
    %v2247 = vshrl.u32 %v2246, 7
    %v2248 = vsub.s32 1, %v2247
    %v2249 = vrot.slane %v2240, %v2248
    %v2250 = vlaneseq
    %v2251 = vshrl.u32 %v2250, 7
    %v2252 = vsub.s32 2, %v2251
    %v2253 = vrot.slane %v2240, %v2252
    %v2254 = vlaneseq
    %v2255 = vshrl.u32 %v2254, 7
    %v2256 = vsub.s32 3, %v2255
    %v2257 = vrot.slane %v2240, %v2256
    %v2262 = vadd.f32 %v2236, %v2245
    %v2263 = vadd.f32 %v2237, %v2249
    %v2264 = vadd.f32 %v2238, %v2253
    %v2265 = vadd.f32 %v2239, %v2257
    %v2266 = vmax.f32 %v2262, 0.0
    %v2267 = vmax.f32 %v2263, 0.0
    %v2268 = vmax.f32 %v2264, 0.0
    %v2269 = vmax.f32 %v2265, 0.0
    %v2270 = vpack.c.bf16 %v2266, %v2266
    %v2271 = vpack.c.bf16 %v2267, %v2267
    %v2272 = vpack.c.bf16 %v2268, %v2268
    %v2273 = vpack.c.bf16 %v2269, %v2269
    %v2274 = vld [vmem:[#allocation10] sm:$0xff]
    %v2275 = vld [vmem:[#allocation10 + $0x8] sm:$0xff]
    %v2276 = vld [vmem:[#allocation10 + $0x10] sm:$0xff]
    %v2277 = vld [vmem:[#allocation10 + $0x18] sm:$0xf]
    %v2278 = vld [vmem:[#allocation10 + $0x1c] sm:$0xff]
    %v2279 = vld [vmem:[#allocation10 + $0x24] sm:$0xff]
    %v2280 = vld [vmem:[#allocation10 + $0x2c] sm:$0xff]
    %v2281 = vld [vmem:[#allocation10 + $0x34] sm:$0xf]
    %v2282 = vld [vmem:[#allocation10 + $0x38] sm:$0xff]
    %v2283 = vld [vmem:[#allocation10 + $0x40] sm:$0xff]
    %v2284 = vld [vmem:[#allocation10 + $0x48] sm:$0xff]
    %v2285 = vld [vmem:[#allocation10 + $0x50] sm:$0xf]
    %v2286 = vld [vmem:[#allocation10 + $0x54] sm:$0xff]
    %v2287 = vld [vmem:[#allocation10 + $0x5c] sm:$0xff]
    %v2288 = vld [vmem:[#allocation10 + $0x64] sm:$0xff]
    %v2289 = vld [vmem:[#allocation10 + $0x6c] sm:$0xf]
    %v2290 = vld [vmem:[#allocation10 + $0x70] sm:$0xff]
    %v2291 = vld [vmem:[#allocation10 + $0x78] sm:$0xff]
    %v2292 = vld [vmem:[#allocation10 + $0x80] sm:$0xff]
    %v2293 = vld [vmem:[#allocation10 + $0x88] sm:$0xf]
    %v2294 = vld [vmem:[#allocation10 + $0x8c] sm:$0xff]
    %v2295 = vld [vmem:[#allocation10 + $0x94] sm:$0xff]
    %v2296 = vld [vmem:[#allocation10 + $0x9c] sm:$0xff]
    %v2297 = vld [vmem:[#allocation10 + $0xa4] sm:$0xf]
    %v2298 = vld [vmem:[#allocation10 + $0xa8] sm:$0xff]
    %v2299 = vld [vmem:[#allocation10 + $0xb0] sm:$0xff]
    %v2300 = vld [vmem:[#allocation10 + $0xb8] sm:$0xff]
    %v2301 = vld [vmem:[#allocation10 + $0xc0] sm:$0xf]
    %v2302 = vld [vmem:[#allocation10 + $0xc4] sm:$0xff]
    %v2303 = vld [vmem:[#allocation10 + $0xcc] sm:$0xff]
    %v2304 = vld [vmem:[#allocation10 + $0xd4] sm:$0xff]
    %v2305 = vld [vmem:[#allocation10 + $0xdc] sm:$0xf]
    %v2306 = vld [vmem:[#allocation10 + $0xe0] sm:$0xff]
    %v2307 = vld [vmem:[#allocation10 + $0xe8] sm:$0xff]
    %v2308 = vld [vmem:[#allocation10 + $0xf0] sm:$0xff]
    %v2309 = vld [vmem:[#allocation10 + $0xf8] sm:$0xf]
    %v2310 = vld [vmem:[#allocation10 + $0xfc] sm:$0xff]
    %v2311 = vld [vmem:[#allocation10 + $0x104] sm:$0xff]
    %v2312 = vld [vmem:[#allocation10 + $0x10c] sm:$0xff]
    %v2313 = vld [vmem:[#allocation10 + $0x114] sm:$0xf]
    %v2314 = vld [vmem:[#allocation10 + $0x118] sm:$0xff]
    %v2315 = vld [vmem:[#allocation10 + $0x120] sm:$0xff]
    %v2316 = vld [vmem:[#allocation10 + $0x128] sm:$0xff]
    %v2317 = vld [vmem:[#allocation10 + $0x130] sm:$0xf]
    %v2318 = vld [vmem:[#allocation10 + $0x134] sm:$0xff]
    %v2319 = vld [vmem:[#allocation10 + $0x13c] sm:$0xff]
    %v2320 = vld [vmem:[#allocation10 + $0x144] sm:$0xff]
    %v2321 = vld [vmem:[#allocation10 + $0x14c] sm:$0xf]
    %v2322 = vld [vmem:[#allocation10 + $0x150] sm:$0xff]
    %v2323 = vld [vmem:[#allocation10 + $0x158] sm:$0xff]
    %v2324 = vld [vmem:[#allocation10 + $0x160] sm:$0xff]
    %v2325 = vld [vmem:[#allocation10 + $0x168] sm:$0xf]
    %v2326 = vld [vmem:[#allocation10 + $0x16c] sm:$0xff]
    %v2327 = vld [vmem:[#allocation10 + $0x174] sm:$0xff]
    %v2328 = vld [vmem:[#allocation10 + $0x17c] sm:$0xff]
    %v2329 = vld [vmem:[#allocation10 + $0x184] sm:$0xf]
    %v2330 = vld [vmem:[#allocation10 + $0x188] sm:$0xff]
    %v2331 = vld [vmem:[#allocation10 + $0x190] sm:$0xff]
    %v2332 = vld [vmem:[#allocation10 + $0x198] sm:$0xff]
    %v2333 = vld [vmem:[#allocation10 + $0x1a0] sm:$0xf]
    %v2334 = vld [vmem:[#allocation10 + $0x1a4] sm:$0xff]
    %v2335 = vld [vmem:[#allocation10 + $0x1ac] sm:$0xff]
    %v2336 = vld [vmem:[#allocation10 + $0x1b4] sm:$0xff]
    %v2337 = vld [vmem:[#allocation10 + $0x1bc] sm:$0xf]
    %v2338 = vld [vmem:[#allocation10 + $0x1c0] sm:$0xff]
    %v2339 = vld [vmem:[#allocation10 + $0x1c8] sm:$0xff]
    %v2340 = vld [vmem:[#allocation10 + $0x1d0] sm:$0xff]
    %v2341 = vld [vmem:[#allocation10 + $0x1d8] sm:$0xf]
    %v2342 = vld [vmem:[#allocation10 + $0x1dc] sm:$0xff]
    %v2343 = vld [vmem:[#allocation10 + $0x1e4] sm:$0xff]
    %v2344 = vld [vmem:[#allocation10 + $0x1ec] sm:$0xff]
    %v2345 = vld [vmem:[#allocation10 + $0x1f4] sm:$0xf]
    %v2346 = vld [vmem:[#allocation10 + $0x1f8] sm:$0xff]
    %v2347 = vld [vmem:[#allocation10 + $0x200] sm:$0xff]
    %v2348 = vld [vmem:[#allocation10 + $0x208] sm:$0xff]
    %v2349 = vld [vmem:[#allocation10 + $0x210] sm:$0xf]
    %v2350 = vld [vmem:[#allocation10 + $0x214] sm:$0xff]
    %v2351 = vld [vmem:[#allocation10 + $0x21c] sm:$0xff]
    %v2352 = vld [vmem:[#allocation10 + $0x224] sm:$0xff]
    %v2353 = vld [vmem:[#allocation10 + $0x22c] sm:$0xf]
    %v2354 = vld [vmem:[#allocation10 + $0x230] sm:$0xff]
    %v2355 = vld [vmem:[#allocation10 + $0x238] sm:$0xff]
    %v2356 = vld [vmem:[#allocation10 + $0x240] sm:$0xff]
    %v2357 = vld [vmem:[#allocation10 + $0x248] sm:$0xf]
    %v2358 = vld [vmem:[#allocation10 + $0x24c] sm:$0xff]
    %v2359 = vld [vmem:[#allocation10 + $0x254] sm:$0xff]
    %v2360 = vld [vmem:[#allocation10 + $0x25c] sm:$0xff]
    %v2361 = vld [vmem:[#allocation10 + $0x264] sm:$0xf]
    %v2362 = vld [vmem:[#allocation10 + $0x268] sm:$0xff]
    %v2363 = vld [vmem:[#allocation10 + $0x270] sm:$0xff]
    %v2364 = vld [vmem:[#allocation10 + $0x278] sm:$0xff]
    %v2365 = vld [vmem:[#allocation10 + $0x280] sm:$0xf]
    %v2366 = vld [vmem:[#allocation10 + $0x284] sm:$0xff]
    %v2367 = vld [vmem:[#allocation10 + $0x28c] sm:$0xff]
    %v2368 = vld [vmem:[#allocation10 + $0x294] sm:$0xff]
    %v2369 = vld [vmem:[#allocation10 + $0x29c] sm:$0xf]
    %v2370 = vld [vmem:[#allocation10 + $0x2a0] sm:$0xff]
    %v2371 = vld [vmem:[#allocation10 + $0x2a8] sm:$0xff]
    %v2372 = vld [vmem:[#allocation10 + $0x2b0] sm:$0xff]
    %v2373 = vld [vmem:[#allocation10 + $0x2b8] sm:$0xf]
    %v2374 = vld [vmem:[#allocation10 + $0x2bc] sm:$0xff]
    %v2375 = vld [vmem:[#allocation10 + $0x2c4] sm:$0xff]
    %v2376 = vld [vmem:[#allocation10 + $0x2cc] sm:$0xff]
    %v2377 = vld [vmem:[#allocation10 + $0x2d4] sm:$0xf]
    %v2378 = vld [vmem:[#allocation10 + $0x2d8] sm:$0xff]
    %v2379 = vld [vmem:[#allocation10 + $0x2e0] sm:$0xff]
    %v2380 = vld [vmem:[#allocation10 + $0x2e8] sm:$0xff]
    %v2381 = vld [vmem:[#allocation10 + $0x2f0] sm:$0xf]
    %v2382 = vld [vmem:[#allocation10 + $0x2f4] sm:$0xff]
    %v2383 = vld [vmem:[#allocation10 + $0x2fc] sm:$0xff]
    %v2384 = vld [vmem:[#allocation10 + $0x304] sm:$0xff]
    %v2385 = vld [vmem:[#allocation10 + $0x30c] sm:$0xf]
    %v2386 = vld [vmem:[#allocation10 + $0x310] sm:$0xff]
    %v2387 = vld [vmem:[#allocation10 + $0x318] sm:$0xff]
    %v2388 = vld [vmem:[#allocation10 + $0x320] sm:$0xff]
    %v2389 = vld [vmem:[#allocation10 + $0x328] sm:$0xf]
    %v2390 = vld [vmem:[#allocation10 + $0x32c] sm:$0xff]
    %v2391 = vld [vmem:[#allocation10 + $0x334] sm:$0xff]
    %v2392 = vld [vmem:[#allocation10 + $0x33c] sm:$0xff]
    %v2393 = vld [vmem:[#allocation10 + $0x344] sm:$0xf]
    %v2394 = vld [vmem:[#allocation10 + $0x348] sm:$0xff]
    %v2395 = vld [vmem:[#allocation10 + $0x350] sm:$0xff]
    %v2396 = vld [vmem:[#allocation10 + $0x358] sm:$0xff]
    %v2397 = vld [vmem:[#allocation10 + $0x360] sm:$0xf]
    %v2398 = vld [vmem:[#allocation10 + $0x364] sm:$0xff]
    %v2399 = vld [vmem:[#allocation10 + $0x36c] sm:$0xff]
    %v2400 = vld [vmem:[#allocation10 + $0x374] sm:$0xff]
    %v2401 = vld [vmem:[#allocation10 + $0x37c] sm:$0xf]
    %v2402 = vld [vmem:[#allocation10 + $0x380] sm:$0xff]
    %v2403 = vld [vmem:[#allocation10 + $0x388] sm:$0xff]
    %v2404 = vld [vmem:[#allocation10 + $0x390] sm:$0xff]
    %v2405 = vld [vmem:[#allocation10 + $0x398] sm:$0xf]
    %v2406 = vld [vmem:[#allocation10 + $0x39c] sm:$0xff]
    %v2407 = vld [vmem:[#allocation10 + $0x3a4] sm:$0xff]
    %v2408 = vld [vmem:[#allocation10 + $0x3ac] sm:$0xff]
    %v2409 = vld [vmem:[#allocation10 + $0x3b4] sm:$0xf]
    %v2410 = vld [vmem:[#allocation10 + $0x3b8] sm:$0xff]
    %v2411 = vld [vmem:[#allocation10 + $0x3c0] sm:$0xff]
    %v2412 = vld [vmem:[#allocation10 + $0x3c8] sm:$0xff]
    %v2413 = vld [vmem:[#allocation10 + $0x3d0] sm:$0xf]
    %v2414 = vld [vmem:[#allocation10 + $0x3d4] sm:$0xff]
    %v2415 = vld [vmem:[#allocation10 + $0x3dc] sm:$0xff]
    %v2416 = vld [vmem:[#allocation10 + $0x3e4] sm:$0xff]
    %v2417 = vld [vmem:[#allocation10 + $0x3ec] sm:$0xf]
    %v2418 = vld [vmem:[#allocation10 + $0x3f0] sm:$0xff]
    %v2419 = vld [vmem:[#allocation10 + $0x3f8] sm:$0xff]
    %v2420 = vld [vmem:[#allocation10 + $0x400] sm:$0xff]
    %v2421 = vld [vmem:[#allocation10 + $0x408] sm:$0xf]
    %v2422 = vld [vmem:[#allocation10 + $0x40c] sm:$0xff]
    %v2423 = vld [vmem:[#allocation10 + $0x414] sm:$0xff]
    %v2424 = vld [vmem:[#allocation10 + $0x41c] sm:$0xff]
    %v2425 = vld [vmem:[#allocation10 + $0x424] sm:$0xf]
    %v2426 = vld [vmem:[#allocation10 + $0x428] sm:$0xff]
    %v2427 = vld [vmem:[#allocation10 + $0x430] sm:$0xff]
    %v2428 = vld [vmem:[#allocation10 + $0x438] sm:$0xff]
    %v2429 = vld [vmem:[#allocation10 + $0x440] sm:$0xf]
    %v2430 = vld [vmem:[#allocation10 + $0x444] sm:$0xff]
    %v2431 = vld [vmem:[#allocation10 + $0x44c] sm:$0xff]
    %v2432 = vld [vmem:[#allocation10 + $0x454] sm:$0xff]
    %v2433 = vld [vmem:[#allocation10 + $0x45c] sm:$0xf]
    %v2434 = vld [vmem:[#allocation10 + $0x460] sm:$0xff]
    %v2435 = vld [vmem:[#allocation10 + $0x468] sm:$0xff]
    %v2436 = vld [vmem:[#allocation10 + $0x470] sm:$0xff]
    %v2437 = vld [vmem:[#allocation10 + $0x478] sm:$0xf]
    %v2438 = vld [vmem:[#allocation10 + $0x47c] sm:$0xff]
    %v2439 = vld [vmem:[#allocation10 + $0x484] sm:$0xff]
    %v2440 = vld [vmem:[#allocation10 + $0x48c] sm:$0xff]
    %v2441 = vld [vmem:[#allocation10 + $0x494] sm:$0xf]
    %v2442 = vld [vmem:[#allocation10 + $0x498] sm:$0xff]
    %v2443 = vld [vmem:[#allocation10 + $0x4a0] sm:$0xff]
    %v2444 = vld [vmem:[#allocation10 + $0x4a8] sm:$0xff]
    %v2445 = vld [vmem:[#allocation10 + $0x4b0] sm:$0xf]
    %v2446 = vld [vmem:[#allocation10 + $0x4b4] sm:$0xff]
    %v2447 = vld [vmem:[#allocation10 + $0x4bc] sm:$0xff]
    %v2448 = vld [vmem:[#allocation10 + $0x4c4] sm:$0xff]
    %v2449 = vld [vmem:[#allocation10 + $0x4cc] sm:$0xf]
    %v2450 = vld [vmem:[#allocation10 + $0x4d0] sm:$0xff]
    %v2451 = vld [vmem:[#allocation10 + $0x4d8] sm:$0xff]
    %v2452 = vld [vmem:[#allocation10 + $0x4e0] sm:$0xff]
    %v2453 = vld [vmem:[#allocation10 + $0x4e8] sm:$0xf]
    %v2454 = vld [vmem:[#allocation10 + $0x4ec] sm:$0xff]
    %v2455 = vld [vmem:[#allocation10 + $0x4f4] sm:$0xff]
    %v2456 = vld [vmem:[#allocation10 + $0x4fc] sm:$0xff]
    %v2457 = vld [vmem:[#allocation10 + $0x504] sm:$0xf]
    %v2458 = vld [vmem:[#allocation10 + $0x508] sm:$0xff]
    %v2459 = vld [vmem:[#allocation10 + $0x510] sm:$0xff]
    %v2460 = vld [vmem:[#allocation10 + $0x518] sm:$0xff]
    %v2461 = vld [vmem:[#allocation10 + $0x520] sm:$0xf]
    %v2462 = vld [vmem:[#allocation10 + $0x524] sm:$0xff]
    %v2463 = vld [vmem:[#allocation10 + $0x52c] sm:$0xff]
    %v2464 = vld [vmem:[#allocation10 + $0x534] sm:$0xff]
    %v2465 = vld [vmem:[#allocation10 + $0x53c] sm:$0xf]
    %v2466 = vld [vmem:[#allocation10 + $0x540] sm:$0xff]
    %v2467 = vld [vmem:[#allocation10 + $0x548] sm:$0xff]
    %v2468 = vld [vmem:[#allocation10 + $0x550] sm:$0xff]
    %v2469 = vld [vmem:[#allocation10 + $0x558] sm:$0xf]
    %v2470 = vld [vmem:[#allocation10 + $0x55c] sm:$0xff]
    %v2471 = vld [vmem:[#allocation10 + $0x564] sm:$0xff]
    %v2472 = vld [vmem:[#allocation10 + $0x56c] sm:$0xff]
    %v2473 = vld [vmem:[#allocation10 + $0x574] sm:$0xf]
    %v2474 = vld [vmem:[#allocation10 + $0x578] sm:$0xff]
    %v2475 = vld [vmem:[#allocation10 + $0x580] sm:$0xff]
    %v2476 = vld [vmem:[#allocation10 + $0x588] sm:$0xff]
    %v2477 = vld [vmem:[#allocation10 + $0x590] sm:$0xf]
    %v2478 = vld [vmem:[#allocation10 + $0x594] sm:$0xff]
    %v2479 = vld [vmem:[#allocation10 + $0x59c] sm:$0xff]
    %v2480 = vld [vmem:[#allocation10 + $0x5a4] sm:$0xff]
    %v2481 = vld [vmem:[#allocation10 + $0x5ac] sm:$0xf]
    %v2482 = vld [vmem:[#allocation10 + $0x5b0] sm:$0xff]
    %v2483 = vld [vmem:[#allocation10 + $0x5b8] sm:$0xff]
    %v2484 = vld [vmem:[#allocation10 + $0x5c0] sm:$0xff]
    %v2485 = vld [vmem:[#allocation10 + $0x5c8] sm:$0xf]
    %v2486 = vld [vmem:[#allocation10 + $0x5cc] sm:$0xff]
    %v2487 = vld [vmem:[#allocation10 + $0x5d4] sm:$0xff]
    %v2488 = vld [vmem:[#allocation10 + $0x5dc] sm:$0xff]
    %v2489 = vld [vmem:[#allocation10 + $0x5e4] sm:$0xf]
    %v2490 = vld [vmem:[#allocation10 + $0x5e8] sm:$0xff]
    %v2491 = vld [vmem:[#allocation10 + $0x5f0] sm:$0xff]
    %v2492 = vld [vmem:[#allocation10 + $0x5f8] sm:$0xff]
    %v2493 = vld [vmem:[#allocation10 + $0x600] sm:$0xf]
    %v2494 = vld [vmem:[#allocation10 + $0x604] sm:$0xff]
    %v2495 = vld [vmem:[#allocation10 + $0x60c] sm:$0xff]
    %v2496 = vld [vmem:[#allocation10 + $0x614] sm:$0xff]
    %v2497 = vld [vmem:[#allocation10 + $0x61c] sm:$0xf]
    %v2498 = vld [vmem:[#allocation10 + $0x620] sm:$0xff]
    %v2499 = vld [vmem:[#allocation10 + $0x628] sm:$0xff]
    %v2500 = vld [vmem:[#allocation10 + $0x630] sm:$0xff]
    %v2501 = vld [vmem:[#allocation10 + $0x638] sm:$0xf]
    %v2502 = vld [vmem:[#allocation10 + $0x63c] sm:$0xff]
    %v2503 = vld [vmem:[#allocation10 + $0x644] sm:$0xff]
    %v2504 = vld [vmem:[#allocation10 + $0x64c] sm:$0xff]
    %v2505 = vld [vmem:[#allocation10 + $0x654] sm:$0xf]
    %v2506 = vld [vmem:[#allocation10 + $0x658] sm:$0xff]
    %v2507 = vld [vmem:[#allocation10 + $0x660] sm:$0xff]
    %v2508 = vld [vmem:[#allocation10 + $0x668] sm:$0xff]
    %v2509 = vld [vmem:[#allocation10 + $0x670] sm:$0xf]
    %v2510 = vld [vmem:[#allocation10 + $0x674] sm:$0xff]
    %v2511 = vld [vmem:[#allocation10 + $0x67c] sm:$0xff]
    %v2512 = vld [vmem:[#allocation10 + $0x684] sm:$0xff]
    %v2513 = vld [vmem:[#allocation10 + $0x68c] sm:$0xf]
    %v2514 = vld [vmem:[#allocation10 + $0x690] sm:$0xff]
    %v2515 = vld [vmem:[#allocation10 + $0x698] sm:$0xff]
    %v2516 = vld [vmem:[#allocation10 + $0x6a0] sm:$0xff]
    %v2517 = vld [vmem:[#allocation10 + $0x6a8] sm:$0xf]
    %v2518 = vld [vmem:[#allocation10 + $0x6ac] sm:$0xff]
    %v2519 = vld [vmem:[#allocation10 + $0x6b4] sm:$0xff]
    %v2520 = vld [vmem:[#allocation10 + $0x6bc] sm:$0xff]
    %v2521 = vld [vmem:[#allocation10 + $0x6c4] sm:$0xf]
    %v2522 = vld [vmem:[#allocation10 + $0x6c8] sm:$0xff]
    %v2523 = vld [vmem:[#allocation10 + $0x6d0] sm:$0xff]
    %v2524 = vld [vmem:[#allocation10 + $0x6d8] sm:$0xff]
    %v2525 = vld [vmem:[#allocation10 + $0x6e0] sm:$0xf]
    %v2526 = vld [vmem:[#allocation10 + $0x6e4] sm:$0xff]
    %v2527 = vld [vmem:[#allocation10 + $0x6ec] sm:$0xff]
    %v2528 = vld [vmem:[#allocation10 + $0x6f4] sm:$0xff]
    %v2529 = vld [vmem:[#allocation10 + $0x6fc] sm:$0xf]
    %v2530 = vld [vmem:[%s8] sm:$0xff]
    %v2532 = vlaneseq
    %v2533 = vshrl.u32 %v2532, 7
    %v2534 = vsub.s32 0, %v2533
    %v2535 = vrot.slane %v2530, %v2534
    %v2536 = vlaneseq
    %v2537 = vshrl.u32 %v2536, 7
    %v2538 = vsub.s32 1, %v2537
    %v2539 = vrot.slane %v2530, %v2538
    %v2540 = vlaneseq
    %v2541 = vshrl.u32 %v2540, 7
    %v2542 = vsub.s32 2, %v2541
    %v2543 = vrot.slane %v2530, %v2542
    %v2544 = vlaneseq
    %v2545 = vshrl.u32 %v2544, 7
    %v2546 = vsub.s32 3, %v2545
    %v2547 = vrot.slane %v2530, %v2546
    %v2548 = vlaneseq
    %v2549 = vshrl.u32 %v2548, 7
    %v2550 = vsub.s32 4, %v2549
    %v2551 = vrot.slane %v2530, %v2550
    %v2552 = vlaneseq
    %v2553 = vshrl.u32 %v2552, 7
    %v2554 = vsub.s32 5, %v2553
    %v2555 = vrot.slane %v2530, %v2554
    %v2556 = vlaneseq
    %v2557 = vshrl.u32 %v2556, 7
    %v2558 = vsub.s32 6, %v2557
    %v2559 = vrot.slane %v2530, %v2558
    %v2823 = vunpack.c.l.b16 %v2274
    %v2824 = vunpack.c.h.b16 %v2274
    %v2825 = vunpack.c.l.b16 %v2275
    %v2826 = vunpack.c.h.b16 %v2275
    %v2827 = vunpack.c.l.b16 %v2276
    %v2828 = vunpack.c.h.b16 %v2276
    %v2829 = vunpack.c.l.b16 %v2277
    %v2830 = vunpack.c.l.b16 %v2278
    %v2831 = vunpack.c.h.b16 %v2278
    %v2832 = vunpack.c.l.b16 %v2279
    %v2833 = vunpack.c.h.b16 %v2279
    %v2834 = vunpack.c.l.b16 %v2280
    %v2835 = vunpack.c.h.b16 %v2280
    %v2836 = vunpack.c.l.b16 %v2281
    %v2837 = vunpack.c.l.b16 %v2282
    %v2838 = vunpack.c.h.b16 %v2282
    %v2839 = vunpack.c.l.b16 %v2283
    %v2840 = vunpack.c.h.b16 %v2283
    %v2841 = vunpack.c.l.b16 %v2284
    %v2842 = vunpack.c.h.b16 %v2284
    %v2843 = vunpack.c.l.b16 %v2285
    %v2844 = vunpack.c.l.b16 %v2286
    %v2845 = vunpack.c.h.b16 %v2286
    %v2846 = vunpack.c.l.b16 %v2287
    %v2847 = vunpack.c.h.b16 %v2287
    %v2848 = vunpack.c.l.b16 %v2288
    %v2849 = vunpack.c.h.b16 %v2288
    %v2850 = vunpack.c.l.b16 %v2289
    %v2851 = vunpack.c.l.b16 %v2290
    %v2852 = vunpack.c.h.b16 %v2290
    %v2853 = vunpack.c.l.b16 %v2291
    %v2854 = vunpack.c.h.b16 %v2291
    %v2855 = vunpack.c.l.b16 %v2292
    %v2856 = vunpack.c.h.b16 %v2292
    %v2857 = vunpack.c.l.b16 %v2293
    %v2858 = vunpack.c.l.b16 %v2294
    %v2859 = vunpack.c.h.b16 %v2294
    %v2860 = vunpack.c.l.b16 %v2295
    %v2861 = vunpack.c.h.b16 %v2295
    %v2862 = vunpack.c.l.b16 %v2296
    %v2863 = vunpack.c.h.b16 %v2296
    %v2864 = vunpack.c.l.b16 %v2297
    %v2865 = vunpack.c.l.b16 %v2298
    %v2866 = vunpack.c.h.b16 %v2298
    %v2867 = vunpack.c.l.b16 %v2299
    %v2868 = vunpack.c.h.b16 %v2299
    %v2869 = vunpack.c.l.b16 %v2300
    %v2870 = vunpack.c.h.b16 %v2300
    %v2871 = vunpack.c.l.b16 %v2301
    %v2872 = vunpack.c.l.b16 %v2302
    %v2873 = vunpack.c.h.b16 %v2302
    %v2874 = vunpack.c.l.b16 %v2303
    %v2875 = vunpack.c.h.b16 %v2303
    %v2876 = vunpack.c.l.b16 %v2304
    %v2877 = vunpack.c.h.b16 %v2304
    %v2878 = vunpack.c.l.b16 %v2305
    %v2879 = vunpack.c.l.b16 %v2306
    %v2880 = vunpack.c.h.b16 %v2306
    %v2881 = vunpack.c.l.b16 %v2307
    %v2882 = vunpack.c.h.b16 %v2307
    %v2883 = vunpack.c.l.b16 %v2308
    %v2884 = vunpack.c.h.b16 %v2308
    %v2885 = vunpack.c.l.b16 %v2309
    %v2886 = vunpack.c.l.b16 %v2310
    %v2887 = vunpack.c.h.b16 %v2310
    %v2888 = vunpack.c.l.b16 %v2311
    %v2889 = vunpack.c.h.b16 %v2311
    %v2890 = vunpack.c.l.b16 %v2312
    %v2891 = vunpack.c.h.b16 %v2312
    %v2892 = vunpack.c.l.b16 %v2313
    %v2893 = vunpack.c.l.b16 %v2314
    %v2894 = vunpack.c.h.b16 %v2314
    %v2895 = vunpack.c.l.b16 %v2315
    %v2896 = vunpack.c.h.b16 %v2315
    %v2897 = vunpack.c.l.b16 %v2316
    %v2898 = vunpack.c.h.b16 %v2316
    %v2899 = vunpack.c.l.b16 %v2317
    %v2900 = vunpack.c.l.b16 %v2318
    %v2901 = vunpack.c.h.b16 %v2318
    %v2902 = vunpack.c.l.b16 %v2319
    %v2903 = vunpack.c.h.b16 %v2319
    %v2904 = vunpack.c.l.b16 %v2320
    %v2905 = vunpack.c.h.b16 %v2320
    %v2906 = vunpack.c.l.b16 %v2321
    %v2907 = vunpack.c.l.b16 %v2322
    %v2908 = vunpack.c.h.b16 %v2322
    %v2909 = vunpack.c.l.b16 %v2323
    %v2910 = vunpack.c.h.b16 %v2323
    %v2911 = vunpack.c.l.b16 %v2324
    %v2912 = vunpack.c.h.b16 %v2324
    %v2913 = vunpack.c.l.b16 %v2325
    %v2914 = vunpack.c.l.b16 %v2326
    %v2915 = vunpack.c.h.b16 %v2326
    %v2916 = vunpack.c.l.b16 %v2327
    %v2917 = vunpack.c.h.b16 %v2327
    %v2918 = vunpack.c.l.b16 %v2328
    %v2919 = vunpack.c.h.b16 %v2328
    %v2920 = vunpack.c.l.b16 %v2329
    %v2921 = vunpack.c.l.b16 %v2330
    %v2922 = vunpack.c.h.b16 %v2330
    %v2923 = vunpack.c.l.b16 %v2331
    %v2924 = vunpack.c.h.b16 %v2331
    %v2925 = vunpack.c.l.b16 %v2332
    %v2926 = vunpack.c.h.b16 %v2332
    %v2927 = vunpack.c.l.b16 %v2333
    %v2928 = vunpack.c.l.b16 %v2334
    %v2929 = vunpack.c.h.b16 %v2334
    %v2930 = vunpack.c.l.b16 %v2335
    %v2931 = vunpack.c.h.b16 %v2335
    %v2932 = vunpack.c.l.b16 %v2336
    %v2933 = vunpack.c.h.b16 %v2336
    %v2934 = vunpack.c.l.b16 %v2337
    %v2935 = vunpack.c.l.b16 %v2338
    %v2936 = vunpack.c.h.b16 %v2338
    %v2937 = vunpack.c.l.b16 %v2339
    %v2938 = vunpack.c.h.b16 %v2339
    %v2939 = vunpack.c.l.b16 %v2340
    %v2940 = vunpack.c.h.b16 %v2340
    %v2941 = vunpack.c.l.b16 %v2341
    %v2942 = vunpack.c.l.b16 %v2342
    %v2943 = vunpack.c.h.b16 %v2342
    %v2944 = vunpack.c.l.b16 %v2343
    %v2945 = vunpack.c.h.b16 %v2343
    %v2946 = vunpack.c.l.b16 %v2344
    %v2947 = vunpack.c.h.b16 %v2344
    %v2948 = vunpack.c.l.b16 %v2345
    %v2949 = vunpack.c.l.b16 %v2346
    %v2950 = vunpack.c.h.b16 %v2346
    %v2951 = vunpack.c.l.b16 %v2347
    %v2952 = vunpack.c.h.b16 %v2347
    %v2953 = vunpack.c.l.b16 %v2348
    %v2954 = vunpack.c.h.b16 %v2348
    %v2955 = vunpack.c.l.b16 %v2349
    %v2956 = vunpack.c.l.b16 %v2350
    %v2957 = vunpack.c.h.b16 %v2350
    %v2958 = vunpack.c.l.b16 %v2351
    %v2959 = vunpack.c.h.b16 %v2351
    %v2960 = vunpack.c.l.b16 %v2352
    %v2961 = vunpack.c.h.b16 %v2352
    %v2962 = vunpack.c.l.b16 %v2353
    %v2963 = vunpack.c.l.b16 %v2354
    %v2964 = vunpack.c.h.b16 %v2354
    %v2965 = vunpack.c.l.b16 %v2355
    %v2966 = vunpack.c.h.b16 %v2355
    %v2967 = vunpack.c.l.b16 %v2356
    %v2968 = vunpack.c.h.b16 %v2356
    %v2969 = vunpack.c.l.b16 %v2357
    %v2970 = vunpack.c.l.b16 %v2358
    %v2971 = vunpack.c.h.b16 %v2358
    %v2972 = vunpack.c.l.b16 %v2359
    %v2973 = vunpack.c.h.b16 %v2359
    %v2974 = vunpack.c.l.b16 %v2360
    %v2975 = vunpack.c.h.b16 %v2360
    %v2976 = vunpack.c.l.b16 %v2361
    %v2977 = vunpack.c.l.b16 %v2362
    %v2978 = vunpack.c.h.b16 %v2362
    %v2979 = vunpack.c.l.b16 %v2363
    %v2980 = vunpack.c.h.b16 %v2363
    %v2981 = vunpack.c.l.b16 %v2364
    %v2982 = vunpack.c.h.b16 %v2364
    %v2983 = vunpack.c.l.b16 %v2365
    %v2984 = vunpack.c.l.b16 %v2366
    %v2985 = vunpack.c.h.b16 %v2366
    %v2986 = vunpack.c.l.b16 %v2367
    %v2987 = vunpack.c.h.b16 %v2367
    %v2988 = vunpack.c.l.b16 %v2368
    %v2989 = vunpack.c.h.b16 %v2368
    %v2990 = vunpack.c.l.b16 %v2369
    %v2991 = vunpack.c.l.b16 %v2370
    %v2992 = vunpack.c.h.b16 %v2370
    %v2993 = vunpack.c.l.b16 %v2371
    %v2994 = vunpack.c.h.b16 %v2371
    %v2995 = vunpack.c.l.b16 %v2372
    %v2996 = vunpack.c.h.b16 %v2372
    %v2997 = vunpack.c.l.b16 %v2373
    %v2998 = vunpack.c.l.b16 %v2374
    %v2999 = vunpack.c.h.b16 %v2374
    %v3000 = vunpack.c.l.b16 %v2375
    %v3001 = vunpack.c.h.b16 %v2375
    %v3002 = vunpack.c.l.b16 %v2376
    %v3003 = vunpack.c.h.b16 %v2376
    %v3004 = vunpack.c.l.b16 %v2377
    %v3005 = vunpack.c.l.b16 %v2378
    %v3006 = vunpack.c.h.b16 %v2378
    %v3007 = vunpack.c.l.b16 %v2379
    %v3008 = vunpack.c.h.b16 %v2379
    %v3009 = vunpack.c.l.b16 %v2380
    %v3010 = vunpack.c.h.b16 %v2380
    %v3011 = vunpack.c.l.b16 %v2381
    %v3012 = vunpack.c.l.b16 %v2382
    %v3013 = vunpack.c.h.b16 %v2382
    %v3014 = vunpack.c.l.b16 %v2383
    %v3015 = vunpack.c.h.b16 %v2383
    %v3016 = vunpack.c.l.b16 %v2384
    %v3017 = vunpack.c.h.b16 %v2384
    %v3018 = vunpack.c.l.b16 %v2385
    %v3019 = vunpack.c.l.b16 %v2386
    %v3020 = vunpack.c.h.b16 %v2386
    %v3021 = vunpack.c.l.b16 %v2387
    %v3022 = vunpack.c.h.b16 %v2387
    %v3023 = vunpack.c.l.b16 %v2388
    %v3024 = vunpack.c.h.b16 %v2388
    %v3025 = vunpack.c.l.b16 %v2389
    %v3026 = vunpack.c.l.b16 %v2390
    %v3027 = vunpack.c.h.b16 %v2390
    %v3028 = vunpack.c.l.b16 %v2391
    %v3029 = vunpack.c.h.b16 %v2391
    %v3030 = vunpack.c.l.b16 %v2392
    %v3031 = vunpack.c.h.b16 %v2392
    %v3032 = vunpack.c.l.b16 %v2393
    %v3033 = vunpack.c.l.b16 %v2394
    %v3034 = vunpack.c.h.b16 %v2394
    %v3035 = vunpack.c.l.b16 %v2395
    %v3036 = vunpack.c.h.b16 %v2395
    %v3037 = vunpack.c.l.b16 %v2396
    %v3038 = vunpack.c.h.b16 %v2396
    %v3039 = vunpack.c.l.b16 %v2397
    %v3040 = vunpack.c.l.b16 %v2398
    %v3041 = vunpack.c.h.b16 %v2398
    %v3042 = vunpack.c.l.b16 %v2399
    %v3043 = vunpack.c.h.b16 %v2399
    %v3044 = vunpack.c.l.b16 %v2400
    %v3045 = vunpack.c.h.b16 %v2400
    %v3046 = vunpack.c.l.b16 %v2401
    %v3047 = vunpack.c.l.b16 %v2402
    %v3048 = vunpack.c.h.b16 %v2402
    %v3049 = vunpack.c.l.b16 %v2403
    %v3050 = vunpack.c.h.b16 %v2403
    %v3051 = vunpack.c.l.b16 %v2404
    %v3052 = vunpack.c.h.b16 %v2404
    %v3053 = vunpack.c.l.b16 %v2405
    %v3054 = vunpack.c.l.b16 %v2406
    %v3055 = vunpack.c.h.b16 %v2406
    %v3056 = vunpack.c.l.b16 %v2407
    %v3057 = vunpack.c.h.b16 %v2407
    %v3058 = vunpack.c.l.b16 %v2408
    %v3059 = vunpack.c.h.b16 %v2408
    %v3060 = vunpack.c.l.b16 %v2409
    %v3061 = vunpack.c.l.b16 %v2410
    %v3062 = vunpack.c.h.b16 %v2410
    %v3063 = vunpack.c.l.b16 %v2411
    %v3064 = vunpack.c.h.b16 %v2411
    %v3065 = vunpack.c.l.b16 %v2412
    %v3066 = vunpack.c.h.b16 %v2412
    %v3067 = vunpack.c.l.b16 %v2413
    %v3068 = vunpack.c.l.b16 %v2414
    %v3069 = vunpack.c.h.b16 %v2414
    %v3070 = vunpack.c.l.b16 %v2415
    %v3071 = vunpack.c.h.b16 %v2415
    %v3072 = vunpack.c.l.b16 %v2416
    %v3073 = vunpack.c.h.b16 %v2416
    %v3074 = vunpack.c.l.b16 %v2417
    %v3075 = vunpack.c.l.b16 %v2418
    %v3076 = vunpack.c.h.b16 %v2418
    %v3077 = vunpack.c.l.b16 %v2419
    %v3078 = vunpack.c.h.b16 %v2419
    %v3079 = vunpack.c.l.b16 %v2420
    %v3080 = vunpack.c.h.b16 %v2420
    %v3081 = vunpack.c.l.b16 %v2421
    %v3082 = vunpack.c.l.b16 %v2422
    %v3083 = vunpack.c.h.b16 %v2422
    %v3084 = vunpack.c.l.b16 %v2423
    %v3085 = vunpack.c.h.b16 %v2423
    %v3086 = vunpack.c.l.b16 %v2424
    %v3087 = vunpack.c.h.b16 %v2424
    %v3088 = vunpack.c.l.b16 %v2425
    %v3089 = vunpack.c.l.b16 %v2426
    %v3090 = vunpack.c.h.b16 %v2426
    %v3091 = vunpack.c.l.b16 %v2427
    %v3092 = vunpack.c.h.b16 %v2427
    %v3093 = vunpack.c.l.b16 %v2428
    %v3094 = vunpack.c.h.b16 %v2428
    %v3095 = vunpack.c.l.b16 %v2429
    %v3096 = vunpack.c.l.b16 %v2430
    %v3097 = vunpack.c.h.b16 %v2430
    %v3098 = vunpack.c.l.b16 %v2431
    %v3099 = vunpack.c.h.b16 %v2431
    %v3100 = vunpack.c.l.b16 %v2432
    %v3101 = vunpack.c.h.b16 %v2432
    %v3102 = vunpack.c.l.b16 %v2433
    %v3103 = vunpack.c.l.b16 %v2434
    %v3104 = vunpack.c.h.b16 %v2434
    %v3105 = vunpack.c.l.b16 %v2435
    %v3106 = vunpack.c.h.b16 %v2435
    %v3107 = vunpack.c.l.b16 %v2436
    %v3108 = vunpack.c.h.b16 %v2436
    %v3109 = vunpack.c.l.b16 %v2437
    %v3110 = vunpack.c.l.b16 %v2438
    %v3111 = vunpack.c.h.b16 %v2438
    %v3112 = vunpack.c.l.b16 %v2439
    %v3113 = vunpack.c.h.b16 %v2439
    %v3114 = vunpack.c.l.b16 %v2440
    %v3115 = vunpack.c.h.b16 %v2440
    %v3116 = vunpack.c.l.b16 %v2441
    %v3117 = vunpack.c.l.b16 %v2442
    %v3118 = vunpack.c.h.b16 %v2442
    %v3119 = vunpack.c.l.b16 %v2443
    %v3120 = vunpack.c.h.b16 %v2443
    %v3121 = vunpack.c.l.b16 %v2444
    %v3122 = vunpack.c.h.b16 %v2444
    %v3123 = vunpack.c.l.b16 %v2445
    %v3124 = vunpack.c.l.b16 %v2446
    %v3125 = vunpack.c.h.b16 %v2446
    %v3126 = vunpack.c.l.b16 %v2447
    %v3127 = vunpack.c.h.b16 %v2447
    %v3128 = vunpack.c.l.b16 %v2448
    %v3129 = vunpack.c.h.b16 %v2448
    %v3130 = vunpack.c.l.b16 %v2449
    %v3131 = vunpack.c.l.b16 %v2450
    %v3132 = vunpack.c.h.b16 %v2450
    %v3133 = vunpack.c.l.b16 %v2451
    %v3134 = vunpack.c.h.b16 %v2451
    %v3135 = vunpack.c.l.b16 %v2452
    %v3136 = vunpack.c.h.b16 %v2452
    %v3137 = vunpack.c.l.b16 %v2453
    %v3138 = vunpack.c.l.b16 %v2454
    %v3139 = vunpack.c.h.b16 %v2454
    %v3140 = vunpack.c.l.b16 %v2455
    %v3141 = vunpack.c.h.b16 %v2455
    %v3142 = vunpack.c.l.b16 %v2456
    %v3143 = vunpack.c.h.b16 %v2456
    %v3144 = vunpack.c.l.b16 %v2457
    %v3145 = vunpack.c.l.b16 %v2458
    %v3146 = vunpack.c.h.b16 %v2458
    %v3147 = vunpack.c.l.b16 %v2459
    %v3148 = vunpack.c.h.b16 %v2459
    %v3149 = vunpack.c.l.b16 %v2460
    %v3150 = vunpack.c.h.b16 %v2460
    %v3151 = vunpack.c.l.b16 %v2461
    %v3152 = vunpack.c.l.b16 %v2462
    %v3153 = vunpack.c.h.b16 %v2462
    %v3154 = vunpack.c.l.b16 %v2463
    %v3155 = vunpack.c.h.b16 %v2463
    %v3156 = vunpack.c.l.b16 %v2464
    %v3157 = vunpack.c.h.b16 %v2464
    %v3158 = vunpack.c.l.b16 %v2465
    %v3159 = vunpack.c.l.b16 %v2466
    %v3160 = vunpack.c.h.b16 %v2466
    %v3161 = vunpack.c.l.b16 %v2467
    %v3162 = vunpack.c.h.b16 %v2467
    %v3163 = vunpack.c.l.b16 %v2468
    %v3164 = vunpack.c.h.b16 %v2468
    %v3165 = vunpack.c.l.b16 %v2469
    %v3166 = vunpack.c.l.b16 %v2470
    %v3167 = vunpack.c.h.b16 %v2470
    %v3168 = vunpack.c.l.b16 %v2471
    %v3169 = vunpack.c.h.b16 %v2471
    %v3170 = vunpack.c.l.b16 %v2472
    %v3171 = vunpack.c.h.b16 %v2472
    %v3172 = vunpack.c.l.b16 %v2473
    %v3173 = vunpack.c.l.b16 %v2474
    %v3174 = vunpack.c.h.b16 %v2474
    %v3175 = vunpack.c.l.b16 %v2475
    %v3176 = vunpack.c.h.b16 %v2475
    %v3177 = vunpack.c.l.b16 %v2476
    %v3178 = vunpack.c.h.b16 %v2476
    %v3179 = vunpack.c.l.b16 %v2477
    %v3180 = vunpack.c.l.b16 %v2478
    %v3181 = vunpack.c.h.b16 %v2478
    %v3182 = vunpack.c.l.b16 %v2479
    %v3183 = vunpack.c.h.b16 %v2479
    %v3184 = vunpack.c.l.b16 %v2480
    %v3185 = vunpack.c.h.b16 %v2480
    %v3186 = vunpack.c.l.b16 %v2481
    %v3187 = vunpack.c.l.b16 %v2482
    %v3188 = vunpack.c.h.b16 %v2482
    %v3189 = vunpack.c.l.b16 %v2483
    %v3190 = vunpack.c.h.b16 %v2483
    %v3191 = vunpack.c.l.b16 %v2484
    %v3192 = vunpack.c.h.b16 %v2484
    %v3193 = vunpack.c.l.b16 %v2485
    %v3194 = vunpack.c.l.b16 %v2486
    %v3195 = vunpack.c.h.b16 %v2486
    %v3196 = vunpack.c.l.b16 %v2487
    %v3197 = vunpack.c.h.b16 %v2487
    %v3198 = vunpack.c.l.b16 %v2488
    %v3199 = vunpack.c.h.b16 %v2488
    %v3200 = vunpack.c.l.b16 %v2489
    %v3201 = vunpack.c.l.b16 %v2490
    %v3202 = vunpack.c.h.b16 %v2490
    %v3203 = vunpack.c.l.b16 %v2491
    %v3204 = vunpack.c.h.b16 %v2491
    %v3205 = vunpack.c.l.b16 %v2492
    %v3206 = vunpack.c.h.b16 %v2492
    %v3207 = vunpack.c.l.b16 %v2493
    %v3208 = vunpack.c.l.b16 %v2494
    %v3209 = vunpack.c.h.b16 %v2494
    %v3210 = vunpack.c.l.b16 %v2495
    %v3211 = vunpack.c.h.b16 %v2495
    %v3212 = vunpack.c.l.b16 %v2496
    %v3213 = vunpack.c.h.b16 %v2496
    %v3214 = vunpack.c.l.b16 %v2497
    %v3215 = vunpack.c.l.b16 %v2498
    %v3216 = vunpack.c.h.b16 %v2498
    %v3217 = vunpack.c.l.b16 %v2499
    %v3218 = vunpack.c.h.b16 %v2499
    %v3219 = vunpack.c.l.b16 %v2500
    %v3220 = vunpack.c.h.b16 %v2500
    %v3221 = vunpack.c.l.b16 %v2501
    %v3222 = vunpack.c.l.b16 %v2502
    %v3223 = vunpack.c.h.b16 %v2502
    %v3224 = vunpack.c.l.b16 %v2503
    %v3225 = vunpack.c.h.b16 %v2503
    %v3226 = vunpack.c.l.b16 %v2504
    %v3227 = vunpack.c.h.b16 %v2504
    %v3228 = vunpack.c.l.b16 %v2505
    %v3229 = vunpack.c.l.b16 %v2506
    %v3230 = vunpack.c.h.b16 %v2506
    %v3231 = vunpack.c.l.b16 %v2507
    %v3232 = vunpack.c.h.b16 %v2507
    %v3233 = vunpack.c.l.b16 %v2508
    %v3234 = vunpack.c.h.b16 %v2508
    %v3235 = vunpack.c.l.b16 %v2509
    %v3236 = vunpack.c.l.b16 %v2510
    %v3237 = vunpack.c.h.b16 %v2510
    %v3238 = vunpack.c.l.b16 %v2511
    %v3239 = vunpack.c.h.b16 %v2511
    %v3240 = vunpack.c.l.b16 %v2512
    %v3241 = vunpack.c.h.b16 %v2512
    %v3242 = vunpack.c.l.b16 %v2513
    %v3243 = vunpack.c.l.b16 %v2514
    %v3244 = vunpack.c.h.b16 %v2514
    %v3245 = vunpack.c.l.b16 %v2515
    %v3246 = vunpack.c.h.b16 %v2515
    %v3247 = vunpack.c.l.b16 %v2516
    %v3248 = vunpack.c.h.b16 %v2516
    %v3249 = vunpack.c.l.b16 %v2517
    %v3250 = vunpack.c.l.b16 %v2518
    %v3251 = vunpack.c.h.b16 %v2518
    %v3252 = vunpack.c.l.b16 %v2519
    %v3253 = vunpack.c.h.b16 %v2519
    %v3254 = vunpack.c.l.b16 %v2520
    %v3255 = vunpack.c.h.b16 %v2520
    %v3256 = vunpack.c.l.b16 %v2521
    %v3257 = vunpack.c.l.b16 %v2522
    %v3258 = vunpack.c.h.b16 %v2522
    %v3259 = vunpack.c.l.b16 %v2523
    %v3260 = vunpack.c.h.b16 %v2523
    %v3261 = vunpack.c.l.b16 %v2524
    %v3262 = vunpack.c.h.b16 %v2524
    %v3263 = vunpack.c.l.b16 %v2525
    %v3264 = vunpack.c.l.b16 %v2526
    %v3265 = vunpack.c.h.b16 %v2526
    %v3266 = vunpack.c.l.b16 %v2527
    %v3267 = vunpack.c.h.b16 %v2527
    %v3268 = vunpack.c.l.b16 %v2528
    %v3269 = vunpack.c.h.b16 %v2528
    %v3270 = vunpack.c.l.b16 %v2529
    %v3271 = vpack.c.b16 %v2830, %v2823
    %v3272 = vpack.c.b16 %v2831, %v2824
    %v3273 = vpack.c.b16 %v2832, %v2825
    %v3274 = vpack.c.b16 %v2833, %v2826
    %v3275 = vpack.c.b16 %v2834, %v2827
    %v3276 = vpack.c.b16 %v2835, %v2828
    %v3277 = vpack.c.b16 %v2836, %v2829
    %v3278 = vpack.c.b16 %v2844, %v2837
    %v3279 = vpack.c.b16 %v2845, %v2838
    %v3280 = vpack.c.b16 %v2846, %v2839
    %v3281 = vpack.c.b16 %v2847, %v2840
    %v3282 = vpack.c.b16 %v2848, %v2841
    %v3283 = vpack.c.b16 %v2849, %v2842
    %v3284 = vpack.c.b16 %v2850, %v2843
    %v3285 = vpack.c.b16 %v2858, %v2851
    %v3286 = vpack.c.b16 %v2859, %v2852
    %v3287 = vpack.c.b16 %v2860, %v2853
    %v3288 = vpack.c.b16 %v2861, %v2854
    %v3289 = vpack.c.b16 %v2862, %v2855
    %v3290 = vpack.c.b16 %v2863, %v2856
    %v3291 = vpack.c.b16 %v2864, %v2857
    %v3292 = vpack.c.b16 %v2872, %v2865
    %v3293 = vpack.c.b16 %v2873, %v2866
    %v3294 = vpack.c.b16 %v2874, %v2867
    %v3295 = vpack.c.b16 %v2875, %v2868
    %v3296 = vpack.c.b16 %v2876, %v2869
    %v3297 = vpack.c.b16 %v2877, %v2870
    %v3298 = vpack.c.b16 %v2878, %v2871
    %v3299 = vpack.c.b16 %v2886, %v2879
    %v3300 = vpack.c.b16 %v2887, %v2880
    %v3301 = vpack.c.b16 %v2888, %v2881
    %v3302 = vpack.c.b16 %v2889, %v2882
    %v3303 = vpack.c.b16 %v2890, %v2883
    %v3304 = vpack.c.b16 %v2891, %v2884
    %v3305 = vpack.c.b16 %v2892, %v2885
    %v3306 = vpack.c.b16 %v2900, %v2893
    %v3307 = vpack.c.b16 %v2901, %v2894
    %v3308 = vpack.c.b16 %v2902, %v2895
    %v3309 = vpack.c.b16 %v2903, %v2896
    %v3310 = vpack.c.b16 %v2904, %v2897
    %v3311 = vpack.c.b16 %v2905, %v2898
    %v3312 = vpack.c.b16 %v2906, %v2899
    %v3313 = vpack.c.b16 %v2914, %v2907
    %v3314 = vpack.c.b16 %v2915, %v2908
    %v3315 = vpack.c.b16 %v2916, %v2909
    %v3316 = vpack.c.b16 %v2917, %v2910
    %v3317 = vpack.c.b16 %v2918, %v2911
    %v3318 = vpack.c.b16 %v2919, %v2912
    %v3319 = vpack.c.b16 %v2920, %v2913
    %v3320 = vpack.c.b16 %v2928, %v2921
    %v3321 = vpack.c.b16 %v2929, %v2922
    %v3322 = vpack.c.b16 %v2930, %v2923
    %v3323 = vpack.c.b16 %v2931, %v2924
    %v3324 = vpack.c.b16 %v2932, %v2925
    %v3325 = vpack.c.b16 %v2933, %v2926
    %v3326 = vpack.c.b16 %v2934, %v2927
    %v3327 = vpack.c.b16 %v2942, %v2935
    %v3328 = vpack.c.b16 %v2943, %v2936
    %v3329 = vpack.c.b16 %v2944, %v2937
    %v3330 = vpack.c.b16 %v2945, %v2938
    %v3331 = vpack.c.b16 %v2946, %v2939
    %v3332 = vpack.c.b16 %v2947, %v2940
    %v3333 = vpack.c.b16 %v2948, %v2941
    %v3334 = vpack.c.b16 %v2956, %v2949
    %v3335 = vpack.c.b16 %v2957, %v2950
    %v3336 = vpack.c.b16 %v2958, %v2951
    %v3337 = vpack.c.b16 %v2959, %v2952
    %v3338 = vpack.c.b16 %v2960, %v2953
    %v3339 = vpack.c.b16 %v2961, %v2954
    %v3340 = vpack.c.b16 %v2962, %v2955
    %v3341 = vpack.c.b16 %v2970, %v2963
    %v3342 = vpack.c.b16 %v2971, %v2964
    %v3343 = vpack.c.b16 %v2972, %v2965
    %v3344 = vpack.c.b16 %v2973, %v2966
    %v3345 = vpack.c.b16 %v2974, %v2967
    %v3346 = vpack.c.b16 %v2975, %v2968
    %v3347 = vpack.c.b16 %v2976, %v2969
    %v3348 = vpack.c.b16 %v2984, %v2977
    %v3349 = vpack.c.b16 %v2985, %v2978
    %v3350 = vpack.c.b16 %v2986, %v2979
    %v3351 = vpack.c.b16 %v2987, %v2980
    %v3352 = vpack.c.b16 %v2988, %v2981
    %v3353 = vpack.c.b16 %v2989, %v2982
    %v3354 = vpack.c.b16 %v2990, %v2983
    %v3355 = vpack.c.b16 %v2998, %v2991
    %v3356 = vpack.c.b16 %v2999, %v2992
    %v3357 = vpack.c.b16 %v3000, %v2993
    %v3358 = vpack.c.b16 %v3001, %v2994
    %v3359 = vpack.c.b16 %v3002, %v2995
    %v3360 = vpack.c.b16 %v3003, %v2996
    %v3361 = vpack.c.b16 %v3004, %v2997
    %v3362 = vpack.c.b16 %v3012, %v3005
    %v3363 = vpack.c.b16 %v3013, %v3006
    %v3364 = vpack.c.b16 %v3014, %v3007
    %v3365 = vpack.c.b16 %v3015, %v3008
    %v3366 = vpack.c.b16 %v3016, %v3009
    %v3367 = vpack.c.b16 %v3017, %v3010
    %v3368 = vpack.c.b16 %v3018, %v3011
    %v3369 = vpack.c.b16 %v3026, %v3019
    %v3370 = vpack.c.b16 %v3027, %v3020
    %v3371 = vpack.c.b16 %v3028, %v3021
    %v3372 = vpack.c.b16 %v3029, %v3022
    %v3373 = vpack.c.b16 %v3030, %v3023
    %v3374 = vpack.c.b16 %v3031, %v3024
    %v3375 = vpack.c.b16 %v3032, %v3025
    %v3376 = vpack.c.b16 %v3040, %v3033
    %v3377 = vpack.c.b16 %v3041, %v3034
    %v3378 = vpack.c.b16 %v3042, %v3035
    %v3379 = vpack.c.b16 %v3043, %v3036
    %v3380 = vpack.c.b16 %v3044, %v3037
    %v3381 = vpack.c.b16 %v3045, %v3038
    %v3382 = vpack.c.b16 %v3046, %v3039
    %v3383 = vpack.c.b16 %v3054, %v3047
    %v3384 = vpack.c.b16 %v3055, %v3048
    %v3385 = vpack.c.b16 %v3056, %v3049
    %v3386 = vpack.c.b16 %v3057, %v3050
    %v3387 = vpack.c.b16 %v3058, %v3051
    %v3388 = vpack.c.b16 %v3059, %v3052
    %v3389 = vpack.c.b16 %v3060, %v3053
    %v3390 = vpack.c.b16 %v3068, %v3061
    %v3391 = vpack.c.b16 %v3069, %v3062
    %v3392 = vpack.c.b16 %v3070, %v3063
    %v3393 = vpack.c.b16 %v3071, %v3064
    %v3394 = vpack.c.b16 %v3072, %v3065
    %v3395 = vpack.c.b16 %v3073, %v3066
    %v3396 = vpack.c.b16 %v3074, %v3067
    %v3397 = vpack.c.b16 %v3082, %v3075
    %v3398 = vpack.c.b16 %v3083, %v3076
    %v3399 = vpack.c.b16 %v3084, %v3077
    %v3400 = vpack.c.b16 %v3085, %v3078
    %v3401 = vpack.c.b16 %v3086, %v3079
    %v3402 = vpack.c.b16 %v3087, %v3080
    %v3403 = vpack.c.b16 %v3088, %v3081
    %v3404 = vpack.c.b16 %v3096, %v3089
    %v3405 = vpack.c.b16 %v3097, %v3090
    %v3406 = vpack.c.b16 %v3098, %v3091
    %v3407 = vpack.c.b16 %v3099, %v3092
    %v3408 = vpack.c.b16 %v3100, %v3093
    %v3409 = vpack.c.b16 %v3101, %v3094
    %v3410 = vpack.c.b16 %v3102, %v3095
    %v3411 = vpack.c.b16 %v3110, %v3103
    %v3412 = vpack.c.b16 %v3111, %v3104
    %v3413 = vpack.c.b16 %v3112, %v3105
    %v3414 = vpack.c.b16 %v3113, %v3106
    %v3415 = vpack.c.b16 %v3114, %v3107
    %v3416 = vpack.c.b16 %v3115, %v3108
    %v3417 = vpack.c.b16 %v3116, %v3109
    %v3418 = vpack.c.b16 %v3124, %v3117
    %v3419 = vpack.c.b16 %v3125, %v3118
    %v3420 = vpack.c.b16 %v3126, %v3119
    %v3421 = vpack.c.b16 %v3127, %v3120
    %v3422 = vpack.c.b16 %v3128, %v3121
    %v3423 = vpack.c.b16 %v3129, %v3122
    %v3424 = vpack.c.b16 %v3130, %v3123
    %v3425 = vpack.c.b16 %v3138, %v3131
    %v3426 = vpack.c.b16 %v3139, %v3132
    %v3427 = vpack.c.b16 %v3140, %v3133
    %v3428 = vpack.c.b16 %v3141, %v3134
    %v3429 = vpack.c.b16 %v3142, %v3135
    %v3430 = vpack.c.b16 %v3143, %v3136
    %v3431 = vpack.c.b16 %v3144, %v3137
    %v3432 = vpack.c.b16 %v3152, %v3145
    %v3433 = vpack.c.b16 %v3153, %v3146
    %v3434 = vpack.c.b16 %v3154, %v3147
    %v3435 = vpack.c.b16 %v3155, %v3148
    %v3436 = vpack.c.b16 %v3156, %v3149
    %v3437 = vpack.c.b16 %v3157, %v3150
    %v3438 = vpack.c.b16 %v3158, %v3151
    %v3439 = vpack.c.b16 %v3166, %v3159
    %v3440 = vpack.c.b16 %v3167, %v3160
    %v3441 = vpack.c.b16 %v3168, %v3161
    %v3442 = vpack.c.b16 %v3169, %v3162
    %v3443 = vpack.c.b16 %v3170, %v3163
    %v3444 = vpack.c.b16 %v3171, %v3164
    %v3445 = vpack.c.b16 %v3172, %v3165
    %v3446 = vpack.c.b16 %v3180, %v3173
    %v3447 = vpack.c.b16 %v3181, %v3174
    %v3448 = vpack.c.b16 %v3182, %v3175
    %v3449 = vpack.c.b16 %v3183, %v3176
    %v3450 = vpack.c.b16 %v3184, %v3177
    %v3451 = vpack.c.b16 %v3185, %v3178
    %v3452 = vpack.c.b16 %v3186, %v3179
    %v3453 = vpack.c.b16 %v3194, %v3187
    %v3454 = vpack.c.b16 %v3195, %v3188
    %v3455 = vpack.c.b16 %v3196, %v3189
    %v3456 = vpack.c.b16 %v3197, %v3190
    %v3457 = vpack.c.b16 %v3198, %v3191
    %v3458 = vpack.c.b16 %v3199, %v3192
    %v3459 = vpack.c.b16 %v3200, %v3193
    %v3460 = vpack.c.b16 %v3208, %v3201
    %v3461 = vpack.c.b16 %v3209, %v3202
    %v3462 = vpack.c.b16 %v3210, %v3203
    %v3463 = vpack.c.b16 %v3211, %v3204
    %v3464 = vpack.c.b16 %v3212, %v3205
    %v3465 = vpack.c.b16 %v3213, %v3206
    %v3466 = vpack.c.b16 %v3214, %v3207
    %v3467 = vpack.c.b16 %v3222, %v3215
    %v3468 = vpack.c.b16 %v3223, %v3216
    %v3469 = vpack.c.b16 %v3224, %v3217
    %v3470 = vpack.c.b16 %v3225, %v3218
    %v3471 = vpack.c.b16 %v3226, %v3219
    %v3472 = vpack.c.b16 %v3227, %v3220
    %v3473 = vpack.c.b16 %v3228, %v3221
    %v3474 = vpack.c.b16 %v3236, %v3229
    %v3475 = vpack.c.b16 %v3237, %v3230
    %v3476 = vpack.c.b16 %v3238, %v3231
    %v3477 = vpack.c.b16 %v3239, %v3232
    %v3478 = vpack.c.b16 %v3240, %v3233
    %v3479 = vpack.c.b16 %v3241, %v3234
    %v3480 = vpack.c.b16 %v3242, %v3235
    %v3481 = vpack.c.b16 %v3250, %v3243
    %v3482 = vpack.c.b16 %v3251, %v3244
    %v3483 = vpack.c.b16 %v3252, %v3245
    %v3484 = vpack.c.b16 %v3253, %v3246
    %v3485 = vpack.c.b16 %v3254, %v3247
    %v3486 = vpack.c.b16 %v3255, %v3248
    %v3487 = vpack.c.b16 %v3256, %v3249
    %v3488 = vpack.c.b16 %v3264, %v3257
    %v3489 = vpack.c.b16 %v3265, %v3258
    %v3490 = vpack.c.b16 %v3266, %v3259
    %v3491 = vpack.c.b16 %v3267, %v3260
    %v3492 = vpack.c.b16 %v3268, %v3261
    %v3493 = vpack.c.b16 %v3269, %v3262
    %v3494 = vpack.c.b16 %v3270, %v3263
    %3719 = vmatprep.subr.bf16.mxu0 %v3272
    %3720 = vmatpush1.bf16.msra.mxu0 %v3271
    %3721 = vmatprep.subr.bf16.mxu0 %v3279
    %3722 = vmatpush1.bf16.msra.mxu0 %v3278
    %3723 = vmatprep.subr.bf16.mxu0 %v3286
    %3724 = vmatpush1.bf16.msra.mxu0 %v3285
    %3725 = vmatprep.subr.bf16.mxu0 %v3293
    %3726 = vmatpush1.bf16.msra.mxu0 %v3292
    %3727 = vmatprep.subr.bf16.mxu0 %v3300
    %3728 = vmatpush1.bf16.msra.mxu0 %v3299
    %3729 = vmatprep.subr.bf16.mxu0 %v3307
    %3730 = vmatpush1.bf16.msra.mxu0 %v3306
    %3731 = vmatprep.subr.bf16.mxu0 %v3314
    %3732 = vmatpush1.bf16.msra.mxu0 %v3313
    %3733 = vmatprep.subr.bf16.mxu0 %v3321
    %3734 = vmatpush1.bf16.msra.mxu0 %v3320
    %3735 = vmatprep.subr.bf16.mxu0 %v3328
    %3736 = vmatpush1.bf16.msra.mxu0 %v3327
    %3737 = vmatprep.subr.bf16.mxu0 %v3335
    %3738 = vmatpush1.bf16.msra.mxu0 %v3334
    %3739 = vmatprep.subr.bf16.mxu0 %v3342
    %3740 = vmatpush1.bf16.msra.mxu0 %v3341
    %3741 = vmatprep.subr.bf16.mxu0 %v3349
    %3742 = vmatpush1.bf16.msra.mxu0 %v3348
    %3743 = vmatprep.subr.bf16.mxu0 %v3356
    %3744 = vmatpush1.bf16.msra.mxu0 %v3355
    %3745 = vmatprep.subr.bf16.mxu0 %v3363
    %3746 = vmatpush1.bf16.msra.mxu0 %v3362
    %3747 = vmatprep.subr.bf16.mxu0 %v3370
    %3748 = vmatpush1.bf16.msra.mxu0 %v3369
    %3749 = vmatprep.subr.bf16.mxu0 %v3377
    %3750 = vmatpush1.bf16.msra.mxu0 %v3376
    %3751 = vmatprep.mubr.bf16.mxu0 %v2271
    %3752 = vmatmul.mubr.bf16.gmra.mrb[0].mxu0 %v2270
    %v3753 = vpop.f32.mrb[0].mxu0
    %v3754 = vadd.f32 %v2535, %v3753
    %v3755 = vpop.f32.mrb[0].mxu0
    %v3756 = vadd.f32 %v2539, %v3755
    %v3757 = vpop.f32.mrb[0].mxu0
    %v3758 = vpop.f32.mrb[0].mxu0
    %3759 = vdwg.mxu0
    %3760 = vmatprep.subr.bf16.mxu0 %v3384
    %3761 = vmatpush1.bf16.msra.mxu0 %v3383
    %3762 = vmatprep.subr.bf16.mxu0 %v3391
    %3763 = vmatpush1.bf16.msra.mxu0 %v3390
    %3764 = vmatprep.subr.bf16.mxu0 %v3398
    %3765 = vmatpush1.bf16.msra.mxu0 %v3397
    %3766 = vmatprep.subr.bf16.mxu0 %v3405
    %3767 = vmatpush1.bf16.msra.mxu0 %v3404
    %3768 = vmatprep.subr.bf16.mxu0 %v3412
    %3769 = vmatpush1.bf16.msra.mxu0 %v3411
    %3770 = vmatprep.subr.bf16.mxu0 %v3419
    %3771 = vmatpush1.bf16.msra.mxu0 %v3418
    %3772 = vmatprep.subr.bf16.mxu0 %v3426
    %3773 = vmatpush1.bf16.msra.mxu0 %v3425
    %3774 = vmatprep.subr.bf16.mxu0 %v3433
    %3775 = vmatpush1.bf16.msra.mxu0 %v3432
    %3776 = vmatprep.subr.bf16.mxu0 %v3440
    %3777 = vmatpush1.bf16.msra.mxu0 %v3439
    %3778 = vmatprep.subr.bf16.mxu0 %v3447
    %3779 = vmatpush1.bf16.msra.mxu0 %v3446
    %3780 = vmatprep.subr.bf16.mxu0 %v3454
    %3781 = vmatpush1.bf16.msra.mxu0 %v3453
    %3782 = vmatprep.subr.bf16.mxu0 %v3461
    %3783 = vmatpush1.bf16.msra.mxu0 %v3460
    %3784 = vmatprep.subr.bf16.mxu0 %v3468
    %3785 = vmatpush1.bf16.msra.mxu0 %v3467
    %3786 = vmatprep.subr.bf16.mxu0 %v3475
    %3787 = vmatpush1.bf16.msra.mxu0 %v3474
    %3788 = vmatprep.subr.bf16.mxu0 %v3482
    %3789 = vmatpush1.bf16.msra.mxu0 %v3481
    %3790 = vmatprep.subr.bf16.mxu0 %v3489
    %3791 = vmatpush1.bf16.msra.mxu0 %v3488
    %3792 = vmatprep.mubr.bf16.mxu0 %v2273
    %3793 = vmatmul.mubr.bf16.gmra.mrb[0].mxu0 %v2272
    %v3794 = vpop.f32.mrb[0].mxu0
    %v3795 = vadd.f32 %v3754, %v3794
    %v3796 = vpop.f32.mrb[0].mxu0
    %v3797 = vadd.f32 %v3756, %v3796
    %v3798 = vpop.f32.mrb[0].mxu0
    %v3799 = vpop.f32.mrb[0].mxu0
    %3800 = vdwg.mxu0
    %3801 = vmatprep.subr.bf16.mxu0 %v3274
    %3802 = vmatpush1.bf16.msra.mxu0 %v3273
    %3803 = vmatprep.subr.bf16.mxu0 %v3281
    %3804 = vmatpush1.bf16.msra.mxu0 %v3280
    %3805 = vmatprep.subr.bf16.mxu0 %v3288
    %3806 = vmatpush1.bf16.msra.mxu0 %v3287
    %3807 = vmatprep.subr.bf16.mxu0 %v3295
    %3808 = vmatpush1.bf16.msra.mxu0 %v3294
    %3809 = vmatprep.subr.bf16.mxu0 %v3302
    %3810 = vmatpush1.bf16.msra.mxu0 %v3301
    %3811 = vmatprep.subr.bf16.mxu0 %v3309
    %3812 = vmatpush1.bf16.msra.mxu0 %v3308
    %3813 = vmatprep.subr.bf16.mxu0 %v3316
    %3814 = vmatpush1.bf16.msra.mxu0 %v3315
    %3815 = vmatprep.subr.bf16.mxu0 %v3323
    %3816 = vmatpush1.bf16.msra.mxu0 %v3322
    %3817 = vmatprep.subr.bf16.mxu0 %v3330
    %3818 = vmatpush1.bf16.msra.mxu0 %v3329
    %3819 = vmatprep.subr.bf16.mxu0 %v3337
    %3820 = vmatpush1.bf16.msra.mxu0 %v3336
    %3821 = vmatprep.subr.bf16.mxu0 %v3344
    %3822 = vmatpush1.bf16.msra.mxu0 %v3343
    %3823 = vmatprep.subr.bf16.mxu0 %v3351
    %3824 = vmatpush1.bf16.msra.mxu0 %v3350
    %3825 = vmatprep.subr.bf16.mxu0 %v3358
    %3826 = vmatpush1.bf16.msra.mxu0 %v3357
    %3827 = vmatprep.subr.bf16.mxu0 %v3365
    %3828 = vmatpush1.bf16.msra.mxu0 %v3364
    %3829 = vmatprep.subr.bf16.mxu0 %v3372
    %3830 = vmatpush1.bf16.msra.mxu0 %v3371
    %3831 = vmatprep.subr.bf16.mxu0 %v3379
    %3832 = vmatpush1.bf16.msra.mxu0 %v3378
    %3833 = vmatprep.mubr.bf16.mxu0 %v2271
    %3834 = vmatmul.mubr.bf16.gmra.mrb[0].mxu0 %v2270
    %v3835 = vpop.f32.mrb[0].mxu0
    %v3836 = vadd.f32 %v2543, %v3835
    %v3837 = vpop.f32.mrb[0].mxu0
    %v3838 = vadd.f32 %v2547, %v3837
    %v3839 = vpop.f32.mrb[0].mxu0
    %v3840 = vpop.f32.mrb[0].mxu0
    %3841 = vdwg.mxu0
    %3842 = vmatprep.subr.bf16.mxu0 %v3386
    %3843 = vmatpush1.bf16.msra.mxu0 %v3385
    %3844 = vmatprep.subr.bf16.mxu0 %v3393
    %3845 = vmatpush1.bf16.msra.mxu0 %v3392
    %3846 = vmatprep.subr.bf16.mxu0 %v3400
    %3847 = vmatpush1.bf16.msra.mxu0 %v3399
    %3848 = vmatprep.subr.bf16.mxu0 %v3407
    %3849 = vmatpush1.bf16.msra.mxu0 %v3406
    %3850 = vmatprep.subr.bf16.mxu0 %v3414
    %3851 = vmatpush1.bf16.msra.mxu0 %v3413
    %3852 = vmatprep.subr.bf16.mxu0 %v3421
    %3853 = vmatpush1.bf16.msra.mxu0 %v3420
    %3854 = vmatprep.subr.bf16.mxu0 %v3428
    %3855 = vmatpush1.bf16.msra.mxu0 %v3427
    %3856 = vmatprep.subr.bf16.mxu0 %v3435
    %3857 = vmatpush1.bf16.msra.mxu0 %v3434
    %3858 = vmatprep.subr.bf16.mxu0 %v3442
    %3859 = vmatpush1.bf16.msra.mxu0 %v3441
    %3860 = vmatprep.subr.bf16.mxu0 %v3449
    %3861 = vmatpush1.bf16.msra.mxu0 %v3448
    %3862 = vmatprep.subr.bf16.mxu0 %v3456
    %3863 = vmatpush1.bf16.msra.mxu0 %v3455
    %3864 = vmatprep.subr.bf16.mxu0 %v3463
    %3865 = vmatpush1.bf16.msra.mxu0 %v3462
    %3866 = vmatprep.subr.bf16.mxu0 %v3470
    %3867 = vmatpush1.bf16.msra.mxu0 %v3469
    %3868 = vmatprep.subr.bf16.mxu0 %v3477
    %3869 = vmatpush1.bf16.msra.mxu0 %v3476
    %3870 = vmatprep.subr.bf16.mxu0 %v3484
    %3871 = vmatpush1.bf16.msra.mxu0 %v3483
    %3872 = vmatprep.subr.bf16.mxu0 %v3491
    %3873 = vmatpush1.bf16.msra.mxu0 %v3490
    %3874 = vmatprep.mubr.bf16.mxu0 %v2273
    %3875 = vmatmul.mubr.bf16.gmra.mrb[0].mxu0 %v2272
    %v3876 = vpop.f32.mrb[0].mxu0
    %v3877 = vadd.f32 %v3836, %v3876
    %v3878 = vpop.f32.mrb[0].mxu0
    %v3879 = vadd.f32 %v3838, %v3878
    %v3880 = vpop.f32.mrb[0].mxu0
    %v3881 = vpop.f32.mrb[0].mxu0
    %3882 = vdwg.mxu0
    %3883 = vmatprep.subr.bf16.mxu0 %v3276
    %3884 = vmatpush1.bf16.msra.mxu0 %v3275
    %3885 = vmatprep.subr.bf16.mxu0 %v3283
    %3886 = vmatpush1.bf16.msra.mxu0 %v3282
    %3887 = vmatprep.subr.bf16.mxu0 %v3290
    %3888 = vmatpush1.bf16.msra.mxu0 %v3289
    %3889 = vmatprep.subr.bf16.mxu0 %v3297
    %3890 = vmatpush1.bf16.msra.mxu0 %v3296
    %3891 = vmatprep.subr.bf16.mxu0 %v3304
    %3892 = vmatpush1.bf16.msra.mxu0 %v3303
    %3893 = vmatprep.subr.bf16.mxu0 %v3311
    %3894 = vmatpush1.bf16.msra.mxu0 %v3310
    %3895 = vmatprep.subr.bf16.mxu0 %v3318
    %3896 = vmatpush1.bf16.msra.mxu0 %v3317
    %3897 = vmatprep.subr.bf16.mxu0 %v3325
    %3898 = vmatpush1.bf16.msra.mxu0 %v3324
    %3899 = vmatprep.subr.bf16.mxu0 %v3332
    %3900 = vmatpush1.bf16.msra.mxu0 %v3331
    %3901 = vmatprep.subr.bf16.mxu0 %v3339
    %3902 = vmatpush1.bf16.msra.mxu0 %v3338
    %3903 = vmatprep.subr.bf16.mxu0 %v3346
    %3904 = vmatpush1.bf16.msra.mxu0 %v3345
    %3905 = vmatprep.subr.bf16.mxu0 %v3353
    %3906 = vmatpush1.bf16.msra.mxu0 %v3352
    %3907 = vmatprep.subr.bf16.mxu0 %v3360
    %3908 = vmatpush1.bf16.msra.mxu0 %v3359
    %3909 = vmatprep.subr.bf16.mxu0 %v3367
    %3910 = vmatpush1.bf16.msra.mxu0 %v3366
    %3911 = vmatprep.subr.bf16.mxu0 %v3374
    %3912 = vmatpush1.bf16.msra.mxu0 %v3373
    %3913 = vmatprep.subr.bf16.mxu0 %v3381
    %3914 = vmatpush1.bf16.msra.mxu0 %v3380
    %3915 = vmatprep.mubr.bf16.mxu0 %v2271
    %3916 = vmatmul.mubr.bf16.gmra.mrb[0].mxu0 %v2270
    %v3917 = vpop.f32.mrb[0].mxu0
    %v3918 = vadd.f32 %v2551, %v3917
    %v3919 = vpop.f32.mrb[0].mxu0
    %v3920 = vadd.f32 %v2555, %v3919
    %v3921 = vpop.f32.mrb[0].mxu0
    %v3922 = vpop.f32.mrb[0].mxu0
    %3923 = vdwg.mxu0
    %3924 = vmatprep.subr.bf16.mxu0 %v3388
    %3925 = vmatpush1.bf16.msra.mxu0 %v3387
    %3926 = vmatprep.subr.bf16.mxu0 %v3395
    %3927 = vmatpush1.bf16.msra.mxu0 %v3394
    %3928 = vmatprep.subr.bf16.mxu0 %v3402
    %3929 = vmatpush1.bf16.msra.mxu0 %v3401
    %3930 = vmatprep.subr.bf16.mxu0 %v3409
    %3931 = vmatpush1.bf16.msra.mxu0 %v3408
    %3932 = vmatprep.subr.bf16.mxu0 %v3416
    %3933 = vmatpush1.bf16.msra.mxu0 %v3415
    %3934 = vmatprep.subr.bf16.mxu0 %v3423
    %3935 = vmatpush1.bf16.msra.mxu0 %v3422
    %3936 = vmatprep.subr.bf16.mxu0 %v3430
    %3937 = vmatpush1.bf16.msra.mxu0 %v3429
    %3938 = vmatprep.subr.bf16.mxu0 %v3437
    %3939 = vmatpush1.bf16.msra.mxu0 %v3436
    %3940 = vmatprep.subr.bf16.mxu0 %v3444
    %3941 = vmatpush1.bf16.msra.mxu0 %v3443
    %3942 = vmatprep.subr.bf16.mxu0 %v3451
    %3943 = vmatpush1.bf16.msra.mxu0 %v3450
    %3944 = vmatprep.subr.bf16.mxu0 %v3458
    %3945 = vmatpush1.bf16.msra.mxu0 %v3457
    %3946 = vmatprep.subr.bf16.mxu0 %v3465
    %3947 = vmatpush1.bf16.msra.mxu0 %v3464
    %3948 = vmatprep.subr.bf16.mxu0 %v3472
    %3949 = vmatpush1.bf16.msra.mxu0 %v3471
    %3950 = vmatprep.subr.bf16.mxu0 %v3479
    %3951 = vmatpush1.bf16.msra.mxu0 %v3478
    %3952 = vmatprep.subr.bf16.mxu0 %v3486
    %3953 = vmatpush1.bf16.msra.mxu0 %v3485
    %3954 = vmatprep.subr.bf16.mxu0 %v3493
    %3955 = vmatpush1.bf16.msra.mxu0 %v3492
    %3956 = vmatprep.mubr.bf16.mxu0 %v2273
    %3957 = vmatmul.mubr.bf16.gmra.mrb[0].mxu0 %v2272
    %v3958 = vpop.f32.mrb[0].mxu0
    %v3959 = vadd.f32 %v3918, %v3958
    %v3960 = vpop.f32.mrb[0].mxu0
    %v3961 = vadd.f32 %v3920, %v3960
    %v3962 = vpop.f32.mrb[0].mxu0
    %v3963 = vpop.f32.mrb[0].mxu0
    %3964 = vdwg.mxu0
    %3965 = vmatprep.subr.bf16.mxu0 0
    %3966 = vmatpush1.bf16.msra.mxu0 %v3277
    %3967 = vmatprep.subr.bf16.mxu0 0
    %3968 = vmatpush1.bf16.msra.mxu0 %v3284
    %3969 = vmatprep.subr.bf16.mxu0 0
    %3970 = vmatpush1.bf16.msra.mxu0 %v3291
    %3971 = vmatprep.subr.bf16.mxu0 0
    %3972 = vmatpush1.bf16.msra.mxu0 %v3298
    %3973 = vmatprep.subr.bf16.mxu0 0
    %3974 = vmatpush1.bf16.msra.mxu0 %v3305
    %3975 = vmatprep.subr.bf16.mxu0 0
    %3976 = vmatpush1.bf16.msra.mxu0 %v3312
    %3977 = vmatprep.subr.bf16.mxu0 0
    %3978 = vmatpush1.bf16.msra.mxu0 %v3319
    %3979 = vmatprep.subr.bf16.mxu0 0
    %3980 = vmatpush1.bf16.msra.mxu0 %v3326
    %3981 = vmatprep.subr.bf16.mxu0 0
    %3982 = vmatpush1.bf16.msra.mxu0 %v3333
    %3983 = vmatprep.subr.bf16.mxu0 0
    %3984 = vmatpush1.bf16.msra.mxu0 %v3340
    %3985 = vmatprep.subr.bf16.mxu0 0
    %3986 = vmatpush1.bf16.msra.mxu0 %v3347
    %3987 = vmatprep.subr.bf16.mxu0 0
    %3988 = vmatpush1.bf16.msra.mxu0 %v3354
    %3989 = vmatprep.subr.bf16.mxu0 0
    %3990 = vmatpush1.bf16.msra.mxu0 %v3361
    %3991 = vmatprep.subr.bf16.mxu0 0
    %3992 = vmatpush1.bf16.msra.mxu0 %v3368
    %3993 = vmatprep.subr.bf16.mxu0 0
    %3994 = vmatpush1.bf16.msra.mxu0 %v3375
    %3995 = vmatprep.subr.bf16.mxu0 0
    %3996 = vmatpush1.bf16.msra.mxu0 %v3382
    %3997 = vmatprep.mubr.bf16.mxu0 %v2271
    %3998 = vmatmul.mubr.bf16.gmra.mrb[0].mxu0 %v2270
    %v3999 = vpop.f32.mrb[0].mxu0
    %v4000 = vadd.f32 %v2559, %v3999
    %v4001 = vpop.f32.mrb[0].mxu0
    %v4002 = vpop.f32.mrb[0].mxu0
    %v4003 = vpop.f32.mrb[0].mxu0
    %4004 = vdwg.mxu0
    %4005 = vmatprep.subr.bf16.mxu0 0
    %4006 = vmatpush1.bf16.msra.mxu0 %v3389
    %4007 = vmatprep.subr.bf16.mxu0 0
    %4008 = vmatpush1.bf16.msra.mxu0 %v3396
    %4009 = vmatprep.subr.bf16.mxu0 0
    %4010 = vmatpush1.bf16.msra.mxu0 %v3403
    %4011 = vmatprep.subr.bf16.mxu0 0
    %4012 = vmatpush1.bf16.msra.mxu0 %v3410
    %4013 = vmatprep.subr.bf16.mxu0 0
    %4014 = vmatpush1.bf16.msra.mxu0 %v3417
    %4015 = vmatprep.subr.bf16.mxu0 0
    %4016 = vmatpush1.bf16.msra.mxu0 %v3424
    %4017 = vmatprep.subr.bf16.mxu0 0
    %4018 = vmatpush1.bf16.msra.mxu0 %v3431
    %4019 = vmatprep.subr.bf16.mxu0 0
    %4020 = vmatpush1.bf16.msra.mxu0 %v3438
    %4021 = vmatprep.subr.bf16.mxu0 0
    %4022 = vmatpush1.bf16.msra.mxu0 %v3445
    %4023 = vmatprep.subr.bf16.mxu0 0
    %4024 = vmatpush1.bf16.msra.mxu0 %v3452
    %4025 = vmatprep.subr.bf16.mxu0 0
    %4026 = vmatpush1.bf16.msra.mxu0 %v3459
    %4027 = vmatprep.subr.bf16.mxu0 0
    %4028 = vmatpush1.bf16.msra.mxu0 %v3466
    %4029 = vmatprep.subr.bf16.mxu0 0
    %4030 = vmatpush1.bf16.msra.mxu0 %v3473
    %4031 = vmatprep.subr.bf16.mxu0 0
    %4032 = vmatpush1.bf16.msra.mxu0 %v3480
    %4033 = vmatprep.subr.bf16.mxu0 0
    %4034 = vmatpush1.bf16.msra.mxu0 %v3487
    %4035 = vmatprep.subr.bf16.mxu0 0
    %4036 = vmatpush1.bf16.msra.mxu0 %v3494
    %4037 = vmatprep.mubr.bf16.mxu0 %v2273
    %4038 = vmatmul.mubr.bf16.gmra.mrb[0].mxu0 %v2272
    %v4039 = vpop.f32.mrb[0].mxu0
    %v4040 = vadd.f32 %v4000, %v4039
    %v4041 = vpop.f32.mrb[0].mxu0
    %v4042 = vpop.f32.mrb[0].mxu0
    %v4043 = vpop.f32.mrb[0].mxu0
    %4044 = vdwg.mxu0
    %v4045 = vxor.u32 %v3795, 2147483648
    %v4046 = vxor.u32 %v3797, 2147483648
    %v4047 = vxor.u32 %v3877, 2147483648
    %v4048 = vxor.u32 %v3879, 2147483648
    %v4049 = vxor.u32 %v3959, 2147483648
    %v4050 = vxor.u32 %v3961, 2147483648
    %v4051 = vxor.u32 %v4040, 2147483648
    %v4052 = vmul.f32 %v4045, 1.442695
    %v4053 = vpow.pop %v4052
    %v4054 = vmul.f32 %v4046, 1.442695
    %v4055 = vpow.pop %v4054
    %v4056 = vmul.f32 %v4047, 1.442695
    %v4057 = vpow.pop %v4056
    %v4058 = vmul.f32 %v4048, 1.442695
    %v4059 = vpow.pop %v4058
    %v4060 = vmul.f32 %v4049, 1.442695
    %v4061 = vpow.pop %v4060
    %v4062 = vmul.f32 %v4050, 1.442695
    %v4063 = vpow.pop %v4062
    %v4064 = vmul.f32 %v4051, 1.442695
    %v4065 = vpow.pop %v4064
    %v4066 = vadd.f32 %v4053, 1.0
    %v4067 = vadd.f32 %v4055, 1.0
    %v4068 = vadd.f32 %v4057, 1.0
    %v4069 = vadd.f32 %v4059, 1.0
    %v4070 = vadd.f32 %v4061, 1.0
    %v4071 = vadd.f32 %v4063, 1.0
    %v4072 = vadd.f32 %v4065, 1.0
    %v4073 = vrcp.pop %v4066
    %v4074 = vmul.f32 1.0, %v4073
    %v4075 = vrcp.pop %v4067
    %v4076 = vmul.f32 1.0, %v4075
    %v4077 = vrcp.pop %v4068
    %v4078 = vmul.f32 1.0, %v4077
    %v4079 = vrcp.pop %v4069
    %v4080 = vmul.f32 1.0, %v4079
    %v4081 = vrcp.pop %v4070
    %v4082 = vmul.f32 1.0, %v4081
    %v4083 = vrcp.pop %v4071
    %v4084 = vmul.f32 1.0, %v4083
    %v4085 = vrcp.pop %v4072
    %v4086 = vmul.f32 1.0, %v4085
    %4087 = vst [vmem:[#allocation11] sm:$0xff] %v4074
    %4088 = vst [vmem:[#allocation11 + $0x8] sm:$0xff] %v4076
    %4089 = vst [vmem:[#allocation11 + $0x10] sm:$0xff] %v4078
    %4090 = vst [vmem:[#allocation11 + $0x18] sm:$0xff] %v4080
    %4091 = vst [vmem:[#allocation11 + $0x20] sm:$0xff] %v4082
    %4092 = vst [vmem:[#allocation11 + $0x28] sm:$0xff] %v4084
    %4093 = vst [vmem:[#allocation11 + $0x30] sm:$0xff] %v4086
    // Predicated region
    $region62: #{tpu_custom_call.1} parent=1 // pred_check
      _
    $region63: #{tpu_custom_call.1} parent=1 // pred_check_branch
      %4095 = sbr.rel (0) target = $region65
    $region64: #{tpu_custom_call.1} parent=1 // pred_region
      %s4097 = ssub.s32 896, 896
      %4098 = vsyncadd [#allocation4], %s4097
      %s4100 = sshll.u32 [#allocation11], 4
      %s4101 = int_to_ptr.vmem [resolvable:$true] %s4100
      %4103 = dma.vmem_to_hbm [thread:$0]  %s4101, 896, %s10, [#allocation4]
    $region65: #{tpu_custom_call.1} parent=1 // pred_fallthru
      _
    // Predicated region
    $region66: #{tpu_custom_call.1} parent=1 // pred_check
      _
    $region67: #{tpu_custom_call.1} parent=1 // pred_check_branch
      %4105 = sbr.rel (0) target = $region69
    $region68: #{tpu_custom_call.1} parent=1 // pred_region
      %s4107 = ssub.s32 128, 128
      %4108 = vsyncadd [#allocation13], %s4107
      %s4110 = sshll.u32 [#allocation12], 4
      %s4111 = int_to_ptr.vmem [resolvable:$true] %s4110
      %4113 = dma.vmem_to_hbm [thread:$0]  %s4111, 128, %s11, [#allocation13]
    $region69: #{tpu_custom_call.1} parent=1 // pred_fallthru
      _
    // Predicated region
    $region70: #{tpu_custom_call.1} parent=1 // pred_check
      _
    $region71: #{tpu_custom_call.1} parent=1 // pred_check_branch
      %4115 = sbr.rel (0) target = $region73
    $region72: #{tpu_custom_call.1} parent=1 // pred_region
      %4116 = dma.done [#allocation4], 896
    $region73: #{tpu_custom_call.1} parent=1 // pred_fallthru
      _
    // Predicated region
    $region74: #{tpu_custom_call.1} parent=1 // pred_check
      _
    $region75: #{tpu_custom_call.1} parent=1 // pred_check_branch
      %4118 = sbr.rel (0) target = $region77
    $region76: #{tpu_custom_call.1} parent=1 // pred_region
      %4119 = dma.done [#allocation13], 128
    $region77: #{tpu_custom_call.1} parent=1 // pred_fallthru
      _
    %4120 = vsyncpa [#allocation3], 1
    %4121 = vsyncpa [#allocation6], 1
    %4122 = vsyncpa [#allocation9], 1
    %4123 = vsyncpa [#allocation4], 1
    %4124 = vsyncpa [#allocation13], 1

</llo_original>
